<compile_context>
chip_gen: v7x
topology: tpu7x:2x2x1
jax: 0.10.0
libtpu: 0.0.40
codegen_flags: <defaults>
</compile_context>

<pallas_src>
import functools

import jax
import jax.numpy as jnp
from jax.experimental import pallas as pl
from jax.experimental.pallas import tpu as pltpu


def _round_up(x, m):
    return (x + m - 1) // m * m


# ----------------------------- Pallas kernels ------------------------------


def _conv_gemm_kernel(p_ref, w_ref, b_ref, *rest, relu, has_residual):
    """Single-step (im2col patches) @ (BN-folded weights) + bias [+res][+ReLU].

    K is collapsed into the block, so there is no reduction grid axis, no
    accumulator scratch and no init/finalize branches: the f32 MXU result
    goes straight through the epilogue into the bf16 output tile.
    """
    if has_residual:
        r_ref, o_ref = rest
    else:
        (o_ref,) = rest

    acc = jnp.dot(p_ref[...], w_ref[...], preferred_element_type=jnp.float32)
    acc = acc + b_ref[...]                          # folded BN bias (f32)
    if has_residual:
        acc = acc + r_ref[...].astype(jnp.float32)
    if relu:
        acc = jnp.maximum(acc, 0.0)
    o_ref[...] = acc.astype(o_ref.dtype)


def _gap_kernel(x_ref, o_ref):
    # (N, H*W, C) bf16 -> per-sample channel means in f32.
    o_ref[...] = jnp.mean(x_ref[...].astype(jnp.float32), axis=1)


# ------------------------------- JAX glue -----------------------------------


def _im2col(x_nhwc, kh, kw, stride, pad):
    """Extract conv patches. Returns ((N*OH*OW, kh*kw*C), OH, OW)."""
    # TODO(synk): replace with in-kernel im2col (shifted pl.ds slices on a
    # VMEM-resident NHWC tile) to avoid materializing the patch matrix in HBM.
    n, h, w, c = x_nhwc.shape
    xp = jnp.pad(x_nhwc, ((0, 0), (pad, pad), (pad, pad), (0, 0)))
    oh = (h + 2 * pad - kh) // stride + 1
    ow = (w + 2 * pad - kw) // stride + 1
    cols = []
    for i in range(kh):
        for j in range(kw):
            cols.append(xp[:, i:i + stride * oh:stride,
                           j:j + stride * ow:stride, :])
    patches = jnp.stack(cols, axis=-2)              # (N, OH, OW, kh*kw, C)
    return patches.reshape(n * oh * ow, kh * kw * c), oh, ow


def _pick_tm(m):
    """Largest (8,128)-aligned M tile that still leaves >=2 blocks on the
    parallel M axis (v7x megacore) once mp >= 256."""
    mp8 = _round_up(m, 8)
    if mp8 <= 128:
        return mp8, mp8
    mp = _round_up(m, 128)
    tm = 128
    for cand in (512, 256):
        if mp % cand == 0 and mp // cand >= 2:
            tm = cand
            break
    return tm, mp


def conv_bn_act(x_nhwc, w, scale, bias, *, stride, pad, relu, residual=None):
    """Conv2d(bias=False)+BatchNorm2d(eval)[+residual][+ReLU] as one Pallas GEMM."""
    kh, kw, ic, oc = w.shape
    n = x_nhwc.shape[0]
    patches, oh, ow = _im2col(x_nhwc.astype(jnp.bfloat16), kh, kw, stride, pad)
    m, k = patches.shape

    tm, mp = _pick_tm(m)
    tn = 128
    ocp = _round_up(oc, tn)
    kp = _round_up(k, 128)   # whole K in one block (kp <= 1152 for this net)

    # Fold BN scale into the weights (f32) then cast to bf16.  Padded weight
    # columns / bias entries / residual lanes are 0, so padded output lanes
    # stay exactly 0 (ReLU(0)=0) until sliced off.
    w2 = (w.reshape(k, oc).astype(jnp.float32)
          * scale.astype(jnp.float32)[None, :])
    w_pad = jnp.pad(w2, ((0, kp - k), (0, ocp - oc))).astype(jnp.bfloat16)
    b_pad = jnp.pad(bias.astype(jnp.float32), (0, ocp - oc)).reshape(1, ocp)
    p_pad = jnp.pad(patches, ((0, mp - m), (0, kp - k)))        # stays bf16

    in_specs = [
        pl.BlockSpec((tm, kp), lambda i, j: (i, 0)),    # patch tile (full K)
        pl.BlockSpec((kp, tn), lambda i, j: (0, j)),    # folded-weight tile
        pl.BlockSpec((1, tn), lambda i, j: (0, j)),     # BN bias column
    ]
    operands = [p_pad, w_pad, b_pad]

    has_res = residual is not None
    if has_res:
        r_pad = jnp.pad(residual.reshape(m, oc).astype(jnp.bfloat16),
                        ((0, mp - m), (0, ocp - oc)))
        in_specs.append(pl.BlockSpec((tm, tn), lambda i, j: (i, j)))
        operands.append(r_pad)

    out = pl.pallas_call(
        functools.partial(_conv_gemm_kernel, relu=relu, has_residual=has_res),
        grid=(mp // tm, ocp // tn),
        in_specs=in_specs,
        out_specs=pl.BlockSpec((tm, tn), lambda i, j: (i, j)),
        out_shape=jax.ShapeDtypeStruct((mp, ocp), jnp.bfloat16),
        compiler_params=pltpu.CompilerParams(
            dimension_semantics=("parallel", "parallel"),
            vmem_limit_bytes=32 * 1024 * 1024,
        ),
    )(*operands)

    return out[:m, :oc].reshape(n, oh, ow, oc)


def global_avg_pool(x_nhwc):
    """AdaptiveAvgPool2d((1,1)) + flatten as one tiny Pallas reduce."""
    n, h, w, c = x_nhwc.shape
    hw = h * w
    cp = _round_up(c, 128)
    x3 = jnp.pad(x_nhwc.reshape(n, hw, c).astype(jnp.bfloat16),
                 ((0, 0), (0, 0), (0, cp - c)))
    out = pl.pallas_call(
        _gap_kernel,
        grid=(1,),
        in_specs=[pl.BlockSpec((n, hw, cp), lambda i: (0, 0, 0))],
        out_specs=pl.BlockSpec((n, cp), lambda i: (0, 0)),
        out_shape=jax.ShapeDtypeStruct((n, cp), jnp.float32),
    )(x3)
    return out[:, :c]


# --------------------------- parameter creation ------------------------------


def _conv_w(key, kh, kw, ic, oc):
    fan_in = kh * kw * ic
    return (jax.random.normal(key, (kh, kw, ic, oc), jnp.float32)
            / jnp.sqrt(jnp.float32(fan_in)))


def _bn_params(key, c, eps=1e-5):
    # eval-mode BatchNorm folded into per-channel scale/bias
    # (deterministic synthetic running stats).
    k1, k2, k3, k4 = jax.random.split(key, 4)
    gamma = jax.random.uniform(k1, (c,), jnp.float32, 0.5, 1.5)
    beta = 0.1 * jax.random.normal(k2, (c,), jnp.float32)
    running_mean = 0.1 * jax.random.normal(k3, (c,), jnp.float32)
    running_var = jax.random.uniform(k4, (c,), jnp.float32, 0.5, 1.5)
    scale = gamma / jnp.sqrt(running_var + eps)
    bias = beta - running_mean * scale
    return scale, bias


def _basic_block_params(key, in_c, out_c, stride):
    keys = jax.random.split(key, 6)
    p = {
        "w1": _conv_w(keys[0], 3, 3, in_c, out_c),
        "bn1": _bn_params(keys[1], out_c),
        "w2": _conv_w(keys[2], 3, 3, out_c, out_c),
        "bn2": _bn_params(keys[3], out_c),
        "stride": stride,
    }
    if stride != 1 or in_c != out_c:
        p["skip_w"] = _conv_w(keys[4], 1, 1, in_c, out_c)
        p["skip_bn"] = _bn_params(keys[5], out_c)
    return p


def init_backbone_params(key, input_c=3, base_ch=32):
    keys = jax.random.split(key, 6)
    return {
        "conv1_w": _conv_w(keys[0], 7, 7, input_c, base_ch),
        "bn1": _bn_params(keys[1], base_ch),
        "layer1": _basic_block_params(keys[2], base_ch, base_ch, 1),
        "layer2": _basic_block_params(keys[3], base_ch, base_ch * 2, 2),
        "layer3": _basic_block_params(keys[4], base_ch * 2, base_ch * 2, 1),
        "layer4": _basic_block_params(keys[5], base_ch * 2, base_ch * 4, 2),
    }


# ------------------------------- forward pass --------------------------------


def basic_block(x, p):
    stride = p["stride"]
    if "skip_w" in p:
        sk_s, sk_b = p["skip_bn"]
        residual = conv_bn_act(x, p["skip_w"], sk_s, sk_b,
                               stride=stride, pad=0, relu=False)
    else:
        residual = x
    s1, b1 = p["bn1"]
    out = conv_bn_act(x, p["w1"], s1, b1, stride=stride, pad=1, relu=True)
    s2, b2 = p["bn2"]
    # bn2(conv2(out)) + residual, then ReLU — fused into one kernel epilogue.
    out = conv_bn_act(out, p["w2"], s2, b2, stride=1, pad=1,
                      relu=True, residual=residual)
    return out


def deep_cnn_backbone(x_nchw, params):
    # NCHW (PyTorch) -> NHWC (kernel layout), bf16 activations end-to-end.
    x = jnp.transpose(x_nchw, (0, 2, 3, 1)).astype(jnp.bfloat16)
    s1, b1 = params["bn1"]
    x = conv_bn_act(x, params["conv1_w"], s1, b1, stride=2, pad=3, relu=True)
    x = basic_block(x, params["layer1"])
    x = basic_block(x, params["layer2"])
    x = basic_block(x, params["layer3"])
    x = basic_block(x, params["layer4"])
    x = global_avg_pool(x)      # (N, 4*base_ch) — matches x.view(N, -1)
    return x


# ---------------------------------- main --------------------------------------


if __name__ == "__main__":
    key = jax.random.PRNGKey(0)
    k_x, k_p = jax.random.split(key)

    input_c, base_ch = 3, 32
    x = jax.random.normal(k_x, (2, input_c, 16, 16), jnp.float32)  # NCHW
    params = init_backbone_params(k_p, input_c=input_c, base_ch=base_ch)

    # jit the whole backbone once so XLA fuses the pad/cast/reshape glue
    # between the pallas_calls (review item: fewer, fatter dispatches).
    fwd = jax.jit(lambda xx: deep_cnn_backbone(xx, params))
    out = jax.block_until_ready(fwd(x))

    assert out.shape == (2, base_ch * 4), out.shape
    assert bool(jnp.all(jnp.isfinite(out)))
    print("KERNEL_OK")
</pallas_src>

<mosaic_0001>
module attributes {stable_mosaic.version = 11 : i64} {
  func.func @_conv_gemm_kernel(%arg0: i32, %arg1: i32, %arg2: memref<128x256xbf16, #tpu.memory_space<vmem>>, %arg3: memref<256x128xbf16, #tpu.memory_space<vmem>>, %arg4: memref<1x128xf32, #tpu.memory_space<vmem>>, %arg5: memref<128x128xbf16, #tpu.memory_space<vmem>>) attributes {dimension_semantics = [#tpu.dimension_semantics<parallel>, #tpu.dimension_semantics<parallel>], iteration_bounds = array<i64: 1, 1>, scalar_prefetch = 0 : i64, scratch_operands = 0 : i64, tpu.core_type = #tpu.core_type<tc>, window_params = [{transform_indices = @transform_0, window_bounds = array<i64: 128, 256>}, {transform_indices = @transform_1, window_bounds = array<i64: 256, 128>}, {transform_indices = @transform_2, window_bounds = array<i64: 1, 128>}, {transform_indices = @transform_3, window_bounds = array<i64: 128, 128>}]} {
    %c0 = arith.constant 0 : index
    %c0_0 = arith.constant 0 : index
    %0 = vector.load %arg2[%c0, %c0_0] : memref<128x256xbf16, #tpu.memory_space<vmem>>, vector<128x256xbf16>
    %c0_1 = arith.constant 0 : index
    %c0_2 = arith.constant 0 : index
    %1 = vector.load %arg3[%c0_1, %c0_2] : memref<256x128xbf16, #tpu.memory_space<vmem>>, vector<256x128xbf16>
    %cst = arith.constant dense<0.000000e+00> : vector<128x128xf32>
    %2 = tpu.matmul %0, %1, %cst {dimension_numbers = #tpu.dot_dimension_numbers<[1], [0], [0], [1], [0, 0, 1, 1], [], []>} : vector<128x256xbf16>, vector<256x128xbf16>, vector<128x128xf32> -> vector<128x128xf32>
    %c0_3 = arith.constant 0 : index
    %c0_4 = arith.constant 0 : index
    %3 = vector.load %arg4[%c0_3, %c0_4] : memref<1x128xf32, #tpu.memory_space<vmem>>, vector<1x128xf32>
    %4 = vector.broadcast %3 : vector<1x128xf32> to vector<128x128xf32>
    %5 = arith.addf %2, %4 : vector<128x128xf32>
    %cst_5 = arith.constant 0.000000e+00 : f32
    %6 = vector.broadcast %cst_5 : f32 to vector<128x128xf32>
    %7 = arith.maximumf %5, %6 : vector<128x128xf32>
    %8 = arith.truncf %7 : vector<128x128xf32> to vector<128x128xbf16>
    %c0_6 = arith.constant 0 : index
    %c0_7 = arith.constant 0 : index
    %9 = vector.load %arg5[%c0_6, %c0_7] : memref<128x128xbf16, #tpu.memory_space<vmem>>, vector<128x128xbf16>
    tpu.vector_store %arg5[%c0_6, %c0_7], %8 {strides = array<i32>} : memref<128x128xbf16, #tpu.memory_space<vmem>>, vector<128x128xbf16>,
    return
  }
  func.func @transform_0(%arg0: i32, %arg1: i32) -> (i32, i32) {
    %c0_i32 = arith.constant 0 : i32
    %c0_i32_0 = arith.constant 0 : i32
    return %arg0, %c0_i32 : i32, i32
  }
  func.func @transform_1(%arg0: i32, %arg1: i32) -> (i32, i32) {
    %c0_i32 = arith.constant 0 : i32
    %c0_i32_0 = arith.constant 0 : i32
    return %c0_i32, %arg1 : i32, i32
  }
  func.func @transform_2(%arg0: i32, %arg1: i32) -> (i32, i32) {
    %c0_i32 = arith.constant 0 : i32
    %c0_i32_0 = arith.constant 0 : i32
    return %c0_i32, %arg1 : i32, i32
  }
  func.func @transform_3(%arg0: i32, %arg1: i32) -> (i32, i32) {
    %c0_i32 = arith.constant 0 : i32
    return %arg0, %arg1 : i32, i32
  }
}

module attributes {stable_mosaic.version = 11 : i64} {
  func.func @_conv_gemm_kernel(%arg0: i32, %arg1: i32, %arg2: memref<128x384xbf16, #tpu.memory_space<vmem>>, %arg3: memref<384x128xbf16, #tpu.memory_space<vmem>>, %arg4: memref<1x128xf32, #tpu.memory_space<vmem>>, %arg5: memref<128x128xbf16, #tpu.memory_space<vmem>>) attributes {dimension_semantics = [#tpu.dimension_semantics<parallel>, #tpu.dimension_semantics<parallel>], iteration_bounds = array<i64: 1, 1>, scalar_prefetch = 0 : i64, scratch_operands = 0 : i64, tpu.core_type = #tpu.core_type<tc>, window_params = [{transform_indices = @transform_0, window_bounds = array<i64: 128, 384>}, {transform_indices = @transform_1, window_bounds = array<i64: 384, 128>}, {transform_indices = @transform_2, window_bounds = array<i64: 1, 128>}, {transform_indices = @transform_3, window_bounds = array<i64: 128, 128>}]} {
    %c0 = arith.constant 0 : index
    %c0_0 = arith.constant 0 : index
    %0 = vector.load %arg2[%c0, %c0_0] : memref<128x384xbf16, #tpu.memory_space<vmem>>, vector<128x384xbf16>
    %c0_1 = arith.constant 0 : index
    %c0_2 = arith.constant 0 : index
    %1 = vector.load %arg3[%c0_1, %c0_2] : memref<384x128xbf16, #tpu.memory_space<vmem>>, vector<384x128xbf16>
    %cst = arith.constant dense<0.000000e+00> : vector<128x128xf32>
    %2 = tpu.matmul %0, %1, %cst {dimension_numbers = #tpu.dot_dimension_numbers<[1], [0], [0], [1], [0, 0, 1, 1], [], []>} : vector<128x384xbf16>, vector<384x128xbf16>, vector<128x128xf32> -> vector<128x128xf32>
    %c0_3 = arith.constant 0 : index
    %c0_4 = arith.constant 0 : index
    %3 = vector.load %arg4[%c0_3, %c0_4] : memref<1x128xf32, #tpu.memory_space<vmem>>, vector<1x128xf32>
    %4 = vector.broadcast %3 : vector<1x128xf32> to vector<128x128xf32>
    %5 = arith.addf %2, %4 : vector<128x128xf32>
    %cst_5 = arith.constant 0.000000e+00 : f32
    %6 = vector.broadcast %cst_5 : f32 to vector<128x128xf32>
    %7 = arith.maximumf %5, %6 : vector<128x128xf32>
    %8 = arith.truncf %7 : vector<128x128xf32> to vector<128x128xbf16>
    %c0_6 = arith.constant 0 : index
    %c0_7 = arith.constant 0 : index
    %9 = vector.load %arg5[%c0_6, %c0_7] : memref<128x128xbf16, #tpu.memory_space<vmem>>, vector<128x128xbf16>
    tpu.vector_store %arg5[%c0_6, %c0_7], %8 {strides = array<i32>} : memref<128x128xbf16, #tpu.memory_space<vmem>>, vector<128x128xbf16>,
    return
  }
  func.func @transform_0(%arg0: i32, %arg1: i32) -> (i32, i32) {
    %c0_i32 = arith.constant 0 : i32
    %c0_i32_0 = arith.constant 0 : i32
    return %arg0, %c0_i32 : i32, i32
  }
  func.func @transform_1(%arg0: i32, %arg1: i32) -> (i32, i32) {
    %c0_i32 = arith.constant 0 : i32
    %c0_i32_0 = arith.constant 0 : i32
    return %c0_i32, %arg1 : i32, i32
  }
  func.func @transform_2(%arg0: i32, %arg1: i32) -> (i32, i32) {
    %c0_i32 = arith.constant 0 : i32
    %c0_i32_0 = arith.constant 0 : i32
    return %c0_i32, %arg1 : i32, i32
  }
  func.func @transform_3(%arg0: i32, %arg1: i32) -> (i32, i32) {
    %c0_i32 = arith.constant 0 : i32
    return %arg0, %arg1 : i32, i32
  }
}

module attributes {stable_mosaic.version = 11 : i64} {
  func.func @_conv_gemm_kernel(%arg0: i32, %arg1: i32, %arg2: memref<128x384xbf16, #tpu.memory_space<vmem>>, %arg3: memref<384x128xbf16, #tpu.memory_space<vmem>>, %arg4: memref<1x128xf32, #tpu.memory_space<vmem>>, %arg5: memref<128x128xbf16, #tpu.memory_space<vmem>>, %arg6: memref<128x128xbf16, #tpu.memory_space<vmem>>) attributes {dimension_semantics = [#tpu.dimension_semantics<parallel>, #tpu.dimension_semantics<parallel>], iteration_bounds = array<i64: 1, 1>, scalar_prefetch = 0 : i64, scratch_operands = 0 : i64, tpu.core_type = #tpu.core_type<tc>, window_params = [{transform_indices = @transform_0, window_bounds = array<i64: 128, 384>}, {transform_indices = @transform_1, window_bounds = array<i64: 384, 128>}, {transform_indices = @transform_2, window_bounds = array<i64: 1, 128>}, {transform_indices = @transform_3, window_bounds = array<i64: 128, 128>}, {transform_indices = @transform_4, window_bounds = array<i64: 128, 128>}]} {
    %c0 = arith.constant 0 : index
    %c0_0 = arith.constant 0 : index
    %0 = vector.load %arg2[%c0, %c0_0] : memref<128x384xbf16, #tpu.memory_space<vmem>>, vector<128x384xbf16>
    %c0_1 = arith.constant 0 : index
    %c0_2 = arith.constant 0 : index
    %1 = vector.load %arg3[%c0_1, %c0_2] : memref<384x128xbf16, #tpu.memory_space<vmem>>, vector<384x128xbf16>
    %cst = arith.constant dense<0.000000e+00> : vector<128x128xf32>
    %2 = tpu.matmul %0, %1, %cst {dimension_numbers = #tpu.dot_dimension_numbers<[1], [0], [0], [1], [0, 0, 1, 1], [], []>} : vector<128x384xbf16>, vector<384x128xbf16>, vector<128x128xf32> -> vector<128x128xf32>
    %c0_3 = arith.constant 0 : index
    %c0_4 = arith.constant 0 : index
    %3 = vector.load %arg4[%c0_3, %c0_4] : memref<1x128xf32, #tpu.memory_space<vmem>>, vector<1x128xf32>
    %4 = vector.broadcast %3 : vector<1x128xf32> to vector<128x128xf32>
    %5 = arith.addf %2, %4 : vector<128x128xf32>
    %c0_5 = arith.constant 0 : index
    %c0_6 = arith.constant 0 : index
    %6 = vector.load %arg5[%c0_5, %c0_6] : memref<128x128xbf16, #tpu.memory_space<vmem>>, vector<128x128xbf16>
    %7 = arith.extf %6 : vector<128x128xbf16> to vector<128x128xf32>
    %8 = arith.addf %5, %7 : vector<128x128xf32>
    %cst_7 = arith.constant 0.000000e+00 : f32
    %9 = vector.broadcast %cst_7 : f32 to vector<128x128xf32>
    %10 = arith.maximumf %8, %9 : vector<128x128xf32>
    %11 = arith.truncf %10 : vector<128x128xf32> to vector<128x128xbf16>
    %c0_8 = arith.constant 0 : index
    %c0_9 = arith.constant 0 : index
    %12 = vector.load %arg6[%c0_8, %c0_9] : memref<128x128xbf16, #tpu.memory_space<vmem>>, vector<128x128xbf16>
    tpu.vector_store %arg6[%c0_8, %c0_9], %11 {strides = array<i32>} : memref<128x128xbf16, #tpu.memory_space<vmem>>, vector<128x128xbf16>,
    return
  }
  func.func @transform_0(%arg0: i32, %arg1: i32) -> (i32, i32) {
    %c0_i32 = arith.constant 0 : i32
    %c0_i32_0 = arith.constant 0 : i32
    return %arg0, %c0_i32 : i32, i32
  }
  func.func @transform_1(%arg0: i32, %arg1: i32) -> (i32, i32) {
    %c0_i32 = arith.constant 0 : i32
    %c0_i32_0 = arith.constant 0 : i32
    return %c0_i32, %arg1 : i32, i32
  }
  func.func @transform_2(%arg0: i32, %arg1: i32) -> (i32, i32) {
    %c0_i32 = arith.constant 0 : i32
    %c0_i32_0 = arith.constant 0 : i32
    return %c0_i32, %arg1 : i32, i32
  }
  func.func @transform_3(%arg0: i32, %arg1: i32) -> (i32, i32) {
    %c0_i32 = arith.constant 0 : i32
    return %arg0, %arg1 : i32, i32
  }
  func.func @transform_4(%arg0: i32, %arg1: i32) -> (i32, i32) {
    %c0_i32 = arith.constant 0 : i32
    return %arg0, %arg1 : i32, i32
  }
}

module attributes {stable_mosaic.version = 11 : i64} {
  func.func @_conv_gemm_kernel(%arg0: i32, %arg1: i32, %arg2: memref<32x384xbf16, #tpu.memory_space<vmem>>, %arg3: memref<384x128xbf16, #tpu.memory_space<vmem>>, %arg4: memref<1x128xf32, #tpu.memory_space<vmem>>, %arg5: memref<32x128xbf16, #tpu.memory_space<vmem>>) attributes {dimension_semantics = [#tpu.dimension_semantics<parallel>, #tpu.dimension_semantics<parallel>], iteration_bounds = array<i64: 1, 1>, scalar_prefetch = 0 : i64, scratch_operands = 0 : i64, tpu.core_type = #tpu.core_type<tc>, window_params = [{transform_indices = @transform_0, window_bounds = array<i64: 32, 384>}, {transform_indices = @transform_1, window_bounds = array<i64: 384, 128>}, {transform_indices = @transform_2, window_bounds = array<i64: 1, 128>}, {transform_indices = @transform_3, window_bounds = array<i64: 32, 128>}]} {
    %c0 = arith.constant 0 : index
    %c0_0 = arith.constant 0 : index
    %0 = vector.load %arg2[%c0, %c0_0] : memref<32x384xbf16, #tpu.memory_space<vmem>>, vector<32x384xbf16>
    %c0_1 = arith.constant 0 : index
    %c0_2 = arith.constant 0 : index
    %1 = vector.load %arg3[%c0_1, %c0_2] : memref<384x128xbf16, #tpu.memory_space<vmem>>, vector<384x128xbf16>
    %cst = arith.constant dense<0.000000e+00> : vector<32x128xf32>
    %2 = tpu.matmul %0, %1, %cst {dimension_numbers = #tpu.dot_dimension_numbers<[1], [0], [0], [1], [0, 0, 1, 1], [], []>} : vector<32x384xbf16>, vector<384x128xbf16>, vector<32x128xf32> -> vector<32x128xf32>
    %c0_3 = arith.constant 0 : index
    %c0_4 = arith.constant 0 : index
    %3 = vector.load %arg4[%c0_3, %c0_4] : memref<1x128xf32, #tpu.memory_space<vmem>>, vector<1x128xf32>
    %4 = vector.broadcast %3 : vector<1x128xf32> to vector<32x128xf32>
    %5 = arith.addf %2, %4 : vector<32x128xf32>
    %cst_5 = arith.constant 0.000000e+00 : f32
    %6 = vector.broadcast %cst_5 : f32 to vector<32x128xf32>
    %7 = arith.maximumf %5, %6 : vector<32x128xf32>
    %8 = arith.truncf %7 : vector<32x128xf32> to vector<32x128xbf16>
    %c0_6 = arith.constant 0 : index
    %c0_7 = arith.constant 0 : index
    %9 = vector.load %arg5[%c0_6, %c0_7] : memref<32x128xbf16, #tpu.memory_space<vmem>>, vector<32x128xbf16>
    tpu.vector_store %arg5[%c0_6, %c0_7], %8 {strides = array<i32>} : memref<32x128xbf16, #tpu.memory_space<vmem>>, vector<32x128xbf16>,
    return
  }
  func.func @transform_0(%arg0: i32, %arg1: i32) -> (i32, i32) {
    %c0_i32 = arith.constant 0 : i32
    %c0_i32_0 = arith.constant 0 : i32
    return %arg0, %c0_i32 : i32, i32
  }
  func.func @transform_1(%arg0: i32, %arg1: i32) -> (i32, i32) {
    %c0_i32 = arith.constant 0 : i32
    %c0_i32_0 = arith.constant 0 : i32
    return %c0_i32, %arg1 : i32, i32
  }
  func.func @transform_2(%arg0: i32, %arg1: i32) -> (i32, i32) {
    %c0_i32 = arith.constant 0 : i32
    %c0_i32_0 = arith.constant 0 : i32
    return %c0_i32, %arg1 : i32, i32
  }
  func.func @transform_3(%arg0: i32, %arg1: i32) -> (i32, i32) {
    %c0_i32 = arith.constant 0 : i32
    return %arg0, %arg1 : i32, i32
  }
}

module attributes {stable_mosaic.version = 11 : i64} {
  func.func @_conv_gemm_kernel(%arg0: i32, %arg1: i32, %arg2: memref<32x640xbf16, #tpu.memory_space<vmem>>, %arg3: memref<640x128xbf16, #tpu.memory_space<vmem>>, %arg4: memref<1x128xf32, #tpu.memory_space<vmem>>, %arg5: memref<32x128xbf16, #tpu.memory_space<vmem>>) attributes {dimension_semantics = [#tpu.dimension_semantics<parallel>, #tpu.dimension_semantics<parallel>], iteration_bounds = array<i64: 1, 1>, scalar_prefetch = 0 : i64, scratch_operands = 0 : i64, tpu.core_type = #tpu.core_type<tc>, window_params = [{transform_indices = @transform_0, window_bounds = array<i64: 32, 640>}, {transform_indices = @transform_1, window_bounds = array<i64: 640, 128>}, {transform_indices = @transform_2, window_bounds = array<i64: 1, 128>}, {transform_indices = @transform_3, window_bounds = array<i64: 32, 128>}]} {
    %c0 = arith.constant 0 : index
    %c0_0 = arith.constant 0 : index
    %0 = vector.load %arg2[%c0, %c0_0] : memref<32x640xbf16, #tpu.memory_space<vmem>>, vector<32x640xbf16>
    %c0_1 = arith.constant 0 : index
    %c0_2 = arith.constant 0 : index
    %1 = vector.load %arg3[%c0_1, %c0_2] : memref<640x128xbf16, #tpu.memory_space<vmem>>, vector<640x128xbf16>
    %cst = arith.constant dense<0.000000e+00> : vector<32x128xf32>
    %2 = tpu.matmul %0, %1, %cst {dimension_numbers = #tpu.dot_dimension_numbers<[1], [0], [0], [1], [0, 0, 1, 1], [], []>} : vector<32x640xbf16>, vector<640x128xbf16>, vector<32x128xf32> -> vector<32x128xf32>
    %c0_3 = arith.constant 0 : index
    %c0_4 = arith.constant 0 : index
    %3 = vector.load %arg4[%c0_3, %c0_4] : memref<1x128xf32, #tpu.memory_space<vmem>>, vector<1x128xf32>
    %4 = vector.broadcast %3 : vector<1x128xf32> to vector<32x128xf32>
    %5 = arith.addf %2, %4 : vector<32x128xf32>
    %cst_5 = arith.constant 0.000000e+00 : f32
    %6 = vector.broadcast %cst_5 : f32 to vector<32x128xf32>
    %7 = arith.maximumf %5, %6 : vector<32x128xf32>
    %8 = arith.truncf %7 : vector<32x128xf32> to vector<32x128xbf16>
    %c0_6 = arith.constant 0 : index
    %c0_7 = arith.constant 0 : index
    %9 = vector.load %arg5[%c0_6, %c0_7] : memref<32x128xbf16, #tpu.memory_space<vmem>>, vector<32x128xbf16>
    tpu.vector_store %arg5[%c0_6, %c0_7], %8 {strides = array<i32>} : memref<32x128xbf16, #tpu.memory_space<vmem>>, vector<32x128xbf16>,
    return
  }
  func.func @transform_0(%arg0: i32, %arg1: i32) -> (i32, i32) {
    %c0_i32 = arith.constant 0 : i32
    %c0_i32_0 = arith.constant 0 : i32
    return %arg0, %c0_i32 : i32, i32
  }
  func.func @transform_1(%arg0: i32, %arg1: i32) -> (i32, i32) {
    %c0_i32 = arith.constant 0 : i32
    %c0_i32_0 = arith.constant 0 : i32
    return %c0_i32, %arg1 : i32, i32
  }
  func.func @transform_2(%arg0: i32, %arg1: i32) -> (i32, i32) {
    %c0_i32 = arith.constant 0 : i32
    %c0_i32_0 = arith.constant 0 : i32
    return %c0_i32, %arg1 : i32, i32
  }
  func.func @transform_3(%arg0: i32, %arg1: i32) -> (i32, i32) {
    %c0_i32 = arith.constant 0 : i32
    return %arg0, %arg1 : i32, i32
  }
}

module attributes {stable_mosaic.version = 11 : i64} {
  func.func @_conv_gemm_kernel(%arg0: i32, %arg1: i32, %arg2: memref<32x640xbf16, #tpu.memory_space<vmem>>, %arg3: memref<640x128xbf16, #tpu.memory_space<vmem>>, %arg4: memref<1x128xf32, #tpu.memory_space<vmem>>, %arg5: memref<32x128xbf16, #tpu.memory_space<vmem>>, %arg6: memref<32x128xbf16, #tpu.memory_space<vmem>>) attributes {dimension_semantics = [#tpu.dimension_semantics<parallel>, #tpu.dimension_semantics<parallel>], iteration_bounds = array<i64: 1, 1>, scalar_prefetch = 0 : i64, scratch_operands = 0 : i64, tpu.core_type = #tpu.core_type<tc>, window_params = [{transform_indices = @transform_0, window_bounds = array<i64: 32, 640>}, {transform_indices = @transform_1, window_bounds = array<i64: 640, 128>}, {transform_indices = @transform_2, window_bounds = array<i64: 1, 128>}, {transform_indices = @transform_3, window_bounds = array<i64: 32, 128>}, {transform_indices = @transform_4, window_bounds = array<i64: 32, 128>}]} {
    %c0 = arith.constant 0 : index
    %c0_0 = arith.constant 0 : index
    %0 = vector.load %arg2[%c0, %c0_0] : memref<32x640xbf16, #tpu.memory_space<vmem>>, vector<32x640xbf16>
    %c0_1 = arith.constant 0 : index
    %c0_2 = arith.constant 0 : index
    %1 = vector.load %arg3[%c0_1, %c0_2] : memref<640x128xbf16, #tpu.memory_space<vmem>>, vector<640x128xbf16>
    %cst = arith.constant dense<0.000000e+00> : vector<32x128xf32>
    %2 = tpu.matmul %0, %1, %cst {dimension_numbers = #tpu.dot_dimension_numbers<[1], [0], [0], [1], [0, 0, 1, 1], [], []>} : vector<32x640xbf16>, vector<640x128xbf16>, vector<32x128xf32> -> vector<32x128xf32>
    %c0_3 = arith.constant 0 : index
    %c0_4 = arith.constant 0 : index
    %3 = vector.load %arg4[%c0_3, %c0_4] : memref<1x128xf32, #tpu.memory_space<vmem>>, vector<1x128xf32>
    %4 = vector.broadcast %3 : vector<1x128xf32> to vector<32x128xf32>
    %5 = arith.addf %2, %4 : vector<32x128xf32>
    %c0_5 = arith.constant 0 : index
    %c0_6 = arith.constant 0 : index
    %6 = vector.load %arg5[%c0_5, %c0_6] : memref<32x128xbf16, #tpu.memory_space<vmem>>, vector<32x128xbf16>
    %7 = arith.extf %6 : vector<32x128xbf16> to vector<32x128xf32>
    %8 = arith.addf %5, %7 : vector<32x128xf32>
    %cst_7 = arith.constant 0.000000e+00 : f32
    %9 = vector.broadcast %cst_7 : f32 to vector<32x128xf32>
    %10 = arith.maximumf %8, %9 : vector<32x128xf32>
    %11 = arith.truncf %10 : vector<32x128xf32> to vector<32x128xbf16>
    %c0_8 = arith.constant 0 : index
    %c0_9 = arith.constant 0 : index
    %12 = vector.load %arg6[%c0_8, %c0_9] : memref<32x128xbf16, #tpu.memory_space<vmem>>, vector<32x128xbf16>
    tpu.vector_store %arg6[%c0_8, %c0_9], %11 {strides = array<i32>} : memref<32x128xbf16, #tpu.memory_space<vmem>>, vector<32x128xbf16>,
    return
  }
  func.func @transform_0(%arg0: i32, %arg1: i32) -> (i32, i32) {
    %c0_i32 = arith.constant 0 : i32
    %c0_i32_0 = arith.constant 0 : i32
    return %arg0, %c0_i32 : i32, i32
  }
  func.func @transform_1(%arg0: i32, %arg1: i32) -> (i32, i32) {
    %c0_i32 = arith.constant 0 : i32
    %c0_i32_0 = arith.constant 0 : i32
    return %c0_i32, %arg1 : i32, i32
  }
  func.func @transform_2(%arg0: i32, %arg1: i32) -> (i32, i32) {
    %c0_i32 = arith.constant 0 : i32
    %c0_i32_0 = arith.constant 0 : i32
    return %c0_i32, %arg1 : i32, i32
  }
  func.func @transform_3(%arg0: i32, %arg1: i32) -> (i32, i32) {
    %c0_i32 = arith.constant 0 : i32
    return %arg0, %arg1 : i32, i32
  }
  func.func @transform_4(%arg0: i32, %arg1: i32) -> (i32, i32) {
    %c0_i32 = arith.constant 0 : i32
    return %arg0, %arg1 : i32, i32
  }
}

module attributes {stable_mosaic.version = 11 : i64} {
  func.func @_conv_gemm_kernel(%arg0: i32, %arg1: i32, %arg2: memref<32x128xbf16, #tpu.memory_space<vmem>>, %arg3: memref<128x128xbf16, #tpu.memory_space<vmem>>, %arg4: memref<1x128xf32, #tpu.memory_space<vmem>>, %arg5: memref<32x128xbf16, #tpu.memory_space<vmem>>) attributes {dimension_semantics = [#tpu.dimension_semantics<parallel>, #tpu.dimension_semantics<parallel>], iteration_bounds = array<i64: 1, 1>, scalar_prefetch = 0 : i64, scratch_operands = 0 : i64, tpu.core_type = #tpu.core_type<tc>, window_params = [{transform_indices = @transform_0, window_bounds = array<i64: 32, 128>}, {transform_indices = @transform_1, window_bounds = array<i64: 128, 128>}, {transform_indices = @transform_2, window_bounds = array<i64: 1, 128>}, {transform_indices = @transform_3, window_bounds = array<i64: 32, 128>}]} {
    %c0 = arith.constant 0 : index
    %c0_0 = arith.constant 0 : index
    %0 = vector.load %arg2[%c0, %c0_0] : memref<32x128xbf16, #tpu.memory_space<vmem>>, vector<32x128xbf16>
    %c0_1 = arith.constant 0 : index
    %c0_2 = arith.constant 0 : index
    %1 = vector.load %arg3[%c0_1, %c0_2] : memref<128x128xbf16, #tpu.memory_space<vmem>>, vector<128x128xbf16>
    %cst = arith.constant dense<0.000000e+00> : vector<32x128xf32>
    %2 = tpu.matmul %0, %1, %cst {dimension_numbers = #tpu.dot_dimension_numbers<[1], [0], [0], [1], [0, 0, 1, 1], [], []>} : vector<32x128xbf16>, vector<128x128xbf16>, vector<32x128xf32> -> vector<32x128xf32>
    %c0_3 = arith.constant 0 : index
    %c0_4 = arith.constant 0 : index
    %3 = vector.load %arg4[%c0_3, %c0_4] : memref<1x128xf32, #tpu.memory_space<vmem>>, vector<1x128xf32>
    %4 = vector.broadcast %3 : vector<1x128xf32> to vector<32x128xf32>
    %5 = arith.addf %2, %4 : vector<32x128xf32>
    %6 = arith.truncf %5 : vector<32x128xf32> to vector<32x128xbf16>
    %c0_5 = arith.constant 0 : index
    %c0_6 = arith.constant 0 : index
    %7 = vector.load %arg5[%c0_5, %c0_6] : memref<32x128xbf16, #tpu.memory_space<vmem>>, vector<32x128xbf16>
    tpu.vector_store %arg5[%c0_5, %c0_6], %6 {strides = array<i32>} : memref<32x128xbf16, #tpu.memory_space<vmem>>, vector<32x128xbf16>,
    return
  }
  func.func @transform_0(%arg0: i32, %arg1: i32) -> (i32, i32) {
    %c0_i32 = arith.constant 0 : i32
    %c0_i32_0 = arith.constant 0 : i32
    return %arg0, %c0_i32 : i32, i32
  }
  func.func @transform_1(%arg0: i32, %arg1: i32) -> (i32, i32) {
    %c0_i32 = arith.constant 0 : i32
    %c0_i32_0 = arith.constant 0 : i32
    return %c0_i32, %arg1 : i32, i32
  }
  func.func @transform_2(%arg0: i32, %arg1: i32) -> (i32, i32) {
    %c0_i32 = arith.constant 0 : i32
    %c0_i32_0 = arith.constant 0 : i32
    return %c0_i32, %arg1 : i32, i32
  }
  func.func @transform_3(%arg0: i32, %arg1: i32) -> (i32, i32) {
    %c0_i32 = arith.constant 0 : i32
    return %arg0, %arg1 : i32, i32
  }
}

module attributes {stable_mosaic.version = 11 : i64} {
  func.func @_conv_gemm_kernel(%arg0: i32, %arg1: i32, %arg2: memref<8x640xbf16, #tpu.memory_space<vmem>>, %arg3: memref<640x128xbf16, #tpu.memory_space<vmem>>, %arg4: memref<1x128xf32, #tpu.memory_space<vmem>>, %arg5: memref<8x128xbf16, #tpu.memory_space<vmem>>) attributes {dimension_semantics = [#tpu.dimension_semantics<parallel>, #tpu.dimension_semantics<parallel>], iteration_bounds = array<i64: 1, 1>, scalar_prefetch = 0 : i64, scratch_operands = 0 : i64, tpu.core_type = #tpu.core_type<tc>, window_params = [{transform_indices = @transform_0, window_bounds = array<i64: 8, 640>}, {transform_indices = @transform_1, window_bounds = array<i64: 640, 128>}, {transform_indices = @transform_2, window_bounds = array<i64: 1, 128>}, {transform_indices = @transform_3, window_bounds = array<i64: 8, 128>}]} {
    %c0 = arith.constant 0 : index
    %c0_0 = arith.constant 0 : index
    %0 = vector.load %arg2[%c0, %c0_0] : memref<8x640xbf16, #tpu.memory_space<vmem>>, vector<8x640xbf16>
    %c0_1 = arith.constant 0 : index
    %c0_2 = arith.constant 0 : index
    %1 = vector.load %arg3[%c0_1, %c0_2] : memref<640x128xbf16, #tpu.memory_space<vmem>>, vector<640x128xbf16>
    %cst = arith.constant dense<0.000000e+00> : vector<8x128xf32>
    %2 = tpu.matmul %0, %1, %cst {dimension_numbers = #tpu.dot_dimension_numbers<[1], [0], [0], [1], [0, 0, 1, 1], [], []>} : vector<8x640xbf16>, vector<640x128xbf16>, vector<8x128xf32> -> vector<8x128xf32>
    %c0_3 = arith.constant 0 : index
    %c0_4 = arith.constant 0 : index
    %3 = vector.load %arg4[%c0_3, %c0_4] : memref<1x128xf32, #tpu.memory_space<vmem>>, vector<1x128xf32>
    %4 = vector.broadcast %3 : vector<1x128xf32> to vector<8x128xf32>
    %5 = arith.addf %2, %4 : vector<8x128xf32>
    %cst_5 = arith.constant 0.000000e+00 : f32
    %6 = vector.broadcast %cst_5 : f32 to vector<8x128xf32>
    %7 = arith.maximumf %5, %6 : vector<8x128xf32>
    %8 = arith.truncf %7 : vector<8x128xf32> to vector<8x128xbf16>
    %c0_6 = arith.constant 0 : index
    %c0_7 = arith.constant 0 : index
    %9 = vector.load %arg5[%c0_6, %c0_7] : memref<8x128xbf16, #tpu.memory_space<vmem>>, vector<8x128xbf16>
    tpu.vector_store %arg5[%c0_6, %c0_7], %8 {strides = array<i32>} : memref<8x128xbf16, #tpu.memory_space<vmem>>, vector<8x128xbf16>,
    return
  }
  func.func @transform_0(%arg0: i32, %arg1: i32) -> (i32, i32) {
    %c0_i32 = arith.constant 0 : i32
    %c0_i32_0 = arith.constant 0 : i32
    return %arg0, %c0_i32 : i32, i32
  }
  func.func @transform_1(%arg0: i32, %arg1: i32) -> (i32, i32) {
    %c0_i32 = arith.constant 0 : i32
    %c0_i32_0 = arith.constant 0 : i32
    return %c0_i32, %arg1 : i32, i32
  }
  func.func @transform_2(%arg0: i32, %arg1: i32) -> (i32, i32) {
    %c0_i32 = arith.constant 0 : i32
    %c0_i32_0 = arith.constant 0 : i32
    return %c0_i32, %arg1 : i32, i32
  }
  func.func @transform_3(%arg0: i32, %arg1: i32) -> (i32, i32) {
    %c0_i32 = arith.constant 0 : i32
    return %arg0, %arg1 : i32, i32
  }
}

module attributes {stable_mosaic.version = 11 : i64} {
  func.func @_conv_gemm_kernel(%arg0: i32, %arg1: i32, %arg2: memref<8x128xbf16, #tpu.memory_space<vmem>>, %arg3: memref<128x128xbf16, #tpu.memory_space<vmem>>, %arg4: memref<1x128xf32, #tpu.memory_space<vmem>>, %arg5: memref<8x128xbf16, #tpu.memory_space<vmem>>) attributes {dimension_semantics = [#tpu.dimension_semantics<parallel>, #tpu.dimension_semantics<parallel>], iteration_bounds = array<i64: 1, 1>, scalar_prefetch = 0 : i64, scratch_operands = 0 : i64, tpu.core_type = #tpu.core_type<tc>, window_params = [{transform_indices = @transform_0, window_bounds = array<i64: 8, 128>}, {transform_indices = @transform_1, window_bounds = array<i64: 128, 128>}, {transform_indices = @transform_2, window_bounds = array<i64: 1, 128>}, {transform_indices = @transform_3, window_bounds = array<i64: 8, 128>}]} {
    %c0 = arith.constant 0 : index
    %c0_0 = arith.constant 0 : index
    %0 = vector.load %arg2[%c0, %c0_0] : memref<8x128xbf16, #tpu.memory_space<vmem>>, vector<8x128xbf16>
    %c0_1 = arith.constant 0 : index
    %c0_2 = arith.constant 0 : index
    %1 = vector.load %arg3[%c0_1, %c0_2] : memref<128x128xbf16, #tpu.memory_space<vmem>>, vector<128x128xbf16>
    %cst = arith.constant dense<0.000000e+00> : vector<8x128xf32>
    %2 = tpu.matmul %0, %1, %cst {dimension_numbers = #tpu.dot_dimension_numbers<[1], [0], [0], [1], [0, 0, 1, 1], [], []>} : vector<8x128xbf16>, vector<128x128xbf16>, vector<8x128xf32> -> vector<8x128xf32>
    %c0_3 = arith.constant 0 : index
    %c0_4 = arith.constant 0 : index
    %3 = vector.load %arg4[%c0_3, %c0_4] : memref<1x128xf32, #tpu.memory_space<vmem>>, vector<1x128xf32>
    %4 = vector.broadcast %3 : vector<1x128xf32> to vector<8x128xf32>
    %5 = arith.addf %2, %4 : vector<8x128xf32>
    %6 = arith.truncf %5 : vector<8x128xf32> to vector<8x128xbf16>
    %c0_5 = arith.constant 0 : index
    %c0_6 = arith.constant 0 : index
    %7 = vector.load %arg5[%c0_5, %c0_6] : memref<8x128xbf16, #tpu.memory_space<vmem>>, vector<8x128xbf16>
    tpu.vector_store %arg5[%c0_5, %c0_6], %6 {strides = array<i32>} : memref<8x128xbf16, #tpu.memory_space<vmem>>, vector<8x128xbf16>,
    return
  }
  func.func @transform_0(%arg0: i32, %arg1: i32) -> (i32, i32) {
    %c0_i32 = arith.constant 0 : i32
    %c0_i32_0 = arith.constant 0 : i32
    return %arg0, %c0_i32 : i32, i32
  }
  func.func @transform_1(%arg0: i32, %arg1: i32) -> (i32, i32) {
    %c0_i32 = arith.constant 0 : i32
    %c0_i32_0 = arith.constant 0 : i32
    return %c0_i32, %arg1 : i32, i32
  }
  func.func @transform_2(%arg0: i32, %arg1: i32) -> (i32, i32) {
    %c0_i32 = arith.constant 0 : i32
    %c0_i32_0 = arith.constant 0 : i32
    return %c0_i32, %arg1 : i32, i32
  }
  func.func @transform_3(%arg0: i32, %arg1: i32) -> (i32, i32) {
    %c0_i32 = arith.constant 0 : i32
    return %arg0, %arg1 : i32, i32
  }
}

module attributes {stable_mosaic.version = 11 : i64} {
  func.func @_conv_gemm_kernel(%arg0: i32, %arg1: i32, %arg2: memref<8x1152xbf16, #tpu.memory_space<vmem>>, %arg3: memref<1152x128xbf16, #tpu.memory_space<vmem>>, %arg4: memref<1x128xf32, #tpu.memory_space<vmem>>, %arg5: memref<8x128xbf16, #tpu.memory_space<vmem>>, %arg6: memref<8x128xbf16, #tpu.memory_space<vmem>>) attributes {dimension_semantics = [#tpu.dimension_semantics<parallel>, #tpu.dimension_semantics<parallel>], iteration_bounds = array<i64: 1, 1>, scalar_prefetch = 0 : i64, scratch_operands = 0 : i64, tpu.core_type = #tpu.core_type<tc>, window_params = [{transform_indices = @transform_0, window_bounds = array<i64: 8, 1152>}, {transform_indices = @transform_1, window_bounds = array<i64: 1152, 128>}, {transform_indices = @transform_2, window_bounds = array<i64: 1, 128>}, {transform_indices = @transform_3, window_bounds = array<i64: 8, 128>}, {transform_indices = @transform_4, window_bounds = array<i64: 8, 128>}]} {
    %c0 = arith.constant 0 : index
    %c0_0 = arith.constant 0 : index
    %0 = vector.load %arg2[%c0, %c0_0] : memref<8x1152xbf16, #tpu.memory_space<vmem>>, vector<8x1152xbf16>
    %c0_1 = arith.constant 0 : index
    %c0_2 = arith.constant 0 : index
    %1 = vector.load %arg3[%c0_1, %c0_2] : memref<1152x128xbf16, #tpu.memory_space<vmem>>, vector<1152x128xbf16>
    %cst = arith.constant dense<0.000000e+00> : vector<8x128xf32>
    %2 = tpu.matmul %0, %1, %cst {dimension_numbers = #tpu.dot_dimension_numbers<[1], [0], [0], [1], [0, 0, 1, 1], [], []>} : vector<8x1152xbf16>, vector<1152x128xbf16>, vector<8x128xf32> -> vector<8x128xf32>
    %c0_3 = arith.constant 0 : index
    %c0_4 = arith.constant 0 : index
    %3 = vector.load %arg4[%c0_3, %c0_4] : memref<1x128xf32, #tpu.memory_space<vmem>>, vector<1x128xf32>
    %4 = vector.broadcast %3 : vector<1x128xf32> to vector<8x128xf32>
    %5 = arith.addf %2, %4 : vector<8x128xf32>
    %c0_5 = arith.constant 0 : index
    %c0_6 = arith.constant 0 : index
    %6 = vector.load %arg5[%c0_5, %c0_6] : memref<8x128xbf16, #tpu.memory_space<vmem>>, vector<8x128xbf16>
    %7 = arith.extf %6 : vector<8x128xbf16> to vector<8x128xf32>
    %8 = arith.addf %5, %7 : vector<8x128xf32>
    %cst_7 = arith.constant 0.000000e+00 : f32
    %9 = vector.broadcast %cst_7 : f32 to vector<8x128xf32>
    %10 = arith.maximumf %8, %9 : vector<8x128xf32>
    %11 = arith.truncf %10 : vector<8x128xf32> to vector<8x128xbf16>
    %c0_8 = arith.constant 0 : index
    %c0_9 = arith.constant 0 : index
    %12 = vector.load %arg6[%c0_8, %c0_9] : memref<8x128xbf16, #tpu.memory_space<vmem>>, vector<8x128xbf16>
    tpu.vector_store %arg6[%c0_8, %c0_9], %11 {strides = array<i32>} : memref<8x128xbf16, #tpu.memory_space<vmem>>, vector<8x128xbf16>,
    return
  }
  func.func @transform_0(%arg0: i32, %arg1: i32) -> (i32, i32) {
    %c0_i32 = arith.constant 0 : i32
    %c0_i32_0 = arith.constant 0 : i32
    return %arg0, %c0_i32 : i32, i32
  }
  func.func @transform_1(%arg0: i32, %arg1: i32) -> (i32, i32) {
    %c0_i32 = arith.constant 0 : i32
    %c0_i32_0 = arith.constant 0 : i32
    return %c0_i32, %arg1 : i32, i32
  }
  func.func @transform_2(%arg0: i32, %arg1: i32) -> (i32, i32) {
    %c0_i32 = arith.constant 0 : i32
    %c0_i32_0 = arith.constant 0 : i32
    return %c0_i32, %arg1 : i32, i32
  }
  func.func @transform_3(%arg0: i32, %arg1: i32) -> (i32, i32) {
    %c0_i32 = arith.constant 0 : i32
    return %arg0, %arg1 : i32, i32
  }
  func.func @transform_4(%arg0: i32, %arg1: i32) -> (i32, i32) {
    %c0_i32 = arith.constant 0 : i32
    return %arg0, %arg1 : i32, i32
  }
}

module attributes {stable_mosaic.version = 11 : i64} {
  func.func @_gap_kernel(%arg0: i32, %arg1: memref<2x4x128xbf16, #tpu.memory_space<vmem>>, %arg2: memref<2x128xf32, #tpu.memory_space<vmem>>) attributes {dimension_semantics = [#tpu.dimension_semantics<arbitrary>], iteration_bounds = array<i64: 1>, scalar_prefetch = 0 : i64, scratch_operands = 0 : i64, tpu.core_type = #tpu.core_type<tc>, window_params = [{pipeline_mode = #tpu.pipeline_mode<synchronous>, transform_indices = @transform_0, window_bounds = array<i64: 2, 4, 128>}, {pipeline_mode = #tpu.pipeline_mode<synchronous>, transform_indices = @transform_1, window_bounds = array<i64: 2, 128>}]} {
    %c0 = arith.constant 0 : index
    %c0_0 = arith.constant 0 : index
    %c0_1 = arith.constant 0 : index
    %0 = vector.load %arg1[%c0, %c0_0, %c0_1] : memref<2x4x128xbf16, #tpu.memory_space<vmem>>, vector<2x4x128xbf16>
    %1 = arith.extf %0 : vector<2x4x128xbf16> to vector<2x4x128xf32>
    %cst = arith.constant dense<0.000000e+00> : vector<2x128xf32>
    %2 = vector.multi_reduction <add>, %1, %cst [1] : vector<2x4x128xf32> to vector<2x128xf32>
    %cst_2 = arith.constant 4.000000e+00 : f32
    %3 = vector.broadcast %cst_2 : f32 to vector<2x128xf32>
    %4 = arith.divf %2, %3 : vector<2x128xf32>
    %c0_3 = arith.constant 0 : index
    %c0_4 = arith.constant 0 : index
    %5 = vector.load %arg2[%c0_3, %c0_4] : memref<2x128xf32, #tpu.memory_space<vmem>>, vector<2x128xf32>
    tpu.vector_store %arg2[%c0_3, %c0_4], %4 {strides = array<i32>} : memref<2x128xf32, #tpu.memory_space<vmem>>, vector<2x128xf32>,
    return
  }
  func.func @transform_0(%arg0: i32) -> (i32, i32, i32) {
    %c0_i32 = arith.constant 0 : i32
    %c0_i32_0 = arith.constant 0 : i32
    %c0_i32_1 = arith.constant 0 : i32
    %c0_i32_2 = arith.constant 0 : i32
    return %c0_i32, %c0_i32_0, %c0_i32_1 : i32, i32, i32
  }
  func.func @transform_1(%arg0: i32) -> (i32, i32) {
    %c0_i32 = arith.constant 0 : i32
    %c0_i32_0 = arith.constant 0 : i32
    %c0_i32_1 = arith.constant 0 : i32
    return %c0_i32, %c0_i32_0 : i32, i32
  }
}

</mosaic_0001>

<llo_original>
// kernel: _lambda_.12
$region0: #{_lambda_.12}
  #allocation0 [shape = 'u32[]', space=smem, size = 0x4, offset = 0x4, fixed_abs, tag = 'smem constant byte address 0x4 - core index']
  #allocation1 [shape = 'u32[144,128]{1,0:T(1,128)}', space=vmem, size = 0x12000, scoped, tag = 'internal scratch']
  %s0 = inlined_call_operand.vmem [shape: bf16[128,256], index: 0, kind: input, shape index: {}]
  %s1 = inlined_call_operand.vmem [shape: bf16[256,128], index: 1, kind: input, shape index: {}]
  %s2 = inlined_call_operand.vmem [shape: f32[1,128], index: 2, kind: input, shape index: {}]
  %s3 = inlined_call_operand.vmem [shape: bf16[128,128], index: 3, kind: output, shape index: {}]
  %s4 = sld [smem:[#allocation0]]
  $region22: #{_lambda_.12} parent=0
    _
  %s6 = ssub.s32 1, %s4
  %s7 = scalar_select 0, %s6, %s4
  // Predicated region
  $region2: #{_lambda_.12} parent=0 // pred_check
    _
  $region3: #{_lambda_.12} parent=0 // pred_check_branch
    %9 = sbr.rel (0) target = $region5
  $region4: #{_lambda_.12} parent=0 // pred_region
    _
  $region5: #{_lambda_.12} parent=0 // pred_fallthru
    _
  // Predicated region
  $region6: #{_lambda_.12} parent=0 // pred_check
    _
  $region7: #{_lambda_.12} parent=0 // pred_check_branch
    %11 = sbr.rel (0) target = $region9
  $region8: #{_lambda_.12} parent=0 // pred_region
    _
  $region9: #{_lambda_.12} parent=0 // pred_fallthru
    _
  // Predicated region
  $region10: #{_lambda_.12} parent=0 // pred_check
    _
  $region11: #{_lambda_.12} parent=0 // pred_check_branch
    %13 = sbr.rel (0) target = $region13
  $region12: #{_lambda_.12} parent=0 // pred_region
    _
  $region13: #{_lambda_.12} parent=0 // pred_fallthru
    _
  %v15 = vld [vmem:[%s0] sm:$0xff]
  %v16 = vld [vmem:[%s0 + $0x8] sm:$0xff]
  %v17 = vld [vmem:[%s0 + $0x10] sm:$0xff]
  %v18 = vld [vmem:[%s0 + $0x18] sm:$0xff]
  %v19 = vld [vmem:[%s0 + $0x20] sm:$0xff]
  %v20 = vld [vmem:[%s0 + $0x28] sm:$0xff]
  %v21 = vld [vmem:[%s0 + $0x30] sm:$0xff]
  %v22 = vld [vmem:[%s0 + $0x38] sm:$0xff]
  %v23 = vld [vmem:[%s0 + $0x40] sm:$0xff]
  %v24 = vld [vmem:[%s0 + $0x48] sm:$0xff]
  %v25 = vld [vmem:[%s0 + $0x50] sm:$0xff]
  %v26 = vld [vmem:[%s0 + $0x58] sm:$0xff]
  %v27 = vld [vmem:[%s0 + $0x60] sm:$0xff]
  %v28 = vld [vmem:[%s0 + $0x68] sm:$0xff]
  %v29 = vld [vmem:[%s0 + $0x70] sm:$0xff]
  %v30 = vld [vmem:[%s0 + $0x78] sm:$0xff]
  %v31 = vld [vmem:[%s1] sm:$0xf]
  %v32 = vld [vmem:[%s1 + $0x4] sm:$0xf]
  %v33 = vld [vmem:[%s1 + $0x8] sm:$0xf]
  %v34 = vld [vmem:[%s1 + $0xc] sm:$0xf]
  %v35 = vld [vmem:[%s1 + $0x10] sm:$0xf]
  %v36 = vld [vmem:[%s1 + $0x14] sm:$0xf]
  %v37 = vld [vmem:[%s1 + $0x18] sm:$0xf]
  %v38 = vld [vmem:[%s1 + $0x1c] sm:$0xf]
  %v39 = vld [vmem:[%s1 + $0x20] sm:$0xf]
  %v40 = vld [vmem:[%s1 + $0x24] sm:$0xf]
  %v41 = vld [vmem:[%s1 + $0x28] sm:$0xf]
  %v42 = vld [vmem:[%s1 + $0x2c] sm:$0xf]
  %v43 = vld [vmem:[%s1 + $0x30] sm:$0xf]
  %v44 = vld [vmem:[%s1 + $0x34] sm:$0xf]
  %v45 = vld [vmem:[%s1 + $0x38] sm:$0xf]
  %v46 = vld [vmem:[%s1 + $0x3c] sm:$0xf]
  %v47 = vld [vmem:[%s1 + $0x40] sm:$0xf]
  %v48 = vld [vmem:[%s1 + $0x44] sm:$0xf]
  %v49 = vld [vmem:[%s1 + $0x48] sm:$0xf]
  %v50 = vld [vmem:[%s1 + $0x4c] sm:$0xf]
  %v51 = vld [vmem:[%s1 + $0x50] sm:$0xf]
  %v52 = vld [vmem:[%s1 + $0x54] sm:$0xf]
  %v53 = vld [vmem:[%s1 + $0x58] sm:$0xf]
  %v54 = vld [vmem:[%s1 + $0x5c] sm:$0xf]
  %v55 = vld [vmem:[%s1 + $0x60] sm:$0xf]
  %v56 = vld [vmem:[%s1 + $0x64] sm:$0xf]
  %v57 = vld [vmem:[%s1 + $0x68] sm:$0xf]
  %v58 = vld [vmem:[%s1 + $0x6c] sm:$0xf]
  %v59 = vld [vmem:[%s1 + $0x70] sm:$0xf]
  %v60 = vld [vmem:[%s1 + $0x74] sm:$0xf]
  %v61 = vld [vmem:[%s1 + $0x78] sm:$0xf]
  %v62 = vld [vmem:[%s1 + $0x7c] sm:$0xf]
  %v63 = vld [vmem:[%s2] sm:$0x1]
  %v65 = vlaneseq
  %v66 = vshrl.u32 %v65, 7
  %v67 = vsub.s32 0, %v66
  %v68 = vrot.slane %v63, %v67
  %v86 = vunpack.c.l.b16 %v15
  %v87 = vunpack.c.h.b16 %v15
  %v88 = vunpack.c.l.b16 %v16
  %v89 = vunpack.c.h.b16 %v16
  %v90 = vunpack.c.l.b16 %v17
  %v91 = vunpack.c.h.b16 %v17
  %v92 = vunpack.c.l.b16 %v18
  %v93 = vunpack.c.h.b16 %v18
  %v94 = vunpack.c.l.b16 %v19
  %v95 = vunpack.c.h.b16 %v19
  %v96 = vunpack.c.l.b16 %v20
  %v97 = vunpack.c.h.b16 %v20
  %v98 = vunpack.c.l.b16 %v21
  %v99 = vunpack.c.h.b16 %v21
  %v100 = vunpack.c.l.b16 %v22
  %v101 = vunpack.c.h.b16 %v22
  %v102 = vunpack.c.l.b16 %v23
  %v103 = vunpack.c.h.b16 %v23
  %v104 = vunpack.c.l.b16 %v24
  %v105 = vunpack.c.h.b16 %v24
  %v106 = vunpack.c.l.b16 %v25
  %v107 = vunpack.c.h.b16 %v25
  %v108 = vunpack.c.l.b16 %v26
  %v109 = vunpack.c.h.b16 %v26
  %v110 = vunpack.c.l.b16 %v27
  %v111 = vunpack.c.h.b16 %v27
  %v112 = vunpack.c.l.b16 %v28
  %v113 = vunpack.c.h.b16 %v28
  %v114 = vunpack.c.l.b16 %v29
  %v115 = vunpack.c.h.b16 %v29
  %v116 = vunpack.c.l.b16 %v30
  %v117 = vunpack.c.h.b16 %v30
  %v118 = vpack.c.b16 %v88, %v86
  %v119 = vpack.c.b16 %v89, %v87
  %v120 = vpack.c.b16 %v92, %v90
  %v121 = vpack.c.b16 %v93, %v91
  %v122 = vpack.c.b16 %v96, %v94
  %v123 = vpack.c.b16 %v97, %v95
  %v124 = vpack.c.b16 %v100, %v98
  %v125 = vpack.c.b16 %v101, %v99
  %v126 = vpack.c.b16 %v104, %v102
  %v127 = vpack.c.b16 %v105, %v103
  %v128 = vpack.c.b16 %v108, %v106
  %v129 = vpack.c.b16 %v109, %v107
  %v130 = vpack.c.b16 %v112, %v110
  %v131 = vpack.c.b16 %v113, %v111
  %v132 = vpack.c.b16 %v116, %v114
  %v133 = vpack.c.b16 %v117, %v115
  %v182 = vunpack.c.l.b16 %v31
  %v183 = vunpack.c.l.b16 %v32
  %v184 = vunpack.c.l.b16 %v33
  %v185 = vunpack.c.l.b16 %v34
  %v186 = vunpack.c.l.b16 %v35
  %v187 = vunpack.c.l.b16 %v36
  %v188 = vunpack.c.l.b16 %v37
  %v189 = vunpack.c.l.b16 %v38
  %v190 = vunpack.c.l.b16 %v39
  %v191 = vunpack.c.l.b16 %v40
  %v192 = vunpack.c.l.b16 %v41
  %v193 = vunpack.c.l.b16 %v42
  %v194 = vunpack.c.l.b16 %v43
  %v195 = vunpack.c.l.b16 %v44
  %v196 = vunpack.c.l.b16 %v45
  %v197 = vunpack.c.l.b16 %v46
  %v198 = vunpack.c.l.b16 %v47
  %v199 = vunpack.c.l.b16 %v48
  %v200 = vunpack.c.l.b16 %v49
  %v201 = vunpack.c.l.b16 %v50
  %v202 = vunpack.c.l.b16 %v51
  %v203 = vunpack.c.l.b16 %v52
  %v204 = vunpack.c.l.b16 %v53
  %v205 = vunpack.c.l.b16 %v54
  %v206 = vunpack.c.l.b16 %v55
  %v207 = vunpack.c.l.b16 %v56
  %v208 = vunpack.c.l.b16 %v57
  %v209 = vunpack.c.l.b16 %v58
  %v210 = vunpack.c.l.b16 %v59
  %v211 = vunpack.c.l.b16 %v60
  %v212 = vunpack.c.l.b16 %v61
  %v213 = vunpack.c.l.b16 %v62
  %v214 = vpack.c.b16 %v183, %v182
  %v215 = vpack.c.b16 %v185, %v184
  %v216 = vpack.c.b16 %v187, %v186
  %v217 = vpack.c.b16 %v189, %v188
  %v218 = vpack.c.b16 %v191, %v190
  %v219 = vpack.c.b16 %v193, %v192
  %v220 = vpack.c.b16 %v195, %v194
  %v221 = vpack.c.b16 %v197, %v196
  %v222 = vpack.c.b16 %v199, %v198
  %v223 = vpack.c.b16 %v201, %v200
  %v224 = vpack.c.b16 %v203, %v202
  %v225 = vpack.c.b16 %v205, %v204
  %v226 = vpack.c.b16 %v207, %v206
  %v227 = vpack.c.b16 %v209, %v208
  %v228 = vpack.c.b16 %v211, %v210
  %v229 = vpack.c.b16 %v213, %v212
  %246 = vmatprep.subr.bf16.mxu0 0
  %247 = vmatpush1.bf16.msra.mxu0 %v214
  %248 = vmatprep.subr.bf16.mxu0 0
  %249 = vmatpush1.bf16.msra.mxu0 %v215
  %250 = vmatprep.subr.bf16.mxu0 0
  %251 = vmatpush1.bf16.msra.mxu0 %v216
  %252 = vmatprep.subr.bf16.mxu0 0
  %253 = vmatpush1.bf16.msra.mxu0 %v217
  %254 = vmatprep.subr.bf16.mxu0 0
  %255 = vmatpush1.bf16.msra.mxu0 %v218
  %256 = vmatprep.subr.bf16.mxu0 0
  %257 = vmatpush1.bf16.msra.mxu0 %v219
  %258 = vmatprep.subr.bf16.mxu0 0
  %259 = vmatpush1.bf16.msra.mxu0 %v220
  %260 = vmatprep.subr.bf16.mxu0 0
  %261 = vmatpush1.bf16.msra.mxu0 %v221
  %262 = vmatprep.subr.bf16.mxu0 0
  %263 = vmatpush1.bf16.msra.mxu0 %v222
  %264 = vmatprep.subr.bf16.mxu0 0
  %265 = vmatpush1.bf16.msra.mxu0 %v223
  %266 = vmatprep.subr.bf16.mxu0 0
  %267 = vmatpush1.bf16.msra.mxu0 %v224
  %268 = vmatprep.subr.bf16.mxu0 0
  %269 = vmatpush1.bf16.msra.mxu0 %v225
  %270 = vmatprep.subr.bf16.mxu0 0
  %271 = vmatpush1.bf16.msra.mxu0 %v226
  %272 = vmatprep.subr.bf16.mxu0 0
  %273 = vmatpush1.bf16.msra.mxu0 %v227
  %274 = vmatprep.subr.bf16.mxu0 0
  %275 = vmatpush1.bf16.msra.mxu0 %v228
  %276 = vmatprep.subr.bf16.mxu0 0
  %277 = vmatpush1.bf16.msra.mxu0 %v229
  %278 = vmatprep.mubr.bf16.mxu0 %v119
  %279 = vmatmul.mubr.bf16.gmra.mrb[0].mxu0 %v118
  %v280 = vpop.f32.mrb[0].mxu0
  %v281 = vadd.f32 %v68, %v280
  %v282 = vpop.f32.mrb[0].mxu0
  %v283 = vpop.f32.mrb[0].mxu0
  %v284 = vadd.f32 %v68, %v283
  %v285 = vpop.f32.mrb[0].mxu0
  %286 = vmatprep.mubr.bf16.mxu0 %v121
  %287 = vmatmul.mubr.bf16.gmra.mrb[0].mxu0 %v120
  %v288 = vpop.f32.mrb[0].mxu0
  %v289 = vadd.f32 %v68, %v288
  %v290 = vpop.f32.mrb[0].mxu0
  %v291 = vpop.f32.mrb[0].mxu0
  %v292 = vadd.f32 %v68, %v291
  %v293 = vpop.f32.mrb[0].mxu0
  %294 = vmatprep.mubr.bf16.mxu0 %v123
  %295 = vmatmul.mubr.bf16.gmra.mrb[0].mxu0 %v122
  %v296 = vpop.f32.mrb[0].mxu0
  %v297 = vadd.f32 %v68, %v296
  %v298 = vpop.f32.mrb[0].mxu0
  %v299 = vpop.f32.mrb[0].mxu0
  %v300 = vadd.f32 %v68, %v299
  %v301 = vpop.f32.mrb[0].mxu0
  %302 = vmatprep.mubr.bf16.mxu0 %v125
  %303 = vmatmul.mubr.bf16.gmra.mrb[0].mxu0 %v124
  %v304 = vpop.f32.mrb[0].mxu0
  %v305 = vadd.f32 %v68, %v304
  %v306 = vpop.f32.mrb[0].mxu0
  %v307 = vpop.f32.mrb[0].mxu0
  %v308 = vadd.f32 %v68, %v307
  %v309 = vpop.f32.mrb[0].mxu0
  %310 = vmatprep.mubr.bf16.mxu0 %v127
  %311 = vmatmul.mubr.bf16.gmra.mrb[0].mxu0 %v126
  %v312 = vpop.f32.mrb[0].mxu0
  %v313 = vadd.f32 %v68, %v312
  %v314 = vpop.f32.mrb[0].mxu0
  %v315 = vpop.f32.mrb[0].mxu0
  %v316 = vadd.f32 %v68, %v315
  %v317 = vpop.f32.mrb[0].mxu0
  %318 = vmatprep.mubr.bf16.mxu0 %v129
  %319 = vmatmul.mubr.bf16.gmra.mrb[0].mxu0 %v128
  %v320 = vpop.f32.mrb[0].mxu0
  %v321 = vadd.f32 %v68, %v320
  %v322 = vpop.f32.mrb[0].mxu0
  %v323 = vpop.f32.mrb[0].mxu0
  %v324 = vadd.f32 %v68, %v323
  %v325 = vpop.f32.mrb[0].mxu0
  %326 = vmatprep.mubr.bf16.mxu0 %v131
  %327 = vmatmul.mubr.bf16.gmra.mrb[0].mxu0 %v130
  %v328 = vpop.f32.mrb[0].mxu0
  %v329 = vadd.f32 %v68, %v328
  %v330 = vpop.f32.mrb[0].mxu0
  %v331 = vpop.f32.mrb[0].mxu0
  %v332 = vadd.f32 %v68, %v331
  %v333 = vpop.f32.mrb[0].mxu0
  %334 = vmatprep.mubr.bf16.mxu0 %v133
  %335 = vmatmul.mubr.bf16.gmra.mrb[0].mxu0 %v132
  %v336 = vpop.f32.mrb[0].mxu0
  %v337 = vadd.f32 %v68, %v336
  %v338 = vpop.f32.mrb[0].mxu0
  %v339 = vpop.f32.mrb[0].mxu0
  %v340 = vadd.f32 %v68, %v339
  %v341 = vpop.f32.mrb[0].mxu0
  %342 = vdwg.mxu0
  %v343 = vmax.f32 %v281, 0.0
  %v344 = vmax.f32 %v284, 0.0
  %v345 = vmax.f32 %v289, 0.0
  %v346 = vmax.f32 %v292, 0.0
  %v347 = vmax.f32 %v297, 0.0
  %v348 = vmax.f32 %v300, 0.0
  %v349 = vmax.f32 %v305, 0.0
  %v350 = vmax.f32 %v308, 0.0
  %v351 = vmax.f32 %v313, 0.0
  %v352 = vmax.f32 %v316, 0.0
  %v353 = vmax.f32 %v321, 0.0
  %v354 = vmax.f32 %v324, 0.0
  %v355 = vmax.f32 %v329, 0.0
  %v356 = vmax.f32 %v332, 0.0
  %v357 = vmax.f32 %v337, 0.0
  %v358 = vmax.f32 %v340, 0.0
  %v359 = vpack.c.bf16 %v344, %v343
  %v360 = vpack.c.bf16 %v346, %v345
  %v361 = vpack.c.bf16 %v348, %v347
  %v362 = vpack.c.bf16 %v350, %v349
  %v363 = vpack.c.bf16 %v352, %v351
  %v364 = vpack.c.bf16 %v354, %v353
  %v365 = vpack.c.bf16 %v356, %v355
  %v366 = vpack.c.bf16 %v358, %v357
  %v375 = vunpack.c.l.b16 %v359
  %v376 = vunpack.c.h.b16 %v359
  %v377 = vunpack.c.l.b16 %v360
  %v378 = vunpack.c.h.b16 %v360
  %v379 = vunpack.c.l.b16 %v361
  %v380 = vunpack.c.h.b16 %v361
  %v381 = vunpack.c.l.b16 %v362
  %v382 = vunpack.c.h.b16 %v362
  %v383 = vunpack.c.l.b16 %v363
  %v384 = vunpack.c.h.b16 %v363
  %v385 = vunpack.c.l.b16 %v364
  %v386 = vunpack.c.h.b16 %v364
  %v387 = vunpack.c.l.b16 %v365
  %v388 = vunpack.c.h.b16 %v365
  %v389 = vunpack.c.l.b16 %v366
  %v390 = vunpack.c.h.b16 %v366
  %v391 = vpack.c.b16 %v375, %v375
  %v392 = vpack.c.b16 %v376, %v376
  %v393 = vpack.c.b16 %v377, %v377
  %v394 = vpack.c.b16 %v378, %v378
  %v395 = vpack.c.b16 %v379, %v379
  %v396 = vpack.c.b16 %v380, %v380
  %v397 = vpack.c.b16 %v381, %v381
  %v398 = vpack.c.b16 %v382, %v382
  %v399 = vpack.c.b16 %v383, %v383
  %v400 = vpack.c.b16 %v384, %v384
  %v401 = vpack.c.b16 %v385, %v385
  %v402 = vpack.c.b16 %v386, %v386
  %v403 = vpack.c.b16 %v387, %v387
  %v404 = vpack.c.b16 %v388, %v388
  %v405 = vpack.c.b16 %v389, %v389
  %v406 = vpack.c.b16 %v390, %v390
  %423 = vst [vmem:[%s3] sm:$0xf] %v391
  %424 = vst [vmem:[%s3 + $0x4] sm:$0xf] %v392
  %425 = vst [vmem:[%s3 + $0x8] sm:$0xf] %v393
  %426 = vst [vmem:[%s3 + $0xc] sm:$0xf] %v394
  %427 = vst [vmem:[%s3 + $0x10] sm:$0xf] %v395
  %428 = vst [vmem:[%s3 + $0x14] sm:$0xf] %v396
  %429 = vst [vmem:[%s3 + $0x18] sm:$0xf] %v397
  %430 = vst [vmem:[%s3 + $0x1c] sm:$0xf] %v398
  %431 = vst [vmem:[%s3 + $0x20] sm:$0xf] %v399
  %432 = vst [vmem:[%s3 + $0x24] sm:$0xf] %v400
  %433 = vst [vmem:[%s3 + $0x28] sm:$0xf] %v401
  %434 = vst [vmem:[%s3 + $0x2c] sm:$0xf] %v402
  %435 = vst [vmem:[%s3 + $0x30] sm:$0xf] %v403
  %436 = vst [vmem:[%s3 + $0x34] sm:$0xf] %v404
  %437 = vst [vmem:[%s3 + $0x38] sm:$0xf] %v405
  %438 = vst [vmem:[%s3 + $0x3c] sm:$0xf] %v406
  // Predicated region
  $region14: #{_lambda_.12} parent=0 // pred_check
    _
  $region15: #{_lambda_.12} parent=0 // pred_check_branch
    %440 = sbr.rel (0) target = $region17
  $region16: #{_lambda_.12} parent=0 // pred_region
    _
  $region17: #{_lambda_.12} parent=0 // pred_fallthru
    _
  // Predicated region
  $region18: #{_lambda_.12} parent=0 // pred_check
    _
  $region19: #{_lambda_.12} parent=0 // pred_check_branch
    %442 = sbr.rel (0) target = $region21
  $region20: #{_lambda_.12} parent=0 // pred_region
    _
  $region21: #{_lambda_.12} parent=0 // pred_fallthru
    _

// kernel: _lambda_.13
$region0: #{_lambda_.13}
  #allocation0 [shape = 'u32[]', space=smem, size = 0x4, offset = 0x4, fixed_abs, tag = 'smem constant byte address 0x4 - core index']
  #allocation1 [shape = 'u32[144,128]{1,0:T(1,128)}', space=vmem, size = 0x12000, scoped, tag = 'internal scratch']
  %s0 = inlined_call_operand.vmem [shape: bf16[128,384], index: 0, kind: input, shape index: {}]
  %s1 = inlined_call_operand.vmem [shape: bf16[384,128], index: 1, kind: input, shape index: {}]
  %s2 = inlined_call_operand.vmem [shape: f32[1,128], index: 2, kind: input, shape index: {}]
  %s3 = inlined_call_operand.vmem [shape: bf16[128,128], index: 3, kind: output, shape index: {}]
  %s4 = sld [smem:[#allocation0]]
  $region22: #{_lambda_.13} parent=0
    _
  %s6 = ssub.s32 1, %s4
  %s7 = scalar_select 0, %s6, %s4
  // Predicated region
  $region2: #{_lambda_.13} parent=0 // pred_check
    _
  $region3: #{_lambda_.13} parent=0 // pred_check_branch
    %9 = sbr.rel (0) target = $region5
  $region4: #{_lambda_.13} parent=0 // pred_region
    _
  $region5: #{_lambda_.13} parent=0 // pred_fallthru
    _
  // Predicated region
  $region6: #{_lambda_.13} parent=0 // pred_check
    _
  $region7: #{_lambda_.13} parent=0 // pred_check_branch
    %11 = sbr.rel (0) target = $region9
  $region8: #{_lambda_.13} parent=0 // pred_region
    _
  $region9: #{_lambda_.13} parent=0 // pred_fallthru
    _
  // Predicated region
  $region10: #{_lambda_.13} parent=0 // pred_check
    _
  $region11: #{_lambda_.13} parent=0 // pred_check_branch
    %13 = sbr.rel (0) target = $region13
  $region12: #{_lambda_.13} parent=0 // pred_region
    _
  $region13: #{_lambda_.13} parent=0 // pred_fallthru
    _
  %v15 = vld [vmem:[%s0] sm:$0xff]
  %v16 = vld [vmem:[%s0 + $0x8] sm:$0xf]
  %v17 = vld [vmem:[%s0 + $0xc] sm:$0xff]
  %v18 = vld [vmem:[%s0 + $0x14] sm:$0xf]
  %v19 = vld [vmem:[%s0 + $0x18] sm:$0xff]
  %v20 = vld [vmem:[%s0 + $0x20] sm:$0xf]
  %v21 = vld [vmem:[%s0 + $0x24] sm:$0xff]
  %v22 = vld [vmem:[%s0 + $0x2c] sm:$0xf]
  %v23 = vld [vmem:[%s0 + $0x30] sm:$0xff]
  %v24 = vld [vmem:[%s0 + $0x38] sm:$0xf]
  %v25 = vld [vmem:[%s0 + $0x3c] sm:$0xff]
  %v26 = vld [vmem:[%s0 + $0x44] sm:$0xf]
  %v27 = vld [vmem:[%s0 + $0x48] sm:$0xff]
  %v28 = vld [vmem:[%s0 + $0x50] sm:$0xf]
  %v29 = vld [vmem:[%s0 + $0x54] sm:$0xff]
  %v30 = vld [vmem:[%s0 + $0x5c] sm:$0xf]
  %v31 = vld [vmem:[%s0 + $0x60] sm:$0xff]
  %v32 = vld [vmem:[%s0 + $0x68] sm:$0xf]
  %v33 = vld [vmem:[%s0 + $0x6c] sm:$0xff]
  %v34 = vld [vmem:[%s0 + $0x74] sm:$0xf]
  %v35 = vld [vmem:[%s0 + $0x78] sm:$0xff]
  %v36 = vld [vmem:[%s0 + $0x80] sm:$0xf]
  %v37 = vld [vmem:[%s0 + $0x84] sm:$0xff]
  %v38 = vld [vmem:[%s0 + $0x8c] sm:$0xf]
  %v39 = vld [vmem:[%s0 + $0x90] sm:$0xff]
  %v40 = vld [vmem:[%s0 + $0x98] sm:$0xf]
  %v41 = vld [vmem:[%s0 + $0x9c] sm:$0xff]
  %v42 = vld [vmem:[%s0 + $0xa4] sm:$0xf]
  %v43 = vld [vmem:[%s0 + $0xa8] sm:$0xff]
  %v44 = vld [vmem:[%s0 + $0xb0] sm:$0xf]
  %v45 = vld [vmem:[%s0 + $0xb4] sm:$0xff]
  %v46 = vld [vmem:[%s0 + $0xbc] sm:$0xf]
  %v47 = vld [vmem:[%s1] sm:$0xf]
  %v48 = vld [vmem:[%s1 + $0x4] sm:$0xf]
  %v49 = vld [vmem:[%s1 + $0x8] sm:$0xf]
  %v50 = vld [vmem:[%s1 + $0xc] sm:$0xf]
  %v51 = vld [vmem:[%s1 + $0x10] sm:$0xf]
  %v52 = vld [vmem:[%s1 + $0x14] sm:$0xf]
  %v53 = vld [vmem:[%s1 + $0x18] sm:$0xf]
  %v54 = vld [vmem:[%s1 + $0x1c] sm:$0xf]
  %v55 = vld [vmem:[%s1 + $0x20] sm:$0xf]
  %v56 = vld [vmem:[%s1 + $0x24] sm:$0xf]
  %v57 = vld [vmem:[%s1 + $0x28] sm:$0xf]
  %v58 = vld [vmem:[%s1 + $0x2c] sm:$0xf]
  %v59 = vld [vmem:[%s1 + $0x30] sm:$0xf]
  %v60 = vld [vmem:[%s1 + $0x34] sm:$0xf]
  %v61 = vld [vmem:[%s1 + $0x38] sm:$0xf]
  %v62 = vld [vmem:[%s1 + $0x3c] sm:$0xf]
  %v63 = vld [vmem:[%s1 + $0x40] sm:$0xf]
  %v64 = vld [vmem:[%s1 + $0x44] sm:$0xf]
  %v65 = vld [vmem:[%s1 + $0x48] sm:$0xf]
  %v66 = vld [vmem:[%s1 + $0x4c] sm:$0xf]
  %v67 = vld [vmem:[%s1 + $0x50] sm:$0xf]
  %v68 = vld [vmem:[%s1 + $0x54] sm:$0xf]
  %v69 = vld [vmem:[%s1 + $0x58] sm:$0xf]
  %v70 = vld [vmem:[%s1 + $0x5c] sm:$0xf]
  %v71 = vld [vmem:[%s1 + $0x60] sm:$0xf]
  %v72 = vld [vmem:[%s1 + $0x64] sm:$0xf]
  %v73 = vld [vmem:[%s1 + $0x68] sm:$0xf]
  %v74 = vld [vmem:[%s1 + $0x6c] sm:$0xf]
  %v75 = vld [vmem:[%s1 + $0x70] sm:$0xf]
  %v76 = vld [vmem:[%s1 + $0x74] sm:$0xf]
  %v77 = vld [vmem:[%s1 + $0x78] sm:$0xf]
  %v78 = vld [vmem:[%s1 + $0x7c] sm:$0xf]
  %v79 = vld [vmem:[%s1 + $0x80] sm:$0xf]
  %v80 = vld [vmem:[%s1 + $0x84] sm:$0xf]
  %v81 = vld [vmem:[%s1 + $0x88] sm:$0xf]
  %v82 = vld [vmem:[%s1 + $0x8c] sm:$0xf]
  %v83 = vld [vmem:[%s1 + $0x90] sm:$0xf]
  %v84 = vld [vmem:[%s1 + $0x94] sm:$0xf]
  %v85 = vld [vmem:[%s1 + $0x98] sm:$0xf]
  %v86 = vld [vmem:[%s1 + $0x9c] sm:$0xf]
  %v87 = vld [vmem:[%s1 + $0xa0] sm:$0xf]
  %v88 = vld [vmem:[%s1 + $0xa4] sm:$0xf]
  %v89 = vld [vmem:[%s1 + $0xa8] sm:$0xf]
  %v90 = vld [vmem:[%s1 + $0xac] sm:$0xf]
  %v91 = vld [vmem:[%s1 + $0xb0] sm:$0xf]
  %v92 = vld [vmem:[%s1 + $0xb4] sm:$0xf]
  %v93 = vld [vmem:[%s1 + $0xb8] sm:$0xf]
  %v94 = vld [vmem:[%s1 + $0xbc] sm:$0xf]
  %v95 = vld [vmem:[%s2] sm:$0x1]
  %v97 = vlaneseq
  %v98 = vshrl.u32 %v97, 7
  %v99 = vsub.s32 0, %v98
  %v100 = vrot.slane %v95, %v99
  %v134 = vunpack.c.l.b16 %v15
  %v135 = vunpack.c.h.b16 %v15
  %v136 = vunpack.c.l.b16 %v16
  %v137 = vunpack.c.l.b16 %v17
  %v138 = vunpack.c.h.b16 %v17
  %v139 = vunpack.c.l.b16 %v18
  %v140 = vunpack.c.l.b16 %v19
  %v141 = vunpack.c.h.b16 %v19
  %v142 = vunpack.c.l.b16 %v20
  %v143 = vunpack.c.l.b16 %v21
  %v144 = vunpack.c.h.b16 %v21
  %v145 = vunpack.c.l.b16 %v22
  %v146 = vunpack.c.l.b16 %v23
  %v147 = vunpack.c.h.b16 %v23
  %v148 = vunpack.c.l.b16 %v24
  %v149 = vunpack.c.l.b16 %v25
  %v150 = vunpack.c.h.b16 %v25
  %v151 = vunpack.c.l.b16 %v26
  %v152 = vunpack.c.l.b16 %v27
  %v153 = vunpack.c.h.b16 %v27
  %v154 = vunpack.c.l.b16 %v28
  %v155 = vunpack.c.l.b16 %v29
  %v156 = vunpack.c.h.b16 %v29
  %v157 = vunpack.c.l.b16 %v30
  %v158 = vunpack.c.l.b16 %v31
  %v159 = vunpack.c.h.b16 %v31
  %v160 = vunpack.c.l.b16 %v32
  %v161 = vunpack.c.l.b16 %v33
  %v162 = vunpack.c.h.b16 %v33
  %v163 = vunpack.c.l.b16 %v34
  %v164 = vunpack.c.l.b16 %v35
  %v165 = vunpack.c.h.b16 %v35
  %v166 = vunpack.c.l.b16 %v36
  %v167 = vunpack.c.l.b16 %v37
  %v168 = vunpack.c.h.b16 %v37
  %v169 = vunpack.c.l.b16 %v38
  %v170 = vunpack.c.l.b16 %v39
  %v171 = vunpack.c.h.b16 %v39
  %v172 = vunpack.c.l.b16 %v40
  %v173 = vunpack.c.l.b16 %v41
  %v174 = vunpack.c.h.b16 %v41
  %v175 = vunpack.c.l.b16 %v42
  %v176 = vunpack.c.l.b16 %v43
  %v177 = vunpack.c.h.b16 %v43
  %v178 = vunpack.c.l.b16 %v44
  %v179 = vunpack.c.l.b16 %v45
  %v180 = vunpack.c.h.b16 %v45
  %v181 = vunpack.c.l.b16 %v46
  %v182 = vpack.c.b16 %v137, %v134
  %v183 = vpack.c.b16 %v138, %v135
  %v184 = vpack.c.b16 %v139, %v136
  %v185 = vpack.c.b16 %v143, %v140
  %v186 = vpack.c.b16 %v144, %v141
  %v187 = vpack.c.b16 %v145, %v142
  %v188 = vpack.c.b16 %v149, %v146
  %v189 = vpack.c.b16 %v150, %v147
  %v190 = vpack.c.b16 %v151, %v148
  %v191 = vpack.c.b16 %v155, %v152
  %v192 = vpack.c.b16 %v156, %v153
  %v193 = vpack.c.b16 %v157, %v154
  %v194 = vpack.c.b16 %v161, %v158
  %v195 = vpack.c.b16 %v162, %v159
  %v196 = vpack.c.b16 %v163, %v160
  %v197 = vpack.c.b16 %v167, %v164
  %v198 = vpack.c.b16 %v168, %v165
  %v199 = vpack.c.b16 %v169, %v166
  %v200 = vpack.c.b16 %v173, %v170
  %v201 = vpack.c.b16 %v174, %v171
  %v202 = vpack.c.b16 %v175, %v172
  %v203 = vpack.c.b16 %v179, %v176
  %v204 = vpack.c.b16 %v180, %v177
  %v205 = vpack.c.b16 %v181, %v178
  %v278 = vunpack.c.l.b16 %v47
  %v279 = vunpack.c.l.b16 %v48
  %v280 = vunpack.c.l.b16 %v49
  %v281 = vunpack.c.l.b16 %v50
  %v282 = vunpack.c.l.b16 %v51
  %v283 = vunpack.c.l.b16 %v52
  %v284 = vunpack.c.l.b16 %v53
  %v285 = vunpack.c.l.b16 %v54
  %v286 = vunpack.c.l.b16 %v55
  %v287 = vunpack.c.l.b16 %v56
  %v288 = vunpack.c.l.b16 %v57
  %v289 = vunpack.c.l.b16 %v58
  %v290 = vunpack.c.l.b16 %v59
  %v291 = vunpack.c.l.b16 %v60
  %v292 = vunpack.c.l.b16 %v61
  %v293 = vunpack.c.l.b16 %v62
  %v294 = vunpack.c.l.b16 %v63
  %v295 = vunpack.c.l.b16 %v64
  %v296 = vunpack.c.l.b16 %v65
  %v297 = vunpack.c.l.b16 %v66
  %v298 = vunpack.c.l.b16 %v67
  %v299 = vunpack.c.l.b16 %v68
  %v300 = vunpack.c.l.b16 %v69
  %v301 = vunpack.c.l.b16 %v70
  %v302 = vunpack.c.l.b16 %v71
  %v303 = vunpack.c.l.b16 %v72
  %v304 = vunpack.c.l.b16 %v73
  %v305 = vunpack.c.l.b16 %v74
  %v306 = vunpack.c.l.b16 %v75
  %v307 = vunpack.c.l.b16 %v76
  %v308 = vunpack.c.l.b16 %v77
  %v309 = vunpack.c.l.b16 %v78
  %v310 = vunpack.c.l.b16 %v79
  %v311 = vunpack.c.l.b16 %v80
  %v312 = vunpack.c.l.b16 %v81
  %v313 = vunpack.c.l.b16 %v82
  %v314 = vunpack.c.l.b16 %v83
  %v315 = vunpack.c.l.b16 %v84
  %v316 = vunpack.c.l.b16 %v85
  %v317 = vunpack.c.l.b16 %v86
  %v318 = vunpack.c.l.b16 %v87
  %v319 = vunpack.c.l.b16 %v88
  %v320 = vunpack.c.l.b16 %v89
  %v321 = vunpack.c.l.b16 %v90
  %v322 = vunpack.c.l.b16 %v91
  %v323 = vunpack.c.l.b16 %v92
  %v324 = vunpack.c.l.b16 %v93
  %v325 = vunpack.c.l.b16 %v94
  %v326 = vpack.c.b16 %v279, %v278
  %v327 = vpack.c.b16 %v281, %v280
  %v328 = vpack.c.b16 %v283, %v282
  %v329 = vpack.c.b16 %v285, %v284
  %v330 = vpack.c.b16 %v287, %v286
  %v331 = vpack.c.b16 %v289, %v288
  %v332 = vpack.c.b16 %v291, %v290
  %v333 = vpack.c.b16 %v293, %v292
  %v334 = vpack.c.b16 %v295, %v294
  %v335 = vpack.c.b16 %v297, %v296
  %v336 = vpack.c.b16 %v299, %v298
  %v337 = vpack.c.b16 %v301, %v300
  %v338 = vpack.c.b16 %v303, %v302
  %v339 = vpack.c.b16 %v305, %v304
  %v340 = vpack.c.b16 %v307, %v306
  %v341 = vpack.c.b16 %v309, %v308
  %v342 = vpack.c.b16 %v311, %v310
  %v343 = vpack.c.b16 %v313, %v312
  %v344 = vpack.c.b16 %v315, %v314
  %v345 = vpack.c.b16 %v317, %v316
  %v346 = vpack.c.b16 %v319, %v318
  %v347 = vpack.c.b16 %v321, %v320
  %v348 = vpack.c.b16 %v323, %v322
  %v349 = vpack.c.b16 %v325, %v324
  %374 = vmatprep.subr.bf16.mxu0 0
  %375 = vmatpush1.bf16.msra.mxu0 %v326
  %376 = vmatprep.subr.bf16.mxu0 0
  %377 = vmatpush1.bf16.msra.mxu0 %v327
  %378 = vmatprep.subr.bf16.mxu0 0
  %379 = vmatpush1.bf16.msra.mxu0 %v328
  %380 = vmatprep.subr.bf16.mxu0 0
  %381 = vmatpush1.bf16.msra.mxu0 %v329
  %382 = vmatprep.subr.bf16.mxu0 0
  %383 = vmatpush1.bf16.msra.mxu0 %v330
  %384 = vmatprep.subr.bf16.mxu0 0
  %385 = vmatpush1.bf16.msra.mxu0 %v331
  %386 = vmatprep.subr.bf16.mxu0 0
  %387 = vmatpush1.bf16.msra.mxu0 %v332
  %388 = vmatprep.subr.bf16.mxu0 0
  %389 = vmatpush1.bf16.msra.mxu0 %v333
  %390 = vmatprep.subr.bf16.mxu0 0
  %391 = vmatpush1.bf16.msra.mxu0 %v334
  %392 = vmatprep.subr.bf16.mxu0 0
  %393 = vmatpush1.bf16.msra.mxu0 %v335
  %394 = vmatprep.subr.bf16.mxu0 0
  %395 = vmatpush1.bf16.msra.mxu0 %v336
  %396 = vmatprep.subr.bf16.mxu0 0
  %397 = vmatpush1.bf16.msra.mxu0 %v337
  %398 = vmatprep.subr.bf16.mxu0 0
  %399 = vmatpush1.bf16.msra.mxu0 %v338
  %400 = vmatprep.subr.bf16.mxu0 0
  %401 = vmatpush1.bf16.msra.mxu0 %v339
  %402 = vmatprep.subr.bf16.mxu0 0
  %403 = vmatpush1.bf16.msra.mxu0 %v340
  %404 = vmatprep.subr.bf16.mxu0 0
  %405 = vmatpush1.bf16.msra.mxu0 %v341
  %406 = vmatprep.mubr.bf16.mxu0 %v183
  %407 = vmatmul.mubr.bf16.gmra.mrb[0].mxu0 %v182
  %v408 = vpop.f32.mrb[0].mxu0
  %v409 = vadd.f32 %v100, %v408
  %v410 = vpop.f32.mrb[0].mxu0
  %v411 = vpop.f32.mrb[0].mxu0
  %v412 = vadd.f32 %v100, %v411
  %v413 = vpop.f32.mrb[0].mxu0
  %414 = vmatprep.mubr.bf16.mxu0 %v186
  %415 = vmatmul.mubr.bf16.gmra.mrb[0].mxu0 %v185
  %v416 = vpop.f32.mrb[0].mxu0
  %v417 = vadd.f32 %v100, %v416
  %v418 = vpop.f32.mrb[0].mxu0
  %v419 = vpop.f32.mrb[0].mxu0
  %v420 = vadd.f32 %v100, %v419
  %v421 = vpop.f32.mrb[0].mxu0
  %422 = vmatprep.mubr.bf16.mxu0 %v189
  %423 = vmatmul.mubr.bf16.gmra.mrb[0].mxu0 %v188
  %v424 = vpop.f32.mrb[0].mxu0
  %v425 = vadd.f32 %v100, %v424
  %v426 = vpop.f32.mrb[0].mxu0
  %v427 = vpop.f32.mrb[0].mxu0
  %v428 = vadd.f32 %v100, %v427
  %v429 = vpop.f32.mrb[0].mxu0
  %430 = vmatprep.mubr.bf16.mxu0 %v192
  %431 = vmatmul.mubr.bf16.gmra.mrb[0].mxu0 %v191
  %v432 = vpop.f32.mrb[0].mxu0
  %v433 = vadd.f32 %v100, %v432
  %v434 = vpop.f32.mrb[0].mxu0
  %v435 = vpop.f32.mrb[0].mxu0
  %v436 = vadd.f32 %v100, %v435
  %v437 = vpop.f32.mrb[0].mxu0
  %438 = vmatprep.mubr.bf16.mxu0 %v195
  %439 = vmatmul.mubr.bf16.gmra.mrb[0].mxu0 %v194
  %v440 = vpop.f32.mrb[0].mxu0
  %v441 = vadd.f32 %v100, %v440
  %v442 = vpop.f32.mrb[0].mxu0
  %v443 = vpop.f32.mrb[0].mxu0
  %v444 = vadd.f32 %v100, %v443
  %v445 = vpop.f32.mrb[0].mxu0
  %446 = vmatprep.mubr.bf16.mxu0 %v198
  %447 = vmatmul.mubr.bf16.gmra.mrb[0].mxu0 %v197
  %v448 = vpop.f32.mrb[0].mxu0
  %v449 = vadd.f32 %v100, %v448
  %v450 = vpop.f32.mrb[0].mxu0
  %v451 = vpop.f32.mrb[0].mxu0
  %v452 = vadd.f32 %v100, %v451
  %v453 = vpop.f32.mrb[0].mxu0
  %454 = vmatprep.mubr.bf16.mxu0 %v201
  %455 = vmatmul.mubr.bf16.gmra.mrb[0].mxu0 %v200
  %v456 = vpop.f32.mrb[0].mxu0
  %v457 = vadd.f32 %v100, %v456
  %v458 = vpop.f32.mrb[0].mxu0
  %v459 = vpop.f32.mrb[0].mxu0
  %v460 = vadd.f32 %v100, %v459
  %v461 = vpop.f32.mrb[0].mxu0
  %462 = vmatprep.mubr.bf16.mxu0 %v204
  %463 = vmatmul.mubr.bf16.gmra.mrb[0].mxu0 %v203
  %v464 = vpop.f32.mrb[0].mxu0
  %v465 = vadd.f32 %v100, %v464
  %v466 = vpop.f32.mrb[0].mxu0
  %v467 = vpop.f32.mrb[0].mxu0
  %v468 = vadd.f32 %v100, %v467
  %v469 = vpop.f32.mrb[0].mxu0
  %470 = vdwg.mxu0
  %471 = vmatprep.subr.bf16.mxu0 0
  %472 = vmatpush1.bf16.msra.mxu0 %v342
  %473 = vmatprep.subr.bf16.mxu0 0
  %474 = vmatpush1.bf16.msra.mxu0 %v343
  %475 = vmatprep.subr.bf16.mxu0 0
  %476 = vmatpush1.bf16.msra.mxu0 %v344
  %477 = vmatprep.subr.bf16.mxu0 0
  %478 = vmatpush1.bf16.msra.mxu0 %v345
  %479 = vmatprep.subr.bf16.mxu0 0
  %480 = vmatpush1.bf16.msra.mxu0 %v346
  %481 = vmatprep.subr.bf16.mxu0 0
  %482 = vmatpush1.bf16.msra.mxu0 %v347
  %483 = vmatprep.subr.bf16.mxu0 0
  %484 = vmatpush1.bf16.msra.mxu0 %v348
  %485 = vmatprep.subr.bf16.mxu0 0
  %486 = vmatpush1.bf16.msra.mxu0 %v349
  %487 = vmatprep.subr.bf16.mxu0 0
  %488 = vmatpush1.bf16.msra.mxu0 0
  %489 = vmatprep.subr.bf16.mxu0 0
  %490 = vmatpush1.bf16.msra.mxu0 0
  %491 = vmatprep.subr.bf16.mxu0 0
  %492 = vmatpush1.bf16.msra.mxu0 0
  %493 = vmatprep.subr.bf16.mxu0 0
  %494 = vmatpush1.bf16.msra.mxu0 0
  %495 = vmatprep.subr.bf16.mxu0 0
  %496 = vmatpush1.bf16.msra.mxu0 0
  %497 = vmatprep.subr.bf16.mxu0 0
  %498 = vmatpush1.bf16.msra.mxu0 0
  %499 = vmatprep.subr.bf16.mxu0 0
  %500 = vmatpush1.bf16.msra.mxu0 0
  %501 = vmatprep.subr.bf16.mxu0 0
  %502 = vmatpush1.bf16.msra.mxu0 0
  %503 = vmatprep.mubr.bf16.mxu0 0
  %504 = vmatmul.mubr.bf16.gmra.mrb[0].mxu0 %v184
  %v505 = vpop.f32.mrb[0].mxu0
  %v506 = vadd.f32 %v409, %v505
  %v507 = vpop.f32.mrb[0].mxu0
  %v508 = vpop.f32.mrb[0].mxu0
  %v509 = vadd.f32 %v412, %v508
  %v510 = vpop.f32.mrb[0].mxu0
  %511 = vmatprep.mubr.bf16.mxu0 0
  %512 = vmatmul.mubr.bf16.gmra.mrb[0].mxu0 %v187
  %v513 = vpop.f32.mrb[0].mxu0
  %v514 = vadd.f32 %v417, %v513
  %v515 = vpop.f32.mrb[0].mxu0
  %v516 = vpop.f32.mrb[0].mxu0
  %v517 = vadd.f32 %v420, %v516
  %v518 = vpop.f32.mrb[0].mxu0
  %519 = vmatprep.mubr.bf16.mxu0 0
  %520 = vmatmul.mubr.bf16.gmra.mrb[0].mxu0 %v190
  %v521 = vpop.f32.mrb[0].mxu0
  %v522 = vadd.f32 %v425, %v521
  %v523 = vpop.f32.mrb[0].mxu0
  %v524 = vpop.f32.mrb[0].mxu0
  %v525 = vadd.f32 %v428, %v524
  %v526 = vpop.f32.mrb[0].mxu0
  %527 = vmatprep.mubr.bf16.mxu0 0
  %528 = vmatmul.mubr.bf16.gmra.mrb[0].mxu0 %v193
  %v529 = vpop.f32.mrb[0].mxu0
  %v530 = vadd.f32 %v433, %v529
  %v531 = vpop.f32.mrb[0].mxu0
  %v532 = vpop.f32.mrb[0].mxu0
  %v533 = vadd.f32 %v436, %v532
  %v534 = vpop.f32.mrb[0].mxu0
  %535 = vmatprep.mubr.bf16.mxu0 0
  %536 = vmatmul.mubr.bf16.gmra.mrb[0].mxu0 %v196
  %v537 = vpop.f32.mrb[0].mxu0
  %v538 = vadd.f32 %v441, %v537
  %v539 = vpop.f32.mrb[0].mxu0
  %v540 = vpop.f32.mrb[0].mxu0
  %v541 = vadd.f32 %v444, %v540
  %v542 = vpop.f32.mrb[0].mxu0
  %543 = vmatprep.mubr.bf16.mxu0 0
  %544 = vmatmul.mubr.bf16.gmra.mrb[0].mxu0 %v199
  %v545 = vpop.f32.mrb[0].mxu0
  %v546 = vadd.f32 %v449, %v545
  %v547 = vpop.f32.mrb[0].mxu0
  %v548 = vpop.f32.mrb[0].mxu0
  %v549 = vadd.f32 %v452, %v548
  %v550 = vpop.f32.mrb[0].mxu0
  %551 = vmatprep.mubr.bf16.mxu0 0
  %552 = vmatmul.mubr.bf16.gmra.mrb[0].mxu0 %v202
  %v553 = vpop.f32.mrb[0].mxu0
  %v554 = vadd.f32 %v457, %v553
  %v555 = vpop.f32.mrb[0].mxu0
  %v556 = vpop.f32.mrb[0].mxu0
  %v557 = vadd.f32 %v460, %v556
  %v558 = vpop.f32.mrb[0].mxu0
  %559 = vmatprep.mubr.bf16.mxu0 0
  %560 = vmatmul.mubr.bf16.gmra.mrb[0].mxu0 %v205
  %v561 = vpop.f32.mrb[0].mxu0
  %v562 = vadd.f32 %v465, %v561
  %v563 = vpop.f32.mrb[0].mxu0
  %v564 = vpop.f32.mrb[0].mxu0
  %v565 = vadd.f32 %v468, %v564
  %v566 = vpop.f32.mrb[0].mxu0
  %567 = vdwg.mxu0
  %v568 = vmax.f32 %v506, 0.0
  %v569 = vmax.f32 %v509, 0.0
  %v570 = vmax.f32 %v514, 0.0
  %v571 = vmax.f32 %v517, 0.0
  %v572 = vmax.f32 %v522, 0.0
  %v573 = vmax.f32 %v525, 0.0
  %v574 = vmax.f32 %v530, 0.0
  %v575 = vmax.f32 %v533, 0.0
  %v576 = vmax.f32 %v538, 0.0
  %v577 = vmax.f32 %v541, 0.0
  %v578 = vmax.f32 %v546, 0.0
  %v579 = vmax.f32 %v549, 0.0
  %v580 = vmax.f32 %v554, 0.0
  %v581 = vmax.f32 %v557, 0.0
  %v582 = vmax.f32 %v562, 0.0
  %v583 = vmax.f32 %v565, 0.0
  %v584 = vpack.c.bf16 %v569, %v568
  %v585 = vpack.c.bf16 %v571, %v570
  %v586 = vpack.c.bf16 %v573, %v572
  %v587 = vpack.c.bf16 %v575, %v574
  %v588 = vpack.c.bf16 %v577, %v576
  %v589 = vpack.c.bf16 %v579, %v578
  %v590 = vpack.c.bf16 %v581, %v580
  %v591 = vpack.c.bf16 %v583, %v582
  %v600 = vunpack.c.l.b16 %v584
  %v601 = vunpack.c.h.b16 %v584
  %v602 = vunpack.c.l.b16 %v585
  %v603 = vunpack.c.h.b16 %v585
  %v604 = vunpack.c.l.b16 %v586
  %v605 = vunpack.c.h.b16 %v586
  %v606 = vunpack.c.l.b16 %v587
  %v607 = vunpack.c.h.b16 %v587
  %v608 = vunpack.c.l.b16 %v588
  %v609 = vunpack.c.h.b16 %v588
  %v610 = vunpack.c.l.b16 %v589
  %v611 = vunpack.c.h.b16 %v589
  %v612 = vunpack.c.l.b16 %v590
  %v613 = vunpack.c.h.b16 %v590
  %v614 = vunpack.c.l.b16 %v591
  %v615 = vunpack.c.h.b16 %v591
  %v616 = vpack.c.b16 %v600, %v600
  %v617 = vpack.c.b16 %v601, %v601
  %v618 = vpack.c.b16 %v602, %v602
  %v619 = vpack.c.b16 %v603, %v603
  %v620 = vpack.c.b16 %v604, %v604
  %v621 = vpack.c.b16 %v605, %v605
  %v622 = vpack.c.b16 %v606, %v606
  %v623 = vpack.c.b16 %v607, %v607
  %v624 = vpack.c.b16 %v608, %v608
  %v625 = vpack.c.b16 %v609, %v609
  %v626 = vpack.c.b16 %v610, %v610
  %v627 = vpack.c.b16 %v611, %v611
  %v628 = vpack.c.b16 %v612, %v612
  %v629 = vpack.c.b16 %v613, %v613
  %v630 = vpack.c.b16 %v614, %v614
  %v631 = vpack.c.b16 %v615, %v615
  %648 = vst [vmem:[%s3] sm:$0xf] %v616
  %649 = vst [vmem:[%s3 + $0x4] sm:$0xf] %v617
  %650 = vst [vmem:[%s3 + $0x8] sm:$0xf] %v618
  %651 = vst [vmem:[%s3 + $0xc] sm:$0xf] %v619
  %652 = vst [vmem:[%s3 + $0x10] sm:$0xf] %v620
  %653 = vst [vmem:[%s3 + $0x14] sm:$0xf] %v621
  %654 = vst [vmem:[%s3 + $0x18] sm:$0xf] %v622
  %655 = vst [vmem:[%s3 + $0x1c] sm:$0xf] %v623
  %656 = vst [vmem:[%s3 + $0x20] sm:$0xf] %v624
  %657 = vst [vmem:[%s3 + $0x24] sm:$0xf] %v625
  %658 = vst [vmem:[%s3 + $0x28] sm:$0xf] %v626
  %659 = vst [vmem:[%s3 + $0x2c] sm:$0xf] %v627
  %660 = vst [vmem:[%s3 + $0x30] sm:$0xf] %v628
  %661 = vst [vmem:[%s3 + $0x34] sm:$0xf] %v629
  %662 = vst [vmem:[%s3 + $0x38] sm:$0xf] %v630
  %663 = vst [vmem:[%s3 + $0x3c] sm:$0xf] %v631
  // Predicated region
  $region14: #{_lambda_.13} parent=0 // pred_check
    _
  $region15: #{_lambda_.13} parent=0 // pred_check_branch
    %665 = sbr.rel (0) target = $region17
  $region16: #{_lambda_.13} parent=0 // pred_region
    _
  $region17: #{_lambda_.13} parent=0 // pred_fallthru
    _
  // Predicated region
  $region18: #{_lambda_.13} parent=0 // pred_check
    _
  $region19: #{_lambda_.13} parent=0 // pred_check_branch
    %667 = sbr.rel (0) target = $region21
  $region20: #{_lambda_.13} parent=0 // pred_region
    _
  $region21: #{_lambda_.13} parent=0 // pred_fallthru
    _

// kernel: _lambda_.14
$region0: #{_lambda_.14}
  #allocation0 [shape = 'u32[]', space=smem, size = 0x4, offset = 0x4, fixed_abs, tag = 'smem constant byte address 0x4 - core index']
  #allocation1 [shape = 'u32[144,128]{1,0:T(1,128)}', space=vmem, size = 0x12000, scoped, tag = 'internal scratch']
  %s0 = inlined_call_operand.vmem [shape: bf16[128,384], index: 0, kind: input, shape index: {}]
  %s1 = inlined_call_operand.vmem [shape: bf16[384,128], index: 1, kind: input, shape index: {}]
  %s2 = inlined_call_operand.vmem [shape: f32[1,128], index: 2, kind: input, shape index: {}]
  %s3 = inlined_call_operand.vmem [shape: bf16[128,128], index: 3, kind: input, shape index: {}]
  %s4 = inlined_call_operand.vmem [shape: bf16[128,128], index: 4, kind: output, shape index: {}]
  %s5 = sld [smem:[#allocation0]]
  $region26: #{_lambda_.14} parent=0
    _
  %s7 = ssub.s32 1, %s5
  %s8 = scalar_select 0, %s7, %s5
  // Predicated region
  $region2: #{_lambda_.14} parent=0 // pred_check
    _
  $region3: #{_lambda_.14} parent=0 // pred_check_branch
    %10 = sbr.rel (0) target = $region5
  $region4: #{_lambda_.14} parent=0 // pred_region
    _
  $region5: #{_lambda_.14} parent=0 // pred_fallthru
    _
  // Predicated region
  $region6: #{_lambda_.14} parent=0 // pred_check
    _
  $region7: #{_lambda_.14} parent=0 // pred_check_branch
    %12 = sbr.rel (0) target = $region9
  $region8: #{_lambda_.14} parent=0 // pred_region
    _
  $region9: #{_lambda_.14} parent=0 // pred_fallthru
    _
  // Predicated region
  $region10: #{_lambda_.14} parent=0 // pred_check
    _
  $region11: #{_lambda_.14} parent=0 // pred_check_branch
    %14 = sbr.rel (0) target = $region13
  $region12: #{_lambda_.14} parent=0 // pred_region
    _
  $region13: #{_lambda_.14} parent=0 // pred_fallthru
    _
  // Predicated region
  $region14: #{_lambda_.14} parent=0 // pred_check
    _
  $region15: #{_lambda_.14} parent=0 // pred_check_branch
    %16 = sbr.rel (0) target = $region17
  $region16: #{_lambda_.14} parent=0 // pred_region
    _
  $region17: #{_lambda_.14} parent=0 // pred_fallthru
    _
  %v18 = vld [vmem:[%s0] sm:$0xff]
  %v19 = vld [vmem:[%s0 + $0x8] sm:$0xf]
  %v20 = vld [vmem:[%s0 + $0xc] sm:$0xff]
  %v21 = vld [vmem:[%s0 + $0x14] sm:$0xf]
  %v22 = vld [vmem:[%s0 + $0x18] sm:$0xff]
  %v23 = vld [vmem:[%s0 + $0x20] sm:$0xf]
  %v24 = vld [vmem:[%s0 + $0x24] sm:$0xff]
  %v25 = vld [vmem:[%s0 + $0x2c] sm:$0xf]
  %v26 = vld [vmem:[%s0 + $0x30] sm:$0xff]
  %v27 = vld [vmem:[%s0 + $0x38] sm:$0xf]
  %v28 = vld [vmem:[%s0 + $0x3c] sm:$0xff]
  %v29 = vld [vmem:[%s0 + $0x44] sm:$0xf]
  %v30 = vld [vmem:[%s0 + $0x48] sm:$0xff]
  %v31 = vld [vmem:[%s0 + $0x50] sm:$0xf]
  %v32 = vld [vmem:[%s0 + $0x54] sm:$0xff]
  %v33 = vld [vmem:[%s0 + $0x5c] sm:$0xf]
  %v34 = vld [vmem:[%s0 + $0x60] sm:$0xff]
  %v35 = vld [vmem:[%s0 + $0x68] sm:$0xf]
  %v36 = vld [vmem:[%s0 + $0x6c] sm:$0xff]
  %v37 = vld [vmem:[%s0 + $0x74] sm:$0xf]
  %v38 = vld [vmem:[%s0 + $0x78] sm:$0xff]
  %v39 = vld [vmem:[%s0 + $0x80] sm:$0xf]
  %v40 = vld [vmem:[%s0 + $0x84] sm:$0xff]
  %v41 = vld [vmem:[%s0 + $0x8c] sm:$0xf]
  %v42 = vld [vmem:[%s0 + $0x90] sm:$0xff]
  %v43 = vld [vmem:[%s0 + $0x98] sm:$0xf]
  %v44 = vld [vmem:[%s0 + $0x9c] sm:$0xff]
  %v45 = vld [vmem:[%s0 + $0xa4] sm:$0xf]
  %v46 = vld [vmem:[%s0 + $0xa8] sm:$0xff]
  %v47 = vld [vmem:[%s0 + $0xb0] sm:$0xf]
  %v48 = vld [vmem:[%s0 + $0xb4] sm:$0xff]
  %v49 = vld [vmem:[%s0 + $0xbc] sm:$0xf]
  %v50 = vld [vmem:[%s1] sm:$0xf]
  %v51 = vld [vmem:[%s1 + $0x4] sm:$0xf]
  %v52 = vld [vmem:[%s1 + $0x8] sm:$0xf]
  %v53 = vld [vmem:[%s1 + $0xc] sm:$0xf]
  %v54 = vld [vmem:[%s1 + $0x10] sm:$0xf]
  %v55 = vld [vmem:[%s1 + $0x14] sm:$0xf]
  %v56 = vld [vmem:[%s1 + $0x18] sm:$0xf]
  %v57 = vld [vmem:[%s1 + $0x1c] sm:$0xf]
  %v58 = vld [vmem:[%s1 + $0x20] sm:$0xf]
  %v59 = vld [vmem:[%s1 + $0x24] sm:$0xf]
  %v60 = vld [vmem:[%s1 + $0x28] sm:$0xf]
  %v61 = vld [vmem:[%s1 + $0x2c] sm:$0xf]
  %v62 = vld [vmem:[%s1 + $0x30] sm:$0xf]
  %v63 = vld [vmem:[%s1 + $0x34] sm:$0xf]
  %v64 = vld [vmem:[%s1 + $0x38] sm:$0xf]
  %v65 = vld [vmem:[%s1 + $0x3c] sm:$0xf]
  %v66 = vld [vmem:[%s1 + $0x40] sm:$0xf]
  %v67 = vld [vmem:[%s1 + $0x44] sm:$0xf]
  %v68 = vld [vmem:[%s1 + $0x48] sm:$0xf]
  %v69 = vld [vmem:[%s1 + $0x4c] sm:$0xf]
  %v70 = vld [vmem:[%s1 + $0x50] sm:$0xf]
  %v71 = vld [vmem:[%s1 + $0x54] sm:$0xf]
  %v72 = vld [vmem:[%s1 + $0x58] sm:$0xf]
  %v73 = vld [vmem:[%s1 + $0x5c] sm:$0xf]
  %v74 = vld [vmem:[%s1 + $0x60] sm:$0xf]
  %v75 = vld [vmem:[%s1 + $0x64] sm:$0xf]
  %v76 = vld [vmem:[%s1 + $0x68] sm:$0xf]
  %v77 = vld [vmem:[%s1 + $0x6c] sm:$0xf]
  %v78 = vld [vmem:[%s1 + $0x70] sm:$0xf]
  %v79 = vld [vmem:[%s1 + $0x74] sm:$0xf]
  %v80 = vld [vmem:[%s1 + $0x78] sm:$0xf]
  %v81 = vld [vmem:[%s1 + $0x7c] sm:$0xf]
  %v82 = vld [vmem:[%s1 + $0x80] sm:$0xf]
  %v83 = vld [vmem:[%s1 + $0x84] sm:$0xf]
  %v84 = vld [vmem:[%s1 + $0x88] sm:$0xf]
  %v85 = vld [vmem:[%s1 + $0x8c] sm:$0xf]
  %v86 = vld [vmem:[%s1 + $0x90] sm:$0xf]
  %v87 = vld [vmem:[%s1 + $0x94] sm:$0xf]
  %v88 = vld [vmem:[%s1 + $0x98] sm:$0xf]
  %v89 = vld [vmem:[%s1 + $0x9c] sm:$0xf]
  %v90 = vld [vmem:[%s1 + $0xa0] sm:$0xf]
  %v91 = vld [vmem:[%s1 + $0xa4] sm:$0xf]
  %v92 = vld [vmem:[%s1 + $0xa8] sm:$0xf]
  %v93 = vld [vmem:[%s1 + $0xac] sm:$0xf]
  %v94 = vld [vmem:[%s1 + $0xb0] sm:$0xf]
  %v95 = vld [vmem:[%s1 + $0xb4] sm:$0xf]
  %v96 = vld [vmem:[%s1 + $0xb8] sm:$0xf]
  %v97 = vld [vmem:[%s1 + $0xbc] sm:$0xf]
  %v98 = vld [vmem:[%s2] sm:$0x1]
  %v100 = vlaneseq
  %v101 = vshrl.u32 %v100, 7
  %v102 = vsub.s32 0, %v101
  %v103 = vrot.slane %v98, %v102
  %v137 = vunpack.c.l.b16 %v18
  %v138 = vunpack.c.h.b16 %v18
  %v139 = vunpack.c.l.b16 %v19
  %v140 = vunpack.c.l.b16 %v20
  %v141 = vunpack.c.h.b16 %v20
  %v142 = vunpack.c.l.b16 %v21
  %v143 = vunpack.c.l.b16 %v22
  %v144 = vunpack.c.h.b16 %v22
  %v145 = vunpack.c.l.b16 %v23
  %v146 = vunpack.c.l.b16 %v24
  %v147 = vunpack.c.h.b16 %v24
  %v148 = vunpack.c.l.b16 %v25
  %v149 = vunpack.c.l.b16 %v26
  %v150 = vunpack.c.h.b16 %v26
  %v151 = vunpack.c.l.b16 %v27
  %v152 = vunpack.c.l.b16 %v28
  %v153 = vunpack.c.h.b16 %v28
  %v154 = vunpack.c.l.b16 %v29
  %v155 = vunpack.c.l.b16 %v30
  %v156 = vunpack.c.h.b16 %v30
  %v157 = vunpack.c.l.b16 %v31
  %v158 = vunpack.c.l.b16 %v32
  %v159 = vunpack.c.h.b16 %v32
  %v160 = vunpack.c.l.b16 %v33
  %v161 = vunpack.c.l.b16 %v34
  %v162 = vunpack.c.h.b16 %v34
  %v163 = vunpack.c.l.b16 %v35
  %v164 = vunpack.c.l.b16 %v36
  %v165 = vunpack.c.h.b16 %v36
  %v166 = vunpack.c.l.b16 %v37
  %v167 = vunpack.c.l.b16 %v38
  %v168 = vunpack.c.h.b16 %v38
  %v169 = vunpack.c.l.b16 %v39
  %v170 = vunpack.c.l.b16 %v40
  %v171 = vunpack.c.h.b16 %v40
  %v172 = vunpack.c.l.b16 %v41
  %v173 = vunpack.c.l.b16 %v42
  %v174 = vunpack.c.h.b16 %v42
  %v175 = vunpack.c.l.b16 %v43
  %v176 = vunpack.c.l.b16 %v44
  %v177 = vunpack.c.h.b16 %v44
  %v178 = vunpack.c.l.b16 %v45
  %v179 = vunpack.c.l.b16 %v46
  %v180 = vunpack.c.h.b16 %v46
  %v181 = vunpack.c.l.b16 %v47
  %v182 = vunpack.c.l.b16 %v48
  %v183 = vunpack.c.h.b16 %v48
  %v184 = vunpack.c.l.b16 %v49
  %v185 = vpack.c.b16 %v140, %v137
  %v186 = vpack.c.b16 %v141, %v138
  %v187 = vpack.c.b16 %v142, %v139
  %v188 = vpack.c.b16 %v146, %v143
  %v189 = vpack.c.b16 %v147, %v144
  %v190 = vpack.c.b16 %v148, %v145
  %v191 = vpack.c.b16 %v152, %v149
  %v192 = vpack.c.b16 %v153, %v150
  %v193 = vpack.c.b16 %v154, %v151
  %v194 = vpack.c.b16 %v158, %v155
  %v195 = vpack.c.b16 %v159, %v156
  %v196 = vpack.c.b16 %v160, %v157
  %v197 = vpack.c.b16 %v164, %v161
  %v198 = vpack.c.b16 %v165, %v162
  %v199 = vpack.c.b16 %v166, %v163
  %v200 = vpack.c.b16 %v170, %v167
  %v201 = vpack.c.b16 %v171, %v168
  %v202 = vpack.c.b16 %v172, %v169
  %v203 = vpack.c.b16 %v176, %v173
  %v204 = vpack.c.b16 %v177, %v174
  %v205 = vpack.c.b16 %v178, %v175
  %v206 = vpack.c.b16 %v182, %v179
  %v207 = vpack.c.b16 %v183, %v180
  %v208 = vpack.c.b16 %v184, %v181
  %v281 = vunpack.c.l.b16 %v50
  %v282 = vunpack.c.l.b16 %v51
  %v283 = vunpack.c.l.b16 %v52
  %v284 = vunpack.c.l.b16 %v53
  %v285 = vunpack.c.l.b16 %v54
  %v286 = vunpack.c.l.b16 %v55
  %v287 = vunpack.c.l.b16 %v56
  %v288 = vunpack.c.l.b16 %v57
  %v289 = vunpack.c.l.b16 %v58
  %v290 = vunpack.c.l.b16 %v59
  %v291 = vunpack.c.l.b16 %v60
  %v292 = vunpack.c.l.b16 %v61
  %v293 = vunpack.c.l.b16 %v62
  %v294 = vunpack.c.l.b16 %v63
  %v295 = vunpack.c.l.b16 %v64
  %v296 = vunpack.c.l.b16 %v65
  %v297 = vunpack.c.l.b16 %v66
  %v298 = vunpack.c.l.b16 %v67
  %v299 = vunpack.c.l.b16 %v68
  %v300 = vunpack.c.l.b16 %v69
  %v301 = vunpack.c.l.b16 %v70
  %v302 = vunpack.c.l.b16 %v71
  %v303 = vunpack.c.l.b16 %v72
  %v304 = vunpack.c.l.b16 %v73
  %v305 = vunpack.c.l.b16 %v74
  %v306 = vunpack.c.l.b16 %v75
  %v307 = vunpack.c.l.b16 %v76
  %v308 = vunpack.c.l.b16 %v77
  %v309 = vunpack.c.l.b16 %v78
  %v310 = vunpack.c.l.b16 %v79
  %v311 = vunpack.c.l.b16 %v80
  %v312 = vunpack.c.l.b16 %v81
  %v313 = vunpack.c.l.b16 %v82
  %v314 = vunpack.c.l.b16 %v83
  %v315 = vunpack.c.l.b16 %v84
  %v316 = vunpack.c.l.b16 %v85
  %v317 = vunpack.c.l.b16 %v86
  %v318 = vunpack.c.l.b16 %v87
  %v319 = vunpack.c.l.b16 %v88
  %v320 = vunpack.c.l.b16 %v89
  %v321 = vunpack.c.l.b16 %v90
  %v322 = vunpack.c.l.b16 %v91
  %v323 = vunpack.c.l.b16 %v92
  %v324 = vunpack.c.l.b16 %v93
  %v325 = vunpack.c.l.b16 %v94
  %v326 = vunpack.c.l.b16 %v95
  %v327 = vunpack.c.l.b16 %v96
  %v328 = vunpack.c.l.b16 %v97
  %v329 = vpack.c.b16 %v282, %v281
  %v330 = vpack.c.b16 %v284, %v283
  %v331 = vpack.c.b16 %v286, %v285
  %v332 = vpack.c.b16 %v288, %v287
  %v333 = vpack.c.b16 %v290, %v289
  %v334 = vpack.c.b16 %v292, %v291
  %v335 = vpack.c.b16 %v294, %v293
  %v336 = vpack.c.b16 %v296, %v295
  %v337 = vpack.c.b16 %v298, %v297
  %v338 = vpack.c.b16 %v300, %v299
  %v339 = vpack.c.b16 %v302, %v301
  %v340 = vpack.c.b16 %v304, %v303
  %v341 = vpack.c.b16 %v306, %v305
  %v342 = vpack.c.b16 %v308, %v307
  %v343 = vpack.c.b16 %v310, %v309
  %v344 = vpack.c.b16 %v312, %v311
  %v345 = vpack.c.b16 %v314, %v313
  %v346 = vpack.c.b16 %v316, %v315
  %v347 = vpack.c.b16 %v318, %v317
  %v348 = vpack.c.b16 %v320, %v319
  %v349 = vpack.c.b16 %v322, %v321
  %v350 = vpack.c.b16 %v324, %v323
  %v351 = vpack.c.b16 %v326, %v325
  %v352 = vpack.c.b16 %v328, %v327
  %377 = vmatprep.subr.bf16.mxu0 0
  %378 = vmatpush1.bf16.msra.mxu0 %v329
  %379 = vmatprep.subr.bf16.mxu0 0
  %380 = vmatpush1.bf16.msra.mxu0 %v330
  %381 = vmatprep.subr.bf16.mxu0 0
  %382 = vmatpush1.bf16.msra.mxu0 %v331
  %383 = vmatprep.subr.bf16.mxu0 0
  %384 = vmatpush1.bf16.msra.mxu0 %v332
  %385 = vmatprep.subr.bf16.mxu0 0
  %386 = vmatpush1.bf16.msra.mxu0 %v333
  %387 = vmatprep.subr.bf16.mxu0 0
  %388 = vmatpush1.bf16.msra.mxu0 %v334
  %389 = vmatprep.subr.bf16.mxu0 0
  %390 = vmatpush1.bf16.msra.mxu0 %v335
  %391 = vmatprep.subr.bf16.mxu0 0
  %392 = vmatpush1.bf16.msra.mxu0 %v336
  %393 = vmatprep.subr.bf16.mxu0 0
  %394 = vmatpush1.bf16.msra.mxu0 %v337
  %395 = vmatprep.subr.bf16.mxu0 0
  %396 = vmatpush1.bf16.msra.mxu0 %v338
  %397 = vmatprep.subr.bf16.mxu0 0
  %398 = vmatpush1.bf16.msra.mxu0 %v339
  %399 = vmatprep.subr.bf16.mxu0 0
  %400 = vmatpush1.bf16.msra.mxu0 %v340
  %401 = vmatprep.subr.bf16.mxu0 0
  %402 = vmatpush1.bf16.msra.mxu0 %v341
  %403 = vmatprep.subr.bf16.mxu0 0
  %404 = vmatpush1.bf16.msra.mxu0 %v342
  %405 = vmatprep.subr.bf16.mxu0 0
  %406 = vmatpush1.bf16.msra.mxu0 %v343
  %407 = vmatprep.subr.bf16.mxu0 0
  %408 = vmatpush1.bf16.msra.mxu0 %v344
  %409 = vmatprep.mubr.bf16.mxu0 %v186
  %410 = vmatmul.mubr.bf16.gmra.mrb[0].mxu0 %v185
  %v411 = vpop.f32.mrb[0].mxu0
  %v412 = vadd.f32 %v103, %v411
  %v413 = vpop.f32.mrb[0].mxu0
  %v414 = vpop.f32.mrb[0].mxu0
  %v415 = vadd.f32 %v103, %v414
  %v416 = vpop.f32.mrb[0].mxu0
  %417 = vmatprep.mubr.bf16.mxu0 %v189
  %418 = vmatmul.mubr.bf16.gmra.mrb[0].mxu0 %v188
  %v419 = vpop.f32.mrb[0].mxu0
  %v420 = vadd.f32 %v103, %v419
  %v421 = vpop.f32.mrb[0].mxu0
  %v422 = vpop.f32.mrb[0].mxu0
  %v423 = vadd.f32 %v103, %v422
  %v424 = vpop.f32.mrb[0].mxu0
  %425 = vmatprep.mubr.bf16.mxu0 %v192
  %426 = vmatmul.mubr.bf16.gmra.mrb[0].mxu0 %v191
  %v427 = vpop.f32.mrb[0].mxu0
  %v428 = vadd.f32 %v103, %v427
  %v429 = vpop.f32.mrb[0].mxu0
  %v430 = vpop.f32.mrb[0].mxu0
  %v431 = vadd.f32 %v103, %v430
  %v432 = vpop.f32.mrb[0].mxu0
  %433 = vmatprep.mubr.bf16.mxu0 %v195
  %434 = vmatmul.mubr.bf16.gmra.mrb[0].mxu0 %v194
  %v435 = vpop.f32.mrb[0].mxu0
  %v436 = vadd.f32 %v103, %v435
  %v437 = vpop.f32.mrb[0].mxu0
  %v438 = vpop.f32.mrb[0].mxu0
  %v439 = vadd.f32 %v103, %v438
  %v440 = vpop.f32.mrb[0].mxu0
  %441 = vmatprep.mubr.bf16.mxu0 %v198
  %442 = vmatmul.mubr.bf16.gmra.mrb[0].mxu0 %v197
  %v443 = vpop.f32.mrb[0].mxu0
  %v444 = vadd.f32 %v103, %v443
  %v445 = vpop.f32.mrb[0].mxu0
  %v446 = vpop.f32.mrb[0].mxu0
  %v447 = vadd.f32 %v103, %v446
  %v448 = vpop.f32.mrb[0].mxu0
  %449 = vmatprep.mubr.bf16.mxu0 %v201
  %450 = vmatmul.mubr.bf16.gmra.mrb[0].mxu0 %v200
  %v451 = vpop.f32.mrb[0].mxu0
  %v452 = vadd.f32 %v103, %v451
  %v453 = vpop.f32.mrb[0].mxu0
  %v454 = vpop.f32.mrb[0].mxu0
  %v455 = vadd.f32 %v103, %v454
  %v456 = vpop.f32.mrb[0].mxu0
  %457 = vmatprep.mubr.bf16.mxu0 %v204
  %458 = vmatmul.mubr.bf16.gmra.mrb[0].mxu0 %v203
  %v459 = vpop.f32.mrb[0].mxu0
  %v460 = vadd.f32 %v103, %v459
  %v461 = vpop.f32.mrb[0].mxu0
  %v462 = vpop.f32.mrb[0].mxu0
  %v463 = vadd.f32 %v103, %v462
  %v464 = vpop.f32.mrb[0].mxu0
  %465 = vmatprep.mubr.bf16.mxu0 %v207
  %466 = vmatmul.mubr.bf16.gmra.mrb[0].mxu0 %v206
  %v467 = vpop.f32.mrb[0].mxu0
  %v468 = vadd.f32 %v103, %v467
  %v469 = vpop.f32.mrb[0].mxu0
  %v470 = vpop.f32.mrb[0].mxu0
  %v471 = vadd.f32 %v103, %v470
  %v472 = vpop.f32.mrb[0].mxu0
  %473 = vdwg.mxu0
  %474 = vmatprep.subr.bf16.mxu0 0
  %475 = vmatpush1.bf16.msra.mxu0 %v345
  %476 = vmatprep.subr.bf16.mxu0 0
  %477 = vmatpush1.bf16.msra.mxu0 %v346
  %478 = vmatprep.subr.bf16.mxu0 0
  %479 = vmatpush1.bf16.msra.mxu0 %v347
  %480 = vmatprep.subr.bf16.mxu0 0
  %481 = vmatpush1.bf16.msra.mxu0 %v348
  %482 = vmatprep.subr.bf16.mxu0 0
  %483 = vmatpush1.bf16.msra.mxu0 %v349
  %484 = vmatprep.subr.bf16.mxu0 0
  %485 = vmatpush1.bf16.msra.mxu0 %v350
  %486 = vmatprep.subr.bf16.mxu0 0
  %487 = vmatpush1.bf16.msra.mxu0 %v351
  %488 = vmatprep.subr.bf16.mxu0 0
  %489 = vmatpush1.bf16.msra.mxu0 %v352
  %490 = vmatprep.subr.bf16.mxu0 0
  %491 = vmatpush1.bf16.msra.mxu0 0
  %492 = vmatprep.subr.bf16.mxu0 0
  %493 = vmatpush1.bf16.msra.mxu0 0
  %494 = vmatprep.subr.bf16.mxu0 0
  %495 = vmatpush1.bf16.msra.mxu0 0
  %496 = vmatprep.subr.bf16.mxu0 0
  %497 = vmatpush1.bf16.msra.mxu0 0
  %498 = vmatprep.subr.bf16.mxu0 0
  %499 = vmatpush1.bf16.msra.mxu0 0
  %500 = vmatprep.subr.bf16.mxu0 0
  %501 = vmatpush1.bf16.msra.mxu0 0
  %502 = vmatprep.subr.bf16.mxu0 0
  %503 = vmatpush1.bf16.msra.mxu0 0
  %504 = vmatprep.subr.bf16.mxu0 0
  %505 = vmatpush1.bf16.msra.mxu0 0
  %506 = vmatprep.mubr.bf16.mxu0 0
  %507 = vmatmul.mubr.bf16.gmra.mrb[0].mxu0 %v187
  %v508 = vpop.f32.mrb[0].mxu0
  %v509 = vadd.f32 %v412, %v508
  %v510 = vpop.f32.mrb[0].mxu0
  %v511 = vpop.f32.mrb[0].mxu0
  %v512 = vadd.f32 %v415, %v511
  %v513 = vpop.f32.mrb[0].mxu0
  %514 = vmatprep.mubr.bf16.mxu0 0
  %515 = vmatmul.mubr.bf16.gmra.mrb[0].mxu0 %v190
  %v516 = vpop.f32.mrb[0].mxu0
  %v517 = vadd.f32 %v420, %v516
  %v518 = vpop.f32.mrb[0].mxu0
  %v519 = vpop.f32.mrb[0].mxu0
  %v520 = vadd.f32 %v423, %v519
  %v521 = vpop.f32.mrb[0].mxu0
  %522 = vmatprep.mubr.bf16.mxu0 0
  %523 = vmatmul.mubr.bf16.gmra.mrb[0].mxu0 %v193
  %v524 = vpop.f32.mrb[0].mxu0
  %v525 = vadd.f32 %v428, %v524
  %v526 = vpop.f32.mrb[0].mxu0
  %v527 = vpop.f32.mrb[0].mxu0
  %v528 = vadd.f32 %v431, %v527
  %v529 = vpop.f32.mrb[0].mxu0
  %530 = vmatprep.mubr.bf16.mxu0 0
  %531 = vmatmul.mubr.bf16.gmra.mrb[0].mxu0 %v196
  %v532 = vpop.f32.mrb[0].mxu0
  %v533 = vadd.f32 %v436, %v532
  %v534 = vpop.f32.mrb[0].mxu0
  %v535 = vpop.f32.mrb[0].mxu0
  %v536 = vadd.f32 %v439, %v535
  %v537 = vpop.f32.mrb[0].mxu0
  %538 = vmatprep.mubr.bf16.mxu0 0
  %539 = vmatmul.mubr.bf16.gmra.mrb[0].mxu0 %v199
  %v540 = vpop.f32.mrb[0].mxu0
  %v541 = vadd.f32 %v444, %v540
  %v542 = vpop.f32.mrb[0].mxu0
  %v543 = vpop.f32.mrb[0].mxu0
  %v544 = vadd.f32 %v447, %v543
  %v545 = vpop.f32.mrb[0].mxu0
  %546 = vmatprep.mubr.bf16.mxu0 0
  %547 = vmatmul.mubr.bf16.gmra.mrb[0].mxu0 %v202
  %v548 = vpop.f32.mrb[0].mxu0
  %v549 = vadd.f32 %v452, %v548
  %v550 = vpop.f32.mrb[0].mxu0
  %v551 = vpop.f32.mrb[0].mxu0
  %v552 = vadd.f32 %v455, %v551
  %v553 = vpop.f32.mrb[0].mxu0
  %554 = vmatprep.mubr.bf16.mxu0 0
  %555 = vmatmul.mubr.bf16.gmra.mrb[0].mxu0 %v205
  %v556 = vpop.f32.mrb[0].mxu0
  %v557 = vadd.f32 %v460, %v556
  %v558 = vpop.f32.mrb[0].mxu0
  %v559 = vpop.f32.mrb[0].mxu0
  %v560 = vadd.f32 %v463, %v559
  %v561 = vpop.f32.mrb[0].mxu0
  %562 = vmatprep.mubr.bf16.mxu0 0
  %563 = vmatmul.mubr.bf16.gmra.mrb[0].mxu0 %v208
  %v564 = vpop.f32.mrb[0].mxu0
  %v565 = vadd.f32 %v468, %v564
  %v566 = vpop.f32.mrb[0].mxu0
  %v567 = vpop.f32.mrb[0].mxu0
  %v568 = vadd.f32 %v471, %v567
  %v569 = vpop.f32.mrb[0].mxu0
  %570 = vdwg.mxu0
  %v571 = vld [vmem:[%s3] sm:$0xf]
  %v572 = vld [vmem:[%s3 + $0x4] sm:$0xf]
  %v573 = vld [vmem:[%s3 + $0x8] sm:$0xf]
  %v574 = vld [vmem:[%s3 + $0xc] sm:$0xf]
  %v575 = vld [vmem:[%s3 + $0x10] sm:$0xf]
  %v576 = vld [vmem:[%s3 + $0x14] sm:$0xf]
  %v577 = vld [vmem:[%s3 + $0x18] sm:$0xf]
  %v578 = vld [vmem:[%s3 + $0x1c] sm:$0xf]
  %v579 = vld [vmem:[%s3 + $0x20] sm:$0xf]
  %v580 = vld [vmem:[%s3 + $0x24] sm:$0xf]
  %v581 = vld [vmem:[%s3 + $0x28] sm:$0xf]
  %v582 = vld [vmem:[%s3 + $0x2c] sm:$0xf]
  %v583 = vld [vmem:[%s3 + $0x30] sm:$0xf]
  %v584 = vld [vmem:[%s3 + $0x34] sm:$0xf]
  %v585 = vld [vmem:[%s3 + $0x38] sm:$0xf]
  %v586 = vld [vmem:[%s3 + $0x3c] sm:$0xf]
  %v587 = vunpack.c.l.bf16 %v571
  %v588 = vunpack.c.l.bf16 %v572
  %v589 = vunpack.c.l.bf16 %v573
  %v590 = vunpack.c.l.bf16 %v574
  %v591 = vunpack.c.l.bf16 %v575
  %v592 = vunpack.c.l.bf16 %v576
  %v593 = vunpack.c.l.bf16 %v577
  %v594 = vunpack.c.l.bf16 %v578
  %v595 = vunpack.c.l.bf16 %v579
  %v596 = vunpack.c.l.bf16 %v580
  %v597 = vunpack.c.l.bf16 %v581
  %v598 = vunpack.c.l.bf16 %v582
  %v599 = vunpack.c.l.bf16 %v583
  %v600 = vunpack.c.l.bf16 %v584
  %v601 = vunpack.c.l.bf16 %v585
  %v602 = vunpack.c.l.bf16 %v586
  %v603 = vadd.f32 %v509, %v587
  %v604 = vadd.f32 %v512, %v588
  %v605 = vadd.f32 %v517, %v589
  %v606 = vadd.f32 %v520, %v590
  %v607 = vadd.f32 %v525, %v591
  %v608 = vadd.f32 %v528, %v592
  %v609 = vadd.f32 %v533, %v593
  %v610 = vadd.f32 %v536, %v594
  %v611 = vadd.f32 %v541, %v595
  %v612 = vadd.f32 %v544, %v596
  %v613 = vadd.f32 %v549, %v597
  %v614 = vadd.f32 %v552, %v598
  %v615 = vadd.f32 %v557, %v599
  %v616 = vadd.f32 %v560, %v600
  %v617 = vadd.f32 %v565, %v601
  %v618 = vadd.f32 %v568, %v602
  %v619 = vmax.f32 %v603, 0.0
  %v620 = vmax.f32 %v604, 0.0
  %v621 = vmax.f32 %v605, 0.0
  %v622 = vmax.f32 %v606, 0.0
  %v623 = vmax.f32 %v607, 0.0
  %v624 = vmax.f32 %v608, 0.0
  %v625 = vmax.f32 %v609, 0.0
  %v626 = vmax.f32 %v610, 0.0
  %v627 = vmax.f32 %v611, 0.0
  %v628 = vmax.f32 %v612, 0.0
  %v629 = vmax.f32 %v613, 0.0
  %v630 = vmax.f32 %v614, 0.0
  %v631 = vmax.f32 %v615, 0.0
  %v632 = vmax.f32 %v616, 0.0
  %v633 = vmax.f32 %v617, 0.0
  %v634 = vmax.f32 %v618, 0.0
  %v635 = vpack.c.bf16 %v620, %v619
  %v636 = vpack.c.bf16 %v622, %v621
  %v637 = vpack.c.bf16 %v624, %v623
  %v638 = vpack.c.bf16 %v626, %v625
  %v639 = vpack.c.bf16 %v628, %v627
  %v640 = vpack.c.bf16 %v630, %v629
  %v641 = vpack.c.bf16 %v632, %v631
  %v642 = vpack.c.bf16 %v634, %v633
  %v651 = vunpack.c.l.b16 %v635
  %v652 = vunpack.c.h.b16 %v635
  %v653 = vunpack.c.l.b16 %v636
  %v654 = vunpack.c.h.b16 %v636
  %v655 = vunpack.c.l.b16 %v637
  %v656 = vunpack.c.h.b16 %v637
  %v657 = vunpack.c.l.b16 %v638
  %v658 = vunpack.c.h.b16 %v638
  %v659 = vunpack.c.l.b16 %v639
  %v660 = vunpack.c.h.b16 %v639
  %v661 = vunpack.c.l.b16 %v640
  %v662 = vunpack.c.h.b16 %v640
  %v663 = vunpack.c.l.b16 %v641
  %v664 = vunpack.c.h.b16 %v641
  %v665 = vunpack.c.l.b16 %v642
  %v666 = vunpack.c.h.b16 %v642
  %v667 = vpack.c.b16 %v651, %v651
  %v668 = vpack.c.b16 %v652, %v652
  %v669 = vpack.c.b16 %v653, %v653
  %v670 = vpack.c.b16 %v654, %v654
  %v671 = vpack.c.b16 %v655, %v655
  %v672 = vpack.c.b16 %v656, %v656
  %v673 = vpack.c.b16 %v657, %v657
  %v674 = vpack.c.b16 %v658, %v658
  %v675 = vpack.c.b16 %v659, %v659
  %v676 = vpack.c.b16 %v660, %v660
  %v677 = vpack.c.b16 %v661, %v661
  %v678 = vpack.c.b16 %v662, %v662
  %v679 = vpack.c.b16 %v663, %v663
  %v680 = vpack.c.b16 %v664, %v664
  %v681 = vpack.c.b16 %v665, %v665
  %v682 = vpack.c.b16 %v666, %v666
  %699 = vst [vmem:[%s4] sm:$0xf] %v667
  %700 = vst [vmem:[%s4 + $0x4] sm:$0xf] %v668
  %701 = vst [vmem:[%s4 + $0x8] sm:$0xf] %v669
  %702 = vst [vmem:[%s4 + $0xc] sm:$0xf] %v670
  %703 = vst [vmem:[%s4 + $0x10] sm:$0xf] %v671
  %704 = vst [vmem:[%s4 + $0x14] sm:$0xf] %v672
  %705 = vst [vmem:[%s4 + $0x18] sm:$0xf] %v673
  %706 = vst [vmem:[%s4 + $0x1c] sm:$0xf] %v674
  %707 = vst [vmem:[%s4 + $0x20] sm:$0xf] %v675
  %708 = vst [vmem:[%s4 + $0x24] sm:$0xf] %v676
  %709 = vst [vmem:[%s4 + $0x28] sm:$0xf] %v677
  %710 = vst [vmem:[%s4 + $0x2c] sm:$0xf] %v678
  %711 = vst [vmem:[%s4 + $0x30] sm:$0xf] %v679
  %712 = vst [vmem:[%s4 + $0x34] sm:$0xf] %v680
  %713 = vst [vmem:[%s4 + $0x38] sm:$0xf] %v681
  %714 = vst [vmem:[%s4 + $0x3c] sm:$0xf] %v682
  // Predicated region
  $region18: #{_lambda_.14} parent=0 // pred_check
    _
  $region19: #{_lambda_.14} parent=0 // pred_check_branch
    %716 = sbr.rel (0) target = $region21
  $region20: #{_lambda_.14} parent=0 // pred_region
    _
  $region21: #{_lambda_.14} parent=0 // pred_fallthru
    _
  // Predicated region
  $region22: #{_lambda_.14} parent=0 // pred_check
    _
  $region23: #{_lambda_.14} parent=0 // pred_check_branch
    %718 = sbr.rel (0) target = $region25
  $region24: #{_lambda_.14} parent=0 // pred_region
    _
  $region25: #{_lambda_.14} parent=0 // pred_fallthru
    _

// kernel: _lambda_.16
$region0: #{_lambda_.16}
  #allocation0 [shape = 'u32[]', space=smem, size = 0x4, offset = 0x4, fixed_abs, tag = 'smem constant byte address 0x4 - core index']
  #allocation1 [shape = 'u32[144,128]{1,0:T(1,128)}', space=vmem, size = 0x12000, scoped, tag = 'internal scratch']
  %s0 = inlined_call_operand.vmem [shape: bf16[32,384], index: 0, kind: input, shape index: {}]
  %s1 = inlined_call_operand.vmem [shape: bf16[384,128], index: 1, kind: input, shape index: {}]
  %s2 = inlined_call_operand.vmem [shape: f32[1,128], index: 2, kind: input, shape index: {}]
  %s3 = inlined_call_operand.vmem [shape: bf16[32,128], index: 3, kind: output, shape index: {}]
  %s4 = sld [smem:[#allocation0]]
  $region22: #{_lambda_.16} parent=0
    _
  %s6 = ssub.s32 1, %s4
  %s7 = scalar_select 0, %s6, %s4
  // Predicated region
  $region2: #{_lambda_.16} parent=0 // pred_check
    _
  $region3: #{_lambda_.16} parent=0 // pred_check_branch
    %9 = sbr.rel (0) target = $region5
  $region4: #{_lambda_.16} parent=0 // pred_region
    _
  $region5: #{_lambda_.16} parent=0 // pred_fallthru
    _
  // Predicated region
  $region6: #{_lambda_.16} parent=0 // pred_check
    _
  $region7: #{_lambda_.16} parent=0 // pred_check_branch
    %11 = sbr.rel (0) target = $region9
  $region8: #{_lambda_.16} parent=0 // pred_region
    _
  $region9: #{_lambda_.16} parent=0 // pred_fallthru
    _
  // Predicated region
  $region10: #{_lambda_.16} parent=0 // pred_check
    _
  $region11: #{_lambda_.16} parent=0 // pred_check_branch
    %13 = sbr.rel (0) target = $region13
  $region12: #{_lambda_.16} parent=0 // pred_region
    _
  $region13: #{_lambda_.16} parent=0 // pred_fallthru
    _
  %v15 = vld [vmem:[%s0] sm:$0xff]
  %v16 = vld [vmem:[%s0 + $0x8] sm:$0xf]
  %v17 = vld [vmem:[%s0 + $0xc] sm:$0xff]
  %v18 = vld [vmem:[%s0 + $0x14] sm:$0xf]
  %v19 = vld [vmem:[%s0 + $0x18] sm:$0xff]
  %v20 = vld [vmem:[%s0 + $0x20] sm:$0xf]
  %v21 = vld [vmem:[%s0 + $0x24] sm:$0xff]
  %v22 = vld [vmem:[%s0 + $0x2c] sm:$0xf]
  %v23 = vld [vmem:[%s1] sm:$0xf]
  %v24 = vld [vmem:[%s1 + $0x4] sm:$0xf]
  %v25 = vld [vmem:[%s1 + $0x8] sm:$0xf]
  %v26 = vld [vmem:[%s1 + $0xc] sm:$0xf]
  %v27 = vld [vmem:[%s1 + $0x10] sm:$0xf]
  %v28 = vld [vmem:[%s1 + $0x14] sm:$0xf]
  %v29 = vld [vmem:[%s1 + $0x18] sm:$0xf]
  %v30 = vld [vmem:[%s1 + $0x1c] sm:$0xf]
  %v31 = vld [vmem:[%s1 + $0x20] sm:$0xf]
  %v32 = vld [vmem:[%s1 + $0x24] sm:$0xf]
  %v33 = vld [vmem:[%s1 + $0x28] sm:$0xf]
  %v34 = vld [vmem:[%s1 + $0x2c] sm:$0xf]
  %v35 = vld [vmem:[%s1 + $0x30] sm:$0xf]
  %v36 = vld [vmem:[%s1 + $0x34] sm:$0xf]
  %v37 = vld [vmem:[%s1 + $0x38] sm:$0xf]
  %v38 = vld [vmem:[%s1 + $0x3c] sm:$0xf]
  %v39 = vld [vmem:[%s1 + $0x40] sm:$0xf]
  %v40 = vld [vmem:[%s1 + $0x44] sm:$0xf]
  %v41 = vld [vmem:[%s1 + $0x48] sm:$0xf]
  %v42 = vld [vmem:[%s1 + $0x4c] sm:$0xf]
  %v43 = vld [vmem:[%s1 + $0x50] sm:$0xf]
  %v44 = vld [vmem:[%s1 + $0x54] sm:$0xf]
  %v45 = vld [vmem:[%s1 + $0x58] sm:$0xf]
  %v46 = vld [vmem:[%s1 + $0x5c] sm:$0xf]
  %v47 = vld [vmem:[%s1 + $0x60] sm:$0xf]
  %v48 = vld [vmem:[%s1 + $0x64] sm:$0xf]
  %v49 = vld [vmem:[%s1 + $0x68] sm:$0xf]
  %v50 = vld [vmem:[%s1 + $0x6c] sm:$0xf]
  %v51 = vld [vmem:[%s1 + $0x70] sm:$0xf]
  %v52 = vld [vmem:[%s1 + $0x74] sm:$0xf]
  %v53 = vld [vmem:[%s1 + $0x78] sm:$0xf]
  %v54 = vld [vmem:[%s1 + $0x7c] sm:$0xf]
  %v55 = vld [vmem:[%s1 + $0x80] sm:$0xf]
  %v56 = vld [vmem:[%s1 + $0x84] sm:$0xf]
  %v57 = vld [vmem:[%s1 + $0x88] sm:$0xf]
  %v58 = vld [vmem:[%s1 + $0x8c] sm:$0xf]
  %v59 = vld [vmem:[%s1 + $0x90] sm:$0xf]
  %v60 = vld [vmem:[%s1 + $0x94] sm:$0xf]
  %v61 = vld [vmem:[%s1 + $0x98] sm:$0xf]
  %v62 = vld [vmem:[%s1 + $0x9c] sm:$0xf]
  %v63 = vld [vmem:[%s1 + $0xa0] sm:$0xf]
  %v64 = vld [vmem:[%s1 + $0xa4] sm:$0xf]
  %v65 = vld [vmem:[%s1 + $0xa8] sm:$0xf]
  %v66 = vld [vmem:[%s1 + $0xac] sm:$0xf]
  %v67 = vld [vmem:[%s1 + $0xb0] sm:$0xf]
  %v68 = vld [vmem:[%s1 + $0xb4] sm:$0xf]
  %v69 = vld [vmem:[%s1 + $0xb8] sm:$0xf]
  %v70 = vld [vmem:[%s1 + $0xbc] sm:$0xf]
  %v71 = vld [vmem:[%s2] sm:$0x1]
  %v73 = vlaneseq
  %v74 = vshrl.u32 %v73, 7
  %v75 = vsub.s32 0, %v74
  %v76 = vrot.slane %v71, %v75
  %v86 = vunpack.c.l.b16 %v15
  %v87 = vunpack.c.h.b16 %v15
  %v88 = vunpack.c.l.b16 %v16
  %v89 = vunpack.c.l.b16 %v17
  %v90 = vunpack.c.h.b16 %v17
  %v91 = vunpack.c.l.b16 %v18
  %v92 = vunpack.c.l.b16 %v19
  %v93 = vunpack.c.h.b16 %v19
  %v94 = vunpack.c.l.b16 %v20
  %v95 = vunpack.c.l.b16 %v21
  %v96 = vunpack.c.h.b16 %v21
  %v97 = vunpack.c.l.b16 %v22
  %v98 = vpack.c.b16 %v89, %v86
  %v99 = vpack.c.b16 %v90, %v87
  %v100 = vpack.c.b16 %v91, %v88
  %v101 = vpack.c.b16 %v95, %v92
  %v102 = vpack.c.b16 %v96, %v93
  %v103 = vpack.c.b16 %v97, %v94
  %v158 = vunpack.c.l.b16 %v23
  %v159 = vunpack.c.l.b16 %v24
  %v160 = vunpack.c.l.b16 %v25
  %v161 = vunpack.c.l.b16 %v26
  %v162 = vunpack.c.l.b16 %v27
  %v163 = vunpack.c.l.b16 %v28
  %v164 = vunpack.c.l.b16 %v29
  %v165 = vunpack.c.l.b16 %v30
  %v166 = vunpack.c.l.b16 %v31
  %v167 = vunpack.c.l.b16 %v32
  %v168 = vunpack.c.l.b16 %v33
  %v169 = vunpack.c.l.b16 %v34
  %v170 = vunpack.c.l.b16 %v35
  %v171 = vunpack.c.l.b16 %v36
  %v172 = vunpack.c.l.b16 %v37
  %v173 = vunpack.c.l.b16 %v38
  %v174 = vunpack.c.l.b16 %v39
  %v175 = vunpack.c.l.b16 %v40
  %v176 = vunpack.c.l.b16 %v41
  %v177 = vunpack.c.l.b16 %v42
  %v178 = vunpack.c.l.b16 %v43
  %v179 = vunpack.c.l.b16 %v44
  %v180 = vunpack.c.l.b16 %v45
  %v181 = vunpack.c.l.b16 %v46
  %v182 = vunpack.c.l.b16 %v47
  %v183 = vunpack.c.l.b16 %v48
  %v184 = vunpack.c.l.b16 %v49
  %v185 = vunpack.c.l.b16 %v50
  %v186 = vunpack.c.l.b16 %v51
  %v187 = vunpack.c.l.b16 %v52
  %v188 = vunpack.c.l.b16 %v53
  %v189 = vunpack.c.l.b16 %v54
  %v190 = vunpack.c.l.b16 %v55
  %v191 = vunpack.c.l.b16 %v56
  %v192 = vunpack.c.l.b16 %v57
  %v193 = vunpack.c.l.b16 %v58
  %v194 = vunpack.c.l.b16 %v59
  %v195 = vunpack.c.l.b16 %v60
  %v196 = vunpack.c.l.b16 %v61
  %v197 = vunpack.c.l.b16 %v62
  %v198 = vunpack.c.l.b16 %v63
  %v199 = vunpack.c.l.b16 %v64
  %v200 = vunpack.c.l.b16 %v65
  %v201 = vunpack.c.l.b16 %v66
  %v202 = vunpack.c.l.b16 %v67
  %v203 = vunpack.c.l.b16 %v68
  %v204 = vunpack.c.l.b16 %v69
  %v205 = vunpack.c.l.b16 %v70
  %v206 = vpack.c.b16 %v159, %v158
  %v207 = vpack.c.b16 %v161, %v160
  %v208 = vpack.c.b16 %v163, %v162
  %v209 = vpack.c.b16 %v165, %v164
  %v210 = vpack.c.b16 %v167, %v166
  %v211 = vpack.c.b16 %v169, %v168
  %v212 = vpack.c.b16 %v171, %v170
  %v213 = vpack.c.b16 %v173, %v172
  %v214 = vpack.c.b16 %v175, %v174
  %v215 = vpack.c.b16 %v177, %v176
  %v216 = vpack.c.b16 %v179, %v178
  %v217 = vpack.c.b16 %v181, %v180
  %v218 = vpack.c.b16 %v183, %v182
  %v219 = vpack.c.b16 %v185, %v184
  %v220 = vpack.c.b16 %v187, %v186
  %v221 = vpack.c.b16 %v189, %v188
  %v222 = vpack.c.b16 %v191, %v190
  %v223 = vpack.c.b16 %v193, %v192
  %v224 = vpack.c.b16 %v195, %v194
  %v225 = vpack.c.b16 %v197, %v196
  %v226 = vpack.c.b16 %v199, %v198
  %v227 = vpack.c.b16 %v201, %v200
  %v228 = vpack.c.b16 %v203, %v202
  %v229 = vpack.c.b16 %v205, %v204
  %254 = vmatprep.subr.bf16.mxu0 0
  %255 = vmatpush1.bf16.msra.mxu0 %v206
  %256 = vmatprep.subr.bf16.mxu0 0
  %257 = vmatpush1.bf16.msra.mxu0 %v207
  %258 = vmatprep.subr.bf16.mxu0 0
  %259 = vmatpush1.bf16.msra.mxu0 %v208
  %260 = vmatprep.subr.bf16.mxu0 0
  %261 = vmatpush1.bf16.msra.mxu0 %v209
  %262 = vmatprep.subr.bf16.mxu0 0
  %263 = vmatpush1.bf16.msra.mxu0 %v210
  %264 = vmatprep.subr.bf16.mxu0 0
  %265 = vmatpush1.bf16.msra.mxu0 %v211
  %266 = vmatprep.subr.bf16.mxu0 0
  %267 = vmatpush1.bf16.msra.mxu0 %v212
  %268 = vmatprep.subr.bf16.mxu0 0
  %269 = vmatpush1.bf16.msra.mxu0 %v213
  %270 = vmatprep.subr.bf16.mxu0 0
  %271 = vmatpush1.bf16.msra.mxu0 %v214
  %272 = vmatprep.subr.bf16.mxu0 0
  %273 = vmatpush1.bf16.msra.mxu0 %v215
  %274 = vmatprep.subr.bf16.mxu0 0
  %275 = vmatpush1.bf16.msra.mxu0 %v216
  %276 = vmatprep.subr.bf16.mxu0 0
  %277 = vmatpush1.bf16.msra.mxu0 %v217
  %278 = vmatprep.subr.bf16.mxu0 0
  %279 = vmatpush1.bf16.msra.mxu0 %v218
  %280 = vmatprep.subr.bf16.mxu0 0
  %281 = vmatpush1.bf16.msra.mxu0 %v219
  %282 = vmatprep.subr.bf16.mxu0 0
  %283 = vmatpush1.bf16.msra.mxu0 %v220
  %284 = vmatprep.subr.bf16.mxu0 0
  %285 = vmatpush1.bf16.msra.mxu0 %v221
  %286 = vmatprep.mubr.bf16.mxu0 %v99
  %287 = vmatmul.mubr.bf16.gmra.mrb[0].mxu0 %v98
  %v288 = vpop.f32.mrb[0].mxu0
  %v289 = vadd.f32 %v76, %v288
  %v290 = vpop.f32.mrb[0].mxu0
  %v291 = vpop.f32.mrb[0].mxu0
  %v292 = vadd.f32 %v76, %v291
  %v293 = vpop.f32.mrb[0].mxu0
  %294 = vmatprep.mubr.bf16.mxu0 %v102
  %295 = vmatmul.mubr.bf16.gmra.mrb[0].mxu0 %v101
  %v296 = vpop.f32.mrb[0].mxu0
  %v297 = vadd.f32 %v76, %v296
  %v298 = vpop.f32.mrb[0].mxu0
  %v299 = vpop.f32.mrb[0].mxu0
  %v300 = vadd.f32 %v76, %v299
  %v301 = vpop.f32.mrb[0].mxu0
  %302 = vdwg.mxu0
  %303 = vmatprep.subr.bf16.mxu0 0
  %304 = vmatpush1.bf16.msra.mxu0 %v222
  %305 = vmatprep.subr.bf16.mxu0 0
  %306 = vmatpush1.bf16.msra.mxu0 %v223
  %307 = vmatprep.subr.bf16.mxu0 0
  %308 = vmatpush1.bf16.msra.mxu0 %v224
  %309 = vmatprep.subr.bf16.mxu0 0
  %310 = vmatpush1.bf16.msra.mxu0 %v225
  %311 = vmatprep.subr.bf16.mxu0 0
  %312 = vmatpush1.bf16.msra.mxu0 %v226
  %313 = vmatprep.subr.bf16.mxu0 0
  %314 = vmatpush1.bf16.msra.mxu0 %v227
  %315 = vmatprep.subr.bf16.mxu0 0
  %316 = vmatpush1.bf16.msra.mxu0 %v228
  %317 = vmatprep.subr.bf16.mxu0 0
  %318 = vmatpush1.bf16.msra.mxu0 %v229
  %319 = vmatprep.subr.bf16.mxu0 0
  %320 = vmatpush1.bf16.msra.mxu0 0
  %321 = vmatprep.subr.bf16.mxu0 0
  %322 = vmatpush1.bf16.msra.mxu0 0
  %323 = vmatprep.subr.bf16.mxu0 0
  %324 = vmatpush1.bf16.msra.mxu0 0
  %325 = vmatprep.subr.bf16.mxu0 0
  %326 = vmatpush1.bf16.msra.mxu0 0
  %327 = vmatprep.subr.bf16.mxu0 0
  %328 = vmatpush1.bf16.msra.mxu0 0
  %329 = vmatprep.subr.bf16.mxu0 0
  %330 = vmatpush1.bf16.msra.mxu0 0
  %331 = vmatprep.subr.bf16.mxu0 0
  %332 = vmatpush1.bf16.msra.mxu0 0
  %333 = vmatprep.subr.bf16.mxu0 0
  %334 = vmatpush1.bf16.msra.mxu0 0
  %335 = vmatprep.mubr.bf16.mxu0 0
  %336 = vmatmul.mubr.bf16.gmra.mrb[0].mxu0 %v100
  %v337 = vpop.f32.mrb[0].mxu0
  %v338 = vadd.f32 %v289, %v337
  %v339 = vpop.f32.mrb[0].mxu0
  %v340 = vpop.f32.mrb[0].mxu0
  %v341 = vadd.f32 %v292, %v340
  %v342 = vpop.f32.mrb[0].mxu0
  %343 = vmatprep.mubr.bf16.mxu0 0
  %344 = vmatmul.mubr.bf16.gmra.mrb[0].mxu0 %v103
  %v345 = vpop.f32.mrb[0].mxu0
  %v346 = vadd.f32 %v297, %v345
  %v347 = vpop.f32.mrb[0].mxu0
  %v348 = vpop.f32.mrb[0].mxu0
  %v349 = vadd.f32 %v300, %v348
  %v350 = vpop.f32.mrb[0].mxu0
  %351 = vdwg.mxu0
  %v352 = vmax.f32 %v338, 0.0
  %v353 = vmax.f32 %v341, 0.0
  %v354 = vmax.f32 %v346, 0.0
  %v355 = vmax.f32 %v349, 0.0
  %v356 = vpack.c.bf16 %v353, %v352
  %v357 = vpack.c.bf16 %v355, %v354
  %v360 = vunpack.c.l.b16 %v356
  %v361 = vunpack.c.h.b16 %v356
  %v362 = vunpack.c.l.b16 %v357
  %v363 = vunpack.c.h.b16 %v357
  %v364 = vpack.c.b16 %v360, %v360
  %v365 = vpack.c.b16 %v361, %v361
  %v366 = vpack.c.b16 %v362, %v362
  %v367 = vpack.c.b16 %v363, %v363
  %372 = vst [vmem:[%s3] sm:$0xf] %v364
  %373 = vst [vmem:[%s3 + $0x4] sm:$0xf] %v365
  %374 = vst [vmem:[%s3 + $0x8] sm:$0xf] %v366
  %375 = vst [vmem:[%s3 + $0xc] sm:$0xf] %v367
  // Predicated region
  $region14: #{_lambda_.16} parent=0 // pred_check
    _
  $region15: #{_lambda_.16} parent=0 // pred_check_branch
    %377 = sbr.rel (0) target = $region17
  $region16: #{_lambda_.16} parent=0 // pred_region
    _
  $region17: #{_lambda_.16} parent=0 // pred_fallthru
    _
  // Predicated region
  $region18: #{_lambda_.16} parent=0 // pred_check
    _
  $region19: #{_lambda_.16} parent=0 // pred_check_branch
    %379 = sbr.rel (0) target = $region21
  $region20: #{_lambda_.16} parent=0 // pred_region
    _
  $region21: #{_lambda_.16} parent=0 // pred_fallthru
    _

// kernel: _lambda_.15
$region0: #{_lambda_.15}
  #allocation0 [shape = 'u32[]', space=smem, size = 0x4, offset = 0x4, fixed_abs, tag = 'smem constant byte address 0x4 - core index']
  #allocation1 [shape = 'u32[144,128]{1,0:T(1,128)}', space=vmem, size = 0x12000, scoped, tag = 'internal scratch']
  %s0 = inlined_call_operand.vmem [shape: bf16[32,128], index: 0, kind: input, shape index: {}]
  %s1 = inlined_call_operand.vmem [shape: bf16[128,128], index: 1, kind: input, shape index: {}]
  %s2 = inlined_call_operand.vmem [shape: f32[1,128], index: 2, kind: input, shape index: {}]
  %s3 = inlined_call_operand.vmem [shape: bf16[32,128], index: 3, kind: output, shape index: {}]
  %s4 = sld [smem:[#allocation0]]
  $region22: #{_lambda_.15} parent=0
    _
  %s6 = ssub.s32 1, %s4
  %s7 = scalar_select 0, %s6, %s4
  // Predicated region
  $region2: #{_lambda_.15} parent=0 // pred_check
    _
  $region3: #{_lambda_.15} parent=0 // pred_check_branch
    %9 = sbr.rel (0) target = $region5
  $region4: #{_lambda_.15} parent=0 // pred_region
    _
  $region5: #{_lambda_.15} parent=0 // pred_fallthru
    _
  // Predicated region
  $region6: #{_lambda_.15} parent=0 // pred_check
    _
  $region7: #{_lambda_.15} parent=0 // pred_check_branch
    %11 = sbr.rel (0) target = $region9
  $region8: #{_lambda_.15} parent=0 // pred_region
    _
  $region9: #{_lambda_.15} parent=0 // pred_fallthru
    _
  // Predicated region
  $region10: #{_lambda_.15} parent=0 // pred_check
    _
  $region11: #{_lambda_.15} parent=0 // pred_check_branch
    %13 = sbr.rel (0) target = $region13
  $region12: #{_lambda_.15} parent=0 // pred_region
    _
  $region13: #{_lambda_.15} parent=0 // pred_fallthru
    _
  %v15 = vld [vmem:[%s0] sm:$0xf]
  %v16 = vld [vmem:[%s0 + $0x4] sm:$0xf]
  %v17 = vld [vmem:[%s0 + $0x8] sm:$0xf]
  %v18 = vld [vmem:[%s0 + $0xc] sm:$0xf]
  %v19 = vld [vmem:[%s1] sm:$0xf]
  %v20 = vld [vmem:[%s1 + $0x4] sm:$0xf]
  %v21 = vld [vmem:[%s1 + $0x8] sm:$0xf]
  %v22 = vld [vmem:[%s1 + $0xc] sm:$0xf]
  %v23 = vld [vmem:[%s1 + $0x10] sm:$0xf]
  %v24 = vld [vmem:[%s1 + $0x14] sm:$0xf]
  %v25 = vld [vmem:[%s1 + $0x18] sm:$0xf]
  %v26 = vld [vmem:[%s1 + $0x1c] sm:$0xf]
  %v27 = vld [vmem:[%s1 + $0x20] sm:$0xf]
  %v28 = vld [vmem:[%s1 + $0x24] sm:$0xf]
  %v29 = vld [vmem:[%s1 + $0x28] sm:$0xf]
  %v30 = vld [vmem:[%s1 + $0x2c] sm:$0xf]
  %v31 = vld [vmem:[%s1 + $0x30] sm:$0xf]
  %v32 = vld [vmem:[%s1 + $0x34] sm:$0xf]
  %v33 = vld [vmem:[%s1 + $0x38] sm:$0xf]
  %v34 = vld [vmem:[%s1 + $0x3c] sm:$0xf]
  %v35 = vld [vmem:[%s2] sm:$0x1]
  %v37 = vlaneseq
  %v38 = vshrl.u32 %v37, 7
  %v39 = vsub.s32 0, %v38
  %v40 = vrot.slane %v35, %v39
  %v46 = vunpack.c.l.b16 %v15
  %v47 = vunpack.c.l.b16 %v16
  %v48 = vunpack.c.l.b16 %v17
  %v49 = vunpack.c.l.b16 %v18
  %v50 = vpack.c.b16 %v47, %v46
  %v51 = vpack.c.b16 %v49, %v48
  %v70 = vunpack.c.l.b16 %v19
  %v71 = vunpack.c.l.b16 %v20
  %v72 = vunpack.c.l.b16 %v21
  %v73 = vunpack.c.l.b16 %v22
  %v74 = vunpack.c.l.b16 %v23
  %v75 = vunpack.c.l.b16 %v24
  %v76 = vunpack.c.l.b16 %v25
  %v77 = vunpack.c.l.b16 %v26
  %v78 = vunpack.c.l.b16 %v27
  %v79 = vunpack.c.l.b16 %v28
  %v80 = vunpack.c.l.b16 %v29
  %v81 = vunpack.c.l.b16 %v30
  %v82 = vunpack.c.l.b16 %v31
  %v83 = vunpack.c.l.b16 %v32
  %v84 = vunpack.c.l.b16 %v33
  %v85 = vunpack.c.l.b16 %v34
  %v86 = vpack.c.b16 %v71, %v70
  %v87 = vpack.c.b16 %v73, %v72
  %v88 = vpack.c.b16 %v75, %v74
  %v89 = vpack.c.b16 %v77, %v76
  %v90 = vpack.c.b16 %v79, %v78
  %v91 = vpack.c.b16 %v81, %v80
  %v92 = vpack.c.b16 %v83, %v82
  %v93 = vpack.c.b16 %v85, %v84
  %102 = vmatprep.subr.bf16.mxu0 0
  %103 = vmatpush1.bf16.msra.mxu0 %v86
  %104 = vmatprep.subr.bf16.mxu0 0
  %105 = vmatpush1.bf16.msra.mxu0 %v87
  %106 = vmatprep.subr.bf16.mxu0 0
  %107 = vmatpush1.bf16.msra.mxu0 %v88
  %108 = vmatprep.subr.bf16.mxu0 0
  %109 = vmatpush1.bf16.msra.mxu0 %v89
  %110 = vmatprep.subr.bf16.mxu0 0
  %111 = vmatpush1.bf16.msra.mxu0 %v90
  %112 = vmatprep.subr.bf16.mxu0 0
  %113 = vmatpush1.bf16.msra.mxu0 %v91
  %114 = vmatprep.subr.bf16.mxu0 0
  %115 = vmatpush1.bf16.msra.mxu0 %v92
  %116 = vmatprep.subr.bf16.mxu0 0
  %117 = vmatpush1.bf16.msra.mxu0 %v93
  %118 = vmatprep.subr.bf16.mxu0 0
  %119 = vmatpush1.bf16.msra.mxu0 0
  %120 = vmatprep.subr.bf16.mxu0 0
  %121 = vmatpush1.bf16.msra.mxu0 0
  %122 = vmatprep.subr.bf16.mxu0 0
  %123 = vmatpush1.bf16.msra.mxu0 0
  %124 = vmatprep.subr.bf16.mxu0 0
  %125 = vmatpush1.bf16.msra.mxu0 0
  %126 = vmatprep.subr.bf16.mxu0 0
  %127 = vmatpush1.bf16.msra.mxu0 0
  %128 = vmatprep.subr.bf16.mxu0 0
  %129 = vmatpush1.bf16.msra.mxu0 0
  %130 = vmatprep.subr.bf16.mxu0 0
  %131 = vmatpush1.bf16.msra.mxu0 0
  %132 = vmatprep.subr.bf16.mxu0 0
  %133 = vmatpush1.bf16.msra.mxu0 0
  %134 = vmatprep.mubr.bf16.mxu0 0
  %135 = vmatmul.mubr.bf16.gmra.mrb[0].mxu0 %v50
  %v136 = vpop.f32.mrb[0].mxu0
  %v137 = vadd.f32 %v40, %v136
  %v138 = vpop.f32.mrb[0].mxu0
  %v139 = vpop.f32.mrb[0].mxu0
  %v140 = vadd.f32 %v40, %v139
  %v141 = vpop.f32.mrb[0].mxu0
  %142 = vmatprep.mubr.bf16.mxu0 0
  %143 = vmatmul.mubr.bf16.gmra.mrb[0].mxu0 %v51
  %v144 = vpop.f32.mrb[0].mxu0
  %v145 = vadd.f32 %v40, %v144
  %v146 = vpop.f32.mrb[0].mxu0
  %v147 = vpop.f32.mrb[0].mxu0
  %v148 = vadd.f32 %v40, %v147
  %v149 = vpop.f32.mrb[0].mxu0
  %150 = vdwg.mxu0
  %v151 = vpack.c.bf16 %v140, %v137
  %v152 = vpack.c.bf16 %v148, %v145
  %v155 = vunpack.c.l.b16 %v151
  %v156 = vunpack.c.h.b16 %v151
  %v157 = vunpack.c.l.b16 %v152
  %v158 = vunpack.c.h.b16 %v152
  %v159 = vpack.c.b16 %v155, %v155
  %v160 = vpack.c.b16 %v156, %v156
  %v161 = vpack.c.b16 %v157, %v157
  %v162 = vpack.c.b16 %v158, %v158
  %167 = vst [vmem:[%s3] sm:$0xf] %v159
  %168 = vst [vmem:[%s3 + $0x4] sm:$0xf] %v160
  %169 = vst [vmem:[%s3 + $0x8] sm:$0xf] %v161
  %170 = vst [vmem:[%s3 + $0xc] sm:$0xf] %v162
  // Predicated region
  $region14: #{_lambda_.15} parent=0 // pred_check
    _
  $region15: #{_lambda_.15} parent=0 // pred_check_branch
    %172 = sbr.rel (0) target = $region17
  $region16: #{_lambda_.15} parent=0 // pred_region
    _
  $region17: #{_lambda_.15} parent=0 // pred_fallthru
    _
  // Predicated region
  $region18: #{_lambda_.15} parent=0 // pred_check
    _
  $region19: #{_lambda_.15} parent=0 // pred_check_branch
    %174 = sbr.rel (0) target = $region21
  $region20: #{_lambda_.15} parent=0 // pred_region
    _
  $region21: #{_lambda_.15} parent=0 // pred_fallthru
    _

// kernel: _lambda_.18
$region0: #{_lambda_.18}
  #allocation0 [shape = 'u32[]', space=smem, size = 0x4, offset = 0x4, fixed_abs, tag = 'smem constant byte address 0x4 - core index']
  #allocation1 [shape = 'u32[144,128]{1,0:T(1,128)}', space=vmem, size = 0x12000, scoped, tag = 'internal scratch']
  %s0 = inlined_call_operand.vmem [shape: bf16[32,640], index: 0, kind: input, shape index: {}]
  %s1 = inlined_call_operand.vmem [shape: bf16[640,128], index: 1, kind: input, shape index: {}]
  %s2 = inlined_call_operand.vmem [shape: f32[1,128], index: 2, kind: input, shape index: {}]
  %s3 = inlined_call_operand.vmem [shape: bf16[32,128], index: 3, kind: output, shape index: {}]
  %s4 = sld [smem:[#allocation0]]
  $region22: #{_lambda_.18} parent=0
    _
  %s6 = ssub.s32 1, %s4
  %s7 = scalar_select 0, %s6, %s4
  // Predicated region
  $region2: #{_lambda_.18} parent=0 // pred_check
    _
  $region3: #{_lambda_.18} parent=0 // pred_check_branch
    %9 = sbr.rel (0) target = $region5
  $region4: #{_lambda_.18} parent=0 // pred_region
    _
  $region5: #{_lambda_.18} parent=0 // pred_fallthru
    _
  // Predicated region
  $region6: #{_lambda_.18} parent=0 // pred_check
    _
  $region7: #{_lambda_.18} parent=0 // pred_check_branch
    %11 = sbr.rel (0) target = $region9
  $region8: #{_lambda_.18} parent=0 // pred_region
    _
  $region9: #{_lambda_.18} parent=0 // pred_fallthru
    _
  // Predicated region
  $region10: #{_lambda_.18} parent=0 // pred_check
    _
  $region11: #{_lambda_.18} parent=0 // pred_check_branch
    %13 = sbr.rel (0) target = $region13
  $region12: #{_lambda_.18} parent=0 // pred_region
    _
  $region13: #{_lambda_.18} parent=0 // pred_fallthru
    _
  %v15 = vld [vmem:[%s0] sm:$0xff]
  %v16 = vld [vmem:[%s0 + $0x8] sm:$0xff]
  %v17 = vld [vmem:[%s0 + $0x10] sm:$0xf]
  %v18 = vld [vmem:[%s0 + $0x14] sm:$0xff]
  %v19 = vld [vmem:[%s0 + $0x1c] sm:$0xff]
  %v20 = vld [vmem:[%s0 + $0x24] sm:$0xf]
  %v21 = vld [vmem:[%s0 + $0x28] sm:$0xff]
  %v22 = vld [vmem:[%s0 + $0x30] sm:$0xff]
  %v23 = vld [vmem:[%s0 + $0x38] sm:$0xf]
  %v24 = vld [vmem:[%s0 + $0x3c] sm:$0xff]
  %v25 = vld [vmem:[%s0 + $0x44] sm:$0xff]
  %v26 = vld [vmem:[%s0 + $0x4c] sm:$0xf]
  %v27 = vld [vmem:[%s1] sm:$0xf]
  %v28 = vld [vmem:[%s1 + $0x4] sm:$0xf]
  %v29 = vld [vmem:[%s1 + $0x8] sm:$0xf]
  %v30 = vld [vmem:[%s1 + $0xc] sm:$0xf]
  %v31 = vld [vmem:[%s1 + $0x10] sm:$0xf]
  %v32 = vld [vmem:[%s1 + $0x14] sm:$0xf]
  %v33 = vld [vmem:[%s1 + $0x18] sm:$0xf]
  %v34 = vld [vmem:[%s1 + $0x1c] sm:$0xf]
  %v35 = vld [vmem:[%s1 + $0x20] sm:$0xf]
  %v36 = vld [vmem:[%s1 + $0x24] sm:$0xf]
  %v37 = vld [vmem:[%s1 + $0x28] sm:$0xf]
  %v38 = vld [vmem:[%s1 + $0x2c] sm:$0xf]
  %v39 = vld [vmem:[%s1 + $0x30] sm:$0xf]
  %v40 = vld [vmem:[%s1 + $0x34] sm:$0xf]
  %v41 = vld [vmem:[%s1 + $0x38] sm:$0xf]
  %v42 = vld [vmem:[%s1 + $0x3c] sm:$0xf]
  %v43 = vld [vmem:[%s1 + $0x40] sm:$0xf]
  %v44 = vld [vmem:[%s1 + $0x44] sm:$0xf]
  %v45 = vld [vmem:[%s1 + $0x48] sm:$0xf]
  %v46 = vld [vmem:[%s1 + $0x4c] sm:$0xf]
  %v47 = vld [vmem:[%s1 + $0x50] sm:$0xf]
  %v48 = vld [vmem:[%s1 + $0x54] sm:$0xf]
  %v49 = vld [vmem:[%s1 + $0x58] sm:$0xf]
  %v50 = vld [vmem:[%s1 + $0x5c] sm:$0xf]
  %v51 = vld [vmem:[%s1 + $0x60] sm:$0xf]
  %v52 = vld [vmem:[%s1 + $0x64] sm:$0xf]
  %v53 = vld [vmem:[%s1 + $0x68] sm:$0xf]
  %v54 = vld [vmem:[%s1 + $0x6c] sm:$0xf]
  %v55 = vld [vmem:[%s1 + $0x70] sm:$0xf]
  %v56 = vld [vmem:[%s1 + $0x74] sm:$0xf]
  %v57 = vld [vmem:[%s1 + $0x78] sm:$0xf]
  %v58 = vld [vmem:[%s1 + $0x7c] sm:$0xf]
  %v59 = vld [vmem:[%s1 + $0x80] sm:$0xf]
  %v60 = vld [vmem:[%s1 + $0x84] sm:$0xf]
  %v61 = vld [vmem:[%s1 + $0x88] sm:$0xf]
  %v62 = vld [vmem:[%s1 + $0x8c] sm:$0xf]
  %v63 = vld [vmem:[%s1 + $0x90] sm:$0xf]
  %v64 = vld [vmem:[%s1 + $0x94] sm:$0xf]
  %v65 = vld [vmem:[%s1 + $0x98] sm:$0xf]
  %v66 = vld [vmem:[%s1 + $0x9c] sm:$0xf]
  %v67 = vld [vmem:[%s1 + $0xa0] sm:$0xf]
  %v68 = vld [vmem:[%s1 + $0xa4] sm:$0xf]
  %v69 = vld [vmem:[%s1 + $0xa8] sm:$0xf]
  %v70 = vld [vmem:[%s1 + $0xac] sm:$0xf]
  %v71 = vld [vmem:[%s1 + $0xb0] sm:$0xf]
  %v72 = vld [vmem:[%s1 + $0xb4] sm:$0xf]
  %v73 = vld [vmem:[%s1 + $0xb8] sm:$0xf]
  %v74 = vld [vmem:[%s1 + $0xbc] sm:$0xf]
  %v75 = vld [vmem:[%s1 + $0xc0] sm:$0xf]
  %v76 = vld [vmem:[%s1 + $0xc4] sm:$0xf]
  %v77 = vld [vmem:[%s1 + $0xc8] sm:$0xf]
  %v78 = vld [vmem:[%s1 + $0xcc] sm:$0xf]
  %v79 = vld [vmem:[%s1 + $0xd0] sm:$0xf]
  %v80 = vld [vmem:[%s1 + $0xd4] sm:$0xf]
  %v81 = vld [vmem:[%s1 + $0xd8] sm:$0xf]
  %v82 = vld [vmem:[%s1 + $0xdc] sm:$0xf]
  %v83 = vld [vmem:[%s1 + $0xe0] sm:$0xf]
  %v84 = vld [vmem:[%s1 + $0xe4] sm:$0xf]
  %v85 = vld [vmem:[%s1 + $0xe8] sm:$0xf]
  %v86 = vld [vmem:[%s1 + $0xec] sm:$0xf]
  %v87 = vld [vmem:[%s1 + $0xf0] sm:$0xf]
  %v88 = vld [vmem:[%s1 + $0xf4] sm:$0xf]
  %v89 = vld [vmem:[%s1 + $0xf8] sm:$0xf]
  %v90 = vld [vmem:[%s1 + $0xfc] sm:$0xf]
  %v91 = vld [vmem:[%s1 + $0x100] sm:$0xf]
  %v92 = vld [vmem:[%s1 + $0x104] sm:$0xf]
  %v93 = vld [vmem:[%s1 + $0x108] sm:$0xf]
  %v94 = vld [vmem:[%s1 + $0x10c] sm:$0xf]
  %v95 = vld [vmem:[%s1 + $0x110] sm:$0xf]
  %v96 = vld [vmem:[%s1 + $0x114] sm:$0xf]
  %v97 = vld [vmem:[%s1 + $0x118] sm:$0xf]
  %v98 = vld [vmem:[%s1 + $0x11c] sm:$0xf]
  %v99 = vld [vmem:[%s1 + $0x120] sm:$0xf]
  %v100 = vld [vmem:[%s1 + $0x124] sm:$0xf]
  %v101 = vld [vmem:[%s1 + $0x128] sm:$0xf]
  %v102 = vld [vmem:[%s1 + $0x12c] sm:$0xf]
  %v103 = vld [vmem:[%s1 + $0x130] sm:$0xf]
  %v104 = vld [vmem:[%s1 + $0x134] sm:$0xf]
  %v105 = vld [vmem:[%s1 + $0x138] sm:$0xf]
  %v106 = vld [vmem:[%s1 + $0x13c] sm:$0xf]
  %v107 = vld [vmem:[%s2] sm:$0x1]
  %v109 = vlaneseq
  %v110 = vshrl.u32 %v109, 7
  %v111 = vsub.s32 0, %v110
  %v112 = vrot.slane %v107, %v111
  %v126 = vunpack.c.l.b16 %v15
  %v127 = vunpack.c.h.b16 %v15
  %v128 = vunpack.c.l.b16 %v16
  %v129 = vunpack.c.h.b16 %v16
  %v130 = vunpack.c.l.b16 %v17
  %v131 = vunpack.c.l.b16 %v18
  %v132 = vunpack.c.h.b16 %v18
  %v133 = vunpack.c.l.b16 %v19
  %v134 = vunpack.c.h.b16 %v19
  %v135 = vunpack.c.l.b16 %v20
  %v136 = vunpack.c.l.b16 %v21
  %v137 = vunpack.c.h.b16 %v21
  %v138 = vunpack.c.l.b16 %v22
  %v139 = vunpack.c.h.b16 %v22
  %v140 = vunpack.c.l.b16 %v23
  %v141 = vunpack.c.l.b16 %v24
  %v142 = vunpack.c.h.b16 %v24
  %v143 = vunpack.c.l.b16 %v25
  %v144 = vunpack.c.h.b16 %v25
  %v145 = vunpack.c.l.b16 %v26
  %v146 = vpack.c.b16 %v131, %v126
  %v147 = vpack.c.b16 %v132, %v127
  %v148 = vpack.c.b16 %v133, %v128
  %v149 = vpack.c.b16 %v134, %v129
  %v150 = vpack.c.b16 %v135, %v130
  %v151 = vpack.c.b16 %v141, %v136
  %v152 = vpack.c.b16 %v142, %v137
  %v153 = vpack.c.b16 %v143, %v138
  %v154 = vpack.c.b16 %v144, %v139
  %v155 = vpack.c.b16 %v145, %v140
  %v246 = vunpack.c.l.b16 %v27
  %v247 = vunpack.c.l.b16 %v28
  %v248 = vunpack.c.l.b16 %v29
  %v249 = vunpack.c.l.b16 %v30
  %v250 = vunpack.c.l.b16 %v31
  %v251 = vunpack.c.l.b16 %v32
  %v252 = vunpack.c.l.b16 %v33
  %v253 = vunpack.c.l.b16 %v34
  %v254 = vunpack.c.l.b16 %v35
  %v255 = vunpack.c.l.b16 %v36
  %v256 = vunpack.c.l.b16 %v37
  %v257 = vunpack.c.l.b16 %v38
  %v258 = vunpack.c.l.b16 %v39
  %v259 = vunpack.c.l.b16 %v40
  %v260 = vunpack.c.l.b16 %v41
  %v261 = vunpack.c.l.b16 %v42
  %v262 = vunpack.c.l.b16 %v43
  %v263 = vunpack.c.l.b16 %v44
  %v264 = vunpack.c.l.b16 %v45
  %v265 = vunpack.c.l.b16 %v46
  %v266 = vunpack.c.l.b16 %v47
  %v267 = vunpack.c.l.b16 %v48
  %v268 = vunpack.c.l.b16 %v49
  %v269 = vunpack.c.l.b16 %v50
  %v270 = vunpack.c.l.b16 %v51
  %v271 = vunpack.c.l.b16 %v52
  %v272 = vunpack.c.l.b16 %v53
  %v273 = vunpack.c.l.b16 %v54
  %v274 = vunpack.c.l.b16 %v55
  %v275 = vunpack.c.l.b16 %v56
  %v276 = vunpack.c.l.b16 %v57
  %v277 = vunpack.c.l.b16 %v58
  %v278 = vunpack.c.l.b16 %v59
  %v279 = vunpack.c.l.b16 %v60
  %v280 = vunpack.c.l.b16 %v61
  %v281 = vunpack.c.l.b16 %v62
  %v282 = vunpack.c.l.b16 %v63
  %v283 = vunpack.c.l.b16 %v64
  %v284 = vunpack.c.l.b16 %v65
  %v285 = vunpack.c.l.b16 %v66
  %v286 = vunpack.c.l.b16 %v67
  %v287 = vunpack.c.l.b16 %v68
  %v288 = vunpack.c.l.b16 %v69
  %v289 = vunpack.c.l.b16 %v70
  %v290 = vunpack.c.l.b16 %v71
  %v291 = vunpack.c.l.b16 %v72
  %v292 = vunpack.c.l.b16 %v73
  %v293 = vunpack.c.l.b16 %v74
  %v294 = vunpack.c.l.b16 %v75
  %v295 = vunpack.c.l.b16 %v76
  %v296 = vunpack.c.l.b16 %v77
  %v297 = vunpack.c.l.b16 %v78
  %v298 = vunpack.c.l.b16 %v79
  %v299 = vunpack.c.l.b16 %v80
  %v300 = vunpack.c.l.b16 %v81
  %v301 = vunpack.c.l.b16 %v82
  %v302 = vunpack.c.l.b16 %v83
  %v303 = vunpack.c.l.b16 %v84
  %v304 = vunpack.c.l.b16 %v85
  %v305 = vunpack.c.l.b16 %v86
  %v306 = vunpack.c.l.b16 %v87
  %v307 = vunpack.c.l.b16 %v88
  %v308 = vunpack.c.l.b16 %v89
  %v309 = vunpack.c.l.b16 %v90
  %v310 = vunpack.c.l.b16 %v91
  %v311 = vunpack.c.l.b16 %v92
  %v312 = vunpack.c.l.b16 %v93
  %v313 = vunpack.c.l.b16 %v94
  %v314 = vunpack.c.l.b16 %v95
  %v315 = vunpack.c.l.b16 %v96
  %v316 = vunpack.c.l.b16 %v97
  %v317 = vunpack.c.l.b16 %v98
  %v318 = vunpack.c.l.b16 %v99
  %v319 = vunpack.c.l.b16 %v100
  %v320 = vunpack.c.l.b16 %v101
  %v321 = vunpack.c.l.b16 %v102
  %v322 = vunpack.c.l.b16 %v103
  %v323 = vunpack.c.l.b16 %v104
  %v324 = vunpack.c.l.b16 %v105
  %v325 = vunpack.c.l.b16 %v106
  %v326 = vpack.c.b16 %v247, %v246
  %v327 = vpack.c.b16 %v249, %v248
  %v328 = vpack.c.b16 %v251, %v250
  %v329 = vpack.c.b16 %v253, %v252
  %v330 = vpack.c.b16 %v255, %v254
  %v331 = vpack.c.b16 %v257, %v256
  %v332 = vpack.c.b16 %v259, %v258
  %v333 = vpack.c.b16 %v261, %v260
  %v334 = vpack.c.b16 %v263, %v262
  %v335 = vpack.c.b16 %v265, %v264
  %v336 = vpack.c.b16 %v267, %v266
  %v337 = vpack.c.b16 %v269, %v268
  %v338 = vpack.c.b16 %v271, %v270
  %v339 = vpack.c.b16 %v273, %v272
  %v340 = vpack.c.b16 %v275, %v274
  %v341 = vpack.c.b16 %v277, %v276
  %v342 = vpack.c.b16 %v279, %v278
  %v343 = vpack.c.b16 %v281, %v280
  %v344 = vpack.c.b16 %v283, %v282
  %v345 = vpack.c.b16 %v285, %v284
  %v346 = vpack.c.b16 %v287, %v286
  %v347 = vpack.c.b16 %v289, %v288
  %v348 = vpack.c.b16 %v291, %v290
  %v349 = vpack.c.b16 %v293, %v292
  %v350 = vpack.c.b16 %v295, %v294
  %v351 = vpack.c.b16 %v297, %v296
  %v352 = vpack.c.b16 %v299, %v298
  %v353 = vpack.c.b16 %v301, %v300
  %v354 = vpack.c.b16 %v303, %v302
  %v355 = vpack.c.b16 %v305, %v304
  %v356 = vpack.c.b16 %v307, %v306
  %v357 = vpack.c.b16 %v309, %v308
  %v358 = vpack.c.b16 %v311, %v310
  %v359 = vpack.c.b16 %v313, %v312
  %v360 = vpack.c.b16 %v315, %v314
  %v361 = vpack.c.b16 %v317, %v316
  %v362 = vpack.c.b16 %v319, %v318
  %v363 = vpack.c.b16 %v321, %v320
  %v364 = vpack.c.b16 %v323, %v322
  %v365 = vpack.c.b16 %v325, %v324
  %406 = vmatprep.subr.bf16.mxu0 0
  %407 = vmatpush1.bf16.msra.mxu0 %v326
  %408 = vmatprep.subr.bf16.mxu0 0
  %409 = vmatpush1.bf16.msra.mxu0 %v327
  %410 = vmatprep.subr.bf16.mxu0 0
  %411 = vmatpush1.bf16.msra.mxu0 %v328
  %412 = vmatprep.subr.bf16.mxu0 0
  %413 = vmatpush1.bf16.msra.mxu0 %v329
  %414 = vmatprep.subr.bf16.mxu0 0
  %415 = vmatpush1.bf16.msra.mxu0 %v330
  %416 = vmatprep.subr.bf16.mxu0 0
  %417 = vmatpush1.bf16.msra.mxu0 %v331
  %418 = vmatprep.subr.bf16.mxu0 0
  %419 = vmatpush1.bf16.msra.mxu0 %v332
  %420 = vmatprep.subr.bf16.mxu0 0
  %421 = vmatpush1.bf16.msra.mxu0 %v333
  %422 = vmatprep.subr.bf16.mxu0 0
  %423 = vmatpush1.bf16.msra.mxu0 %v334
  %424 = vmatprep.subr.bf16.mxu0 0
  %425 = vmatpush1.bf16.msra.mxu0 %v335
  %426 = vmatprep.subr.bf16.mxu0 0
  %427 = vmatpush1.bf16.msra.mxu0 %v336
  %428 = vmatprep.subr.bf16.mxu0 0
  %429 = vmatpush1.bf16.msra.mxu0 %v337
  %430 = vmatprep.subr.bf16.mxu0 0
  %431 = vmatpush1.bf16.msra.mxu0 %v338
  %432 = vmatprep.subr.bf16.mxu0 0
  %433 = vmatpush1.bf16.msra.mxu0 %v339
  %434 = vmatprep.subr.bf16.mxu0 0
  %435 = vmatpush1.bf16.msra.mxu0 %v340
  %436 = vmatprep.subr.bf16.mxu0 0
  %437 = vmatpush1.bf16.msra.mxu0 %v341
  %438 = vmatprep.mubr.bf16.mxu0 %v147
  %439 = vmatmul.mubr.bf16.gmra.mrb[0].mxu0 %v146
  %v440 = vpop.f32.mrb[0].mxu0
  %v441 = vadd.f32 %v112, %v440
  %v442 = vpop.f32.mrb[0].mxu0
  %v443 = vpop.f32.mrb[0].mxu0
  %v444 = vadd.f32 %v112, %v443
  %v445 = vpop.f32.mrb[0].mxu0
  %446 = vmatprep.mubr.bf16.mxu0 %v152
  %447 = vmatmul.mubr.bf16.gmra.mrb[0].mxu0 %v151
  %v448 = vpop.f32.mrb[0].mxu0
  %v449 = vadd.f32 %v112, %v448
  %v450 = vpop.f32.mrb[0].mxu0
  %v451 = vpop.f32.mrb[0].mxu0
  %v452 = vadd.f32 %v112, %v451
  %v453 = vpop.f32.mrb[0].mxu0
  %454 = vdwg.mxu0
  %455 = vmatprep.subr.bf16.mxu0 0
  %456 = vmatpush1.bf16.msra.mxu0 %v342
  %457 = vmatprep.subr.bf16.mxu0 0
  %458 = vmatpush1.bf16.msra.mxu0 %v343
  %459 = vmatprep.subr.bf16.mxu0 0
  %460 = vmatpush1.bf16.msra.mxu0 %v344
  %461 = vmatprep.subr.bf16.mxu0 0
  %462 = vmatpush1.bf16.msra.mxu0 %v345
  %463 = vmatprep.subr.bf16.mxu0 0
  %464 = vmatpush1.bf16.msra.mxu0 %v346
  %465 = vmatprep.subr.bf16.mxu0 0
  %466 = vmatpush1.bf16.msra.mxu0 %v347
  %467 = vmatprep.subr.bf16.mxu0 0
  %468 = vmatpush1.bf16.msra.mxu0 %v348
  %469 = vmatprep.subr.bf16.mxu0 0
  %470 = vmatpush1.bf16.msra.mxu0 %v349
  %471 = vmatprep.subr.bf16.mxu0 0
  %472 = vmatpush1.bf16.msra.mxu0 %v350
  %473 = vmatprep.subr.bf16.mxu0 0
  %474 = vmatpush1.bf16.msra.mxu0 %v351
  %475 = vmatprep.subr.bf16.mxu0 0
  %476 = vmatpush1.bf16.msra.mxu0 %v352
  %477 = vmatprep.subr.bf16.mxu0 0
  %478 = vmatpush1.bf16.msra.mxu0 %v353
  %479 = vmatprep.subr.bf16.mxu0 0
  %480 = vmatpush1.bf16.msra.mxu0 %v354
  %481 = vmatprep.subr.bf16.mxu0 0
  %482 = vmatpush1.bf16.msra.mxu0 %v355
  %483 = vmatprep.subr.bf16.mxu0 0
  %484 = vmatpush1.bf16.msra.mxu0 %v356
  %485 = vmatprep.subr.bf16.mxu0 0
  %486 = vmatpush1.bf16.msra.mxu0 %v357
  %487 = vmatprep.mubr.bf16.mxu0 %v149
  %488 = vmatmul.mubr.bf16.gmra.mrb[0].mxu0 %v148
  %v489 = vpop.f32.mrb[0].mxu0
  %v490 = vadd.f32 %v441, %v489
  %v491 = vpop.f32.mrb[0].mxu0
  %v492 = vpop.f32.mrb[0].mxu0
  %v493 = vadd.f32 %v444, %v492
  %v494 = vpop.f32.mrb[0].mxu0
  %495 = vmatprep.mubr.bf16.mxu0 %v154
  %496 = vmatmul.mubr.bf16.gmra.mrb[0].mxu0 %v153
  %v497 = vpop.f32.mrb[0].mxu0
  %v498 = vadd.f32 %v449, %v497
  %v499 = vpop.f32.mrb[0].mxu0
  %v500 = vpop.f32.mrb[0].mxu0
  %v501 = vadd.f32 %v452, %v500
  %v502 = vpop.f32.mrb[0].mxu0
  %503 = vdwg.mxu0
  %504 = vmatprep.subr.bf16.mxu0 0
  %505 = vmatpush1.bf16.msra.mxu0 %v358
  %506 = vmatprep.subr.bf16.mxu0 0
  %507 = vmatpush1.bf16.msra.mxu0 %v359
  %508 = vmatprep.subr.bf16.mxu0 0
  %509 = vmatpush1.bf16.msra.mxu0 %v360
  %510 = vmatprep.subr.bf16.mxu0 0
  %511 = vmatpush1.bf16.msra.mxu0 %v361
  %512 = vmatprep.subr.bf16.mxu0 0
  %513 = vmatpush1.bf16.msra.mxu0 %v362
  %514 = vmatprep.subr.bf16.mxu0 0
  %515 = vmatpush1.bf16.msra.mxu0 %v363
  %516 = vmatprep.subr.bf16.mxu0 0
  %517 = vmatpush1.bf16.msra.mxu0 %v364
  %518 = vmatprep.subr.bf16.mxu0 0
  %519 = vmatpush1.bf16.msra.mxu0 %v365
  %520 = vmatprep.subr.bf16.mxu0 0
  %521 = vmatpush1.bf16.msra.mxu0 0
  %522 = vmatprep.subr.bf16.mxu0 0
  %523 = vmatpush1.bf16.msra.mxu0 0
  %524 = vmatprep.subr.bf16.mxu0 0
  %525 = vmatpush1.bf16.msra.mxu0 0
  %526 = vmatprep.subr.bf16.mxu0 0
  %527 = vmatpush1.bf16.msra.mxu0 0
  %528 = vmatprep.subr.bf16.mxu0 0
  %529 = vmatpush1.bf16.msra.mxu0 0
  %530 = vmatprep.subr.bf16.mxu0 0
  %531 = vmatpush1.bf16.msra.mxu0 0
  %532 = vmatprep.subr.bf16.mxu0 0
  %533 = vmatpush1.bf16.msra.mxu0 0
  %534 = vmatprep.subr.bf16.mxu0 0
  %535 = vmatpush1.bf16.msra.mxu0 0
  %536 = vmatprep.mubr.bf16.mxu0 0
  %537 = vmatmul.mubr.bf16.gmra.mrb[0].mxu0 %v150
  %v538 = vpop.f32.mrb[0].mxu0
  %v539 = vadd.f32 %v490, %v538
  %v540 = vpop.f32.mrb[0].mxu0
  %v541 = vpop.f32.mrb[0].mxu0
  %v542 = vadd.f32 %v493, %v541
  %v543 = vpop.f32.mrb[0].mxu0
  %544 = vmatprep.mubr.bf16.mxu0 0
  %545 = vmatmul.mubr.bf16.gmra.mrb[0].mxu0 %v155
  %v546 = vpop.f32.mrb[0].mxu0
  %v547 = vadd.f32 %v498, %v546
  %v548 = vpop.f32.mrb[0].mxu0
  %v549 = vpop.f32.mrb[0].mxu0
  %v550 = vadd.f32 %v501, %v549
  %v551 = vpop.f32.mrb[0].mxu0
  %552 = vdwg.mxu0
  %v553 = vmax.f32 %v539, 0.0
  %v554 = vmax.f32 %v542, 0.0
  %v555 = vmax.f32 %v547, 0.0
  %v556 = vmax.f32 %v550, 0.0
  %v557 = vpack.c.bf16 %v554, %v553
  %v558 = vpack.c.bf16 %v556, %v555
  %v561 = vunpack.c.l.b16 %v557
  %v562 = vunpack.c.h.b16 %v557
  %v563 = vunpack.c.l.b16 %v558
  %v564 = vunpack.c.h.b16 %v558
  %v565 = vpack.c.b16 %v561, %v561
  %v566 = vpack.c.b16 %v562, %v562
  %v567 = vpack.c.b16 %v563, %v563
  %v568 = vpack.c.b16 %v564, %v564
  %573 = vst [vmem:[%s3] sm:$0xf] %v565
  %574 = vst [vmem:[%s3 + $0x4] sm:$0xf] %v566
  %575 = vst [vmem:[%s3 + $0x8] sm:$0xf] %v567
  %576 = vst [vmem:[%s3 + $0xc] sm:$0xf] %v568
  // Predicated region
  $region14: #{_lambda_.18} parent=0 // pred_check
    _
  $region15: #{_lambda_.18} parent=0 // pred_check_branch
    %578 = sbr.rel (0) target = $region17
  $region16: #{_lambda_.18} parent=0 // pred_region
    _
  $region17: #{_lambda_.18} parent=0 // pred_fallthru
    _
  // Predicated region
  $region18: #{_lambda_.18} parent=0 // pred_check
    _
  $region19: #{_lambda_.18} parent=0 // pred_check_branch
    %580 = sbr.rel (0) target = $region21
  $region20: #{_lambda_.18} parent=0 // pred_region
    _
  $region21: #{_lambda_.18} parent=0 // pred_fallthru
    _

// kernel: _lambda_.17
$region0: #{_lambda_.17}
  #allocation0 [shape = 'u32[]', space=smem, size = 0x4, offset = 0x4, fixed_abs, tag = 'smem constant byte address 0x4 - core index']
  #allocation1 [shape = 'u32[144,128]{1,0:T(1,128)}', space=vmem, size = 0x12000, scoped, tag = 'internal scratch']
  %s0 = inlined_call_operand.vmem [shape: bf16[32,640], index: 0, kind: input, shape index: {}]
  %s1 = inlined_call_operand.vmem [shape: bf16[640,128], index: 1, kind: input, shape index: {}]
  %s2 = inlined_call_operand.vmem [shape: f32[1,128], index: 2, kind: input, shape index: {}]
  %s3 = inlined_call_operand.vmem [shape: bf16[32,128], index: 3, kind: input, shape index: {}]
  %s4 = inlined_call_operand.vmem [shape: bf16[32,128], index: 4, kind: output, shape index: {}]
  %s5 = sld [smem:[#allocation0]]
  $region26: #{_lambda_.17} parent=0
    _
  %s7 = ssub.s32 1, %s5
  %s8 = scalar_select 0, %s7, %s5
  // Predicated region
  $region2: #{_lambda_.17} parent=0 // pred_check
    _
  $region3: #{_lambda_.17} parent=0 // pred_check_branch
    %10 = sbr.rel (0) target = $region5
  $region4: #{_lambda_.17} parent=0 // pred_region
    _
  $region5: #{_lambda_.17} parent=0 // pred_fallthru
    _
  // Predicated region
  $region6: #{_lambda_.17} parent=0 // pred_check
    _
  $region7: #{_lambda_.17} parent=0 // pred_check_branch
    %12 = sbr.rel (0) target = $region9
  $region8: #{_lambda_.17} parent=0 // pred_region
    _
  $region9: #{_lambda_.17} parent=0 // pred_fallthru
    _
  // Predicated region
  $region10: #{_lambda_.17} parent=0 // pred_check
    _
  $region11: #{_lambda_.17} parent=0 // pred_check_branch
    %14 = sbr.rel (0) target = $region13
  $region12: #{_lambda_.17} parent=0 // pred_region
    _
  $region13: #{_lambda_.17} parent=0 // pred_fallthru
    _
  // Predicated region
  $region14: #{_lambda_.17} parent=0 // pred_check
    _
  $region15: #{_lambda_.17} parent=0 // pred_check_branch
    %16 = sbr.rel (0) target = $region17
  $region16: #{_lambda_.17} parent=0 // pred_region
    _
  $region17: #{_lambda_.17} parent=0 // pred_fallthru
    _
  %v18 = vld [vmem:[%s0] sm:$0xff]
  %v19 = vld [vmem:[%s0 + $0x8] sm:$0xff]
  %v20 = vld [vmem:[%s0 + $0x10] sm:$0xf]
  %v21 = vld [vmem:[%s0 + $0x14] sm:$0xff]
  %v22 = vld [vmem:[%s0 + $0x1c] sm:$0xff]
  %v23 = vld [vmem:[%s0 + $0x24] sm:$0xf]
  %v24 = vld [vmem:[%s0 + $0x28] sm:$0xff]
  %v25 = vld [vmem:[%s0 + $0x30] sm:$0xff]
  %v26 = vld [vmem:[%s0 + $0x38] sm:$0xf]
  %v27 = vld [vmem:[%s0 + $0x3c] sm:$0xff]
  %v28 = vld [vmem:[%s0 + $0x44] sm:$0xff]
  %v29 = vld [vmem:[%s0 + $0x4c] sm:$0xf]
  %v30 = vld [vmem:[%s1] sm:$0xf]
  %v31 = vld [vmem:[%s1 + $0x4] sm:$0xf]
  %v32 = vld [vmem:[%s1 + $0x8] sm:$0xf]
  %v33 = vld [vmem:[%s1 + $0xc] sm:$0xf]
  %v34 = vld [vmem:[%s1 + $0x10] sm:$0xf]
  %v35 = vld [vmem:[%s1 + $0x14] sm:$0xf]
  %v36 = vld [vmem:[%s1 + $0x18] sm:$0xf]
  %v37 = vld [vmem:[%s1 + $0x1c] sm:$0xf]
  %v38 = vld [vmem:[%s1 + $0x20] sm:$0xf]
  %v39 = vld [vmem:[%s1 + $0x24] sm:$0xf]
  %v40 = vld [vmem:[%s1 + $0x28] sm:$0xf]
  %v41 = vld [vmem:[%s1 + $0x2c] sm:$0xf]
  %v42 = vld [vmem:[%s1 + $0x30] sm:$0xf]
  %v43 = vld [vmem:[%s1 + $0x34] sm:$0xf]
  %v44 = vld [vmem:[%s1 + $0x38] sm:$0xf]
  %v45 = vld [vmem:[%s1 + $0x3c] sm:$0xf]
  %v46 = vld [vmem:[%s1 + $0x40] sm:$0xf]
  %v47 = vld [vmem:[%s1 + $0x44] sm:$0xf]
  %v48 = vld [vmem:[%s1 + $0x48] sm:$0xf]
  %v49 = vld [vmem:[%s1 + $0x4c] sm:$0xf]
  %v50 = vld [vmem:[%s1 + $0x50] sm:$0xf]
  %v51 = vld [vmem:[%s1 + $0x54] sm:$0xf]
  %v52 = vld [vmem:[%s1 + $0x58] sm:$0xf]
  %v53 = vld [vmem:[%s1 + $0x5c] sm:$0xf]
  %v54 = vld [vmem:[%s1 + $0x60] sm:$0xf]
  %v55 = vld [vmem:[%s1 + $0x64] sm:$0xf]
  %v56 = vld [vmem:[%s1 + $0x68] sm:$0xf]
  %v57 = vld [vmem:[%s1 + $0x6c] sm:$0xf]
  %v58 = vld [vmem:[%s1 + $0x70] sm:$0xf]
  %v59 = vld [vmem:[%s1 + $0x74] sm:$0xf]
  %v60 = vld [vmem:[%s1 + $0x78] sm:$0xf]
  %v61 = vld [vmem:[%s1 + $0x7c] sm:$0xf]
  %v62 = vld [vmem:[%s1 + $0x80] sm:$0xf]
  %v63 = vld [vmem:[%s1 + $0x84] sm:$0xf]
  %v64 = vld [vmem:[%s1 + $0x88] sm:$0xf]
  %v65 = vld [vmem:[%s1 + $0x8c] sm:$0xf]
  %v66 = vld [vmem:[%s1 + $0x90] sm:$0xf]
  %v67 = vld [vmem:[%s1 + $0x94] sm:$0xf]
  %v68 = vld [vmem:[%s1 + $0x98] sm:$0xf]
  %v69 = vld [vmem:[%s1 + $0x9c] sm:$0xf]
  %v70 = vld [vmem:[%s1 + $0xa0] sm:$0xf]
  %v71 = vld [vmem:[%s1 + $0xa4] sm:$0xf]
  %v72 = vld [vmem:[%s1 + $0xa8] sm:$0xf]
  %v73 = vld [vmem:[%s1 + $0xac] sm:$0xf]
  %v74 = vld [vmem:[%s1 + $0xb0] sm:$0xf]
  %v75 = vld [vmem:[%s1 + $0xb4] sm:$0xf]
  %v76 = vld [vmem:[%s1 + $0xb8] sm:$0xf]
  %v77 = vld [vmem:[%s1 + $0xbc] sm:$0xf]
  %v78 = vld [vmem:[%s1 + $0xc0] sm:$0xf]
  %v79 = vld [vmem:[%s1 + $0xc4] sm:$0xf]
  %v80 = vld [vmem:[%s1 + $0xc8] sm:$0xf]
  %v81 = vld [vmem:[%s1 + $0xcc] sm:$0xf]
  %v82 = vld [vmem:[%s1 + $0xd0] sm:$0xf]
  %v83 = vld [vmem:[%s1 + $0xd4] sm:$0xf]
  %v84 = vld [vmem:[%s1 + $0xd8] sm:$0xf]
  %v85 = vld [vmem:[%s1 + $0xdc] sm:$0xf]
  %v86 = vld [vmem:[%s1 + $0xe0] sm:$0xf]
  %v87 = vld [vmem:[%s1 + $0xe4] sm:$0xf]
  %v88 = vld [vmem:[%s1 + $0xe8] sm:$0xf]
  %v89 = vld [vmem:[%s1 + $0xec] sm:$0xf]
  %v90 = vld [vmem:[%s1 + $0xf0] sm:$0xf]
  %v91 = vld [vmem:[%s1 + $0xf4] sm:$0xf]
  %v92 = vld [vmem:[%s1 + $0xf8] sm:$0xf]
  %v93 = vld [vmem:[%s1 + $0xfc] sm:$0xf]
  %v94 = vld [vmem:[%s1 + $0x100] sm:$0xf]
  %v95 = vld [vmem:[%s1 + $0x104] sm:$0xf]
  %v96 = vld [vmem:[%s1 + $0x108] sm:$0xf]
  %v97 = vld [vmem:[%s1 + $0x10c] sm:$0xf]
  %v98 = vld [vmem:[%s1 + $0x110] sm:$0xf]
  %v99 = vld [vmem:[%s1 + $0x114] sm:$0xf]
  %v100 = vld [vmem:[%s1 + $0x118] sm:$0xf]
  %v101 = vld [vmem:[%s1 + $0x11c] sm:$0xf]
  %v102 = vld [vmem:[%s1 + $0x120] sm:$0xf]
  %v103 = vld [vmem:[%s1 + $0x124] sm:$0xf]
  %v104 = vld [vmem:[%s1 + $0x128] sm:$0xf]
  %v105 = vld [vmem:[%s1 + $0x12c] sm:$0xf]
  %v106 = vld [vmem:[%s1 + $0x130] sm:$0xf]
  %v107 = vld [vmem:[%s1 + $0x134] sm:$0xf]
  %v108 = vld [vmem:[%s1 + $0x138] sm:$0xf]
  %v109 = vld [vmem:[%s1 + $0x13c] sm:$0xf]
  %v110 = vld [vmem:[%s2] sm:$0x1]
  %v112 = vlaneseq
  %v113 = vshrl.u32 %v112, 7
  %v114 = vsub.s32 0, %v113
  %v115 = vrot.slane %v110, %v114
  %v129 = vunpack.c.l.b16 %v18
  %v130 = vunpack.c.h.b16 %v18
  %v131 = vunpack.c.l.b16 %v19
  %v132 = vunpack.c.h.b16 %v19
  %v133 = vunpack.c.l.b16 %v20
  %v134 = vunpack.c.l.b16 %v21
  %v135 = vunpack.c.h.b16 %v21
  %v136 = vunpack.c.l.b16 %v22
  %v137 = vunpack.c.h.b16 %v22
  %v138 = vunpack.c.l.b16 %v23
  %v139 = vunpack.c.l.b16 %v24
  %v140 = vunpack.c.h.b16 %v24
  %v141 = vunpack.c.l.b16 %v25
  %v142 = vunpack.c.h.b16 %v25
  %v143 = vunpack.c.l.b16 %v26
  %v144 = vunpack.c.l.b16 %v27
  %v145 = vunpack.c.h.b16 %v27
  %v146 = vunpack.c.l.b16 %v28
  %v147 = vunpack.c.h.b16 %v28
  %v148 = vunpack.c.l.b16 %v29
  %v149 = vpack.c.b16 %v134, %v129
  %v150 = vpack.c.b16 %v135, %v130
  %v151 = vpack.c.b16 %v136, %v131
  %v152 = vpack.c.b16 %v137, %v132
  %v153 = vpack.c.b16 %v138, %v133
  %v154 = vpack.c.b16 %v144, %v139
  %v155 = vpack.c.b16 %v145, %v140
  %v156 = vpack.c.b16 %v146, %v141
  %v157 = vpack.c.b16 %v147, %v142
  %v158 = vpack.c.b16 %v148, %v143
  %v249 = vunpack.c.l.b16 %v30
  %v250 = vunpack.c.l.b16 %v31
  %v251 = vunpack.c.l.b16 %v32
  %v252 = vunpack.c.l.b16 %v33
  %v253 = vunpack.c.l.b16 %v34
  %v254 = vunpack.c.l.b16 %v35
  %v255 = vunpack.c.l.b16 %v36
  %v256 = vunpack.c.l.b16 %v37
  %v257 = vunpack.c.l.b16 %v38
  %v258 = vunpack.c.l.b16 %v39
  %v259 = vunpack.c.l.b16 %v40
  %v260 = vunpack.c.l.b16 %v41
  %v261 = vunpack.c.l.b16 %v42
  %v262 = vunpack.c.l.b16 %v43
  %v263 = vunpack.c.l.b16 %v44
  %v264 = vunpack.c.l.b16 %v45
  %v265 = vunpack.c.l.b16 %v46
  %v266 = vunpack.c.l.b16 %v47
  %v267 = vunpack.c.l.b16 %v48
  %v268 = vunpack.c.l.b16 %v49
  %v269 = vunpack.c.l.b16 %v50
  %v270 = vunpack.c.l.b16 %v51
  %v271 = vunpack.c.l.b16 %v52
  %v272 = vunpack.c.l.b16 %v53
  %v273 = vunpack.c.l.b16 %v54
  %v274 = vunpack.c.l.b16 %v55
  %v275 = vunpack.c.l.b16 %v56
  %v276 = vunpack.c.l.b16 %v57
  %v277 = vunpack.c.l.b16 %v58
  %v278 = vunpack.c.l.b16 %v59
  %v279 = vunpack.c.l.b16 %v60
  %v280 = vunpack.c.l.b16 %v61
  %v281 = vunpack.c.l.b16 %v62
  %v282 = vunpack.c.l.b16 %v63
  %v283 = vunpack.c.l.b16 %v64
  %v284 = vunpack.c.l.b16 %v65
  %v285 = vunpack.c.l.b16 %v66
  %v286 = vunpack.c.l.b16 %v67
  %v287 = vunpack.c.l.b16 %v68
  %v288 = vunpack.c.l.b16 %v69
  %v289 = vunpack.c.l.b16 %v70
  %v290 = vunpack.c.l.b16 %v71
  %v291 = vunpack.c.l.b16 %v72
  %v292 = vunpack.c.l.b16 %v73
  %v293 = vunpack.c.l.b16 %v74
  %v294 = vunpack.c.l.b16 %v75
  %v295 = vunpack.c.l.b16 %v76
  %v296 = vunpack.c.l.b16 %v77
  %v297 = vunpack.c.l.b16 %v78
  %v298 = vunpack.c.l.b16 %v79
  %v299 = vunpack.c.l.b16 %v80
  %v300 = vunpack.c.l.b16 %v81
  %v301 = vunpack.c.l.b16 %v82
  %v302 = vunpack.c.l.b16 %v83
  %v303 = vunpack.c.l.b16 %v84
  %v304 = vunpack.c.l.b16 %v85
  %v305 = vunpack.c.l.b16 %v86
  %v306 = vunpack.c.l.b16 %v87
  %v307 = vunpack.c.l.b16 %v88
  %v308 = vunpack.c.l.b16 %v89
  %v309 = vunpack.c.l.b16 %v90
  %v310 = vunpack.c.l.b16 %v91
  %v311 = vunpack.c.l.b16 %v92
  %v312 = vunpack.c.l.b16 %v93
  %v313 = vunpack.c.l.b16 %v94
  %v314 = vunpack.c.l.b16 %v95
  %v315 = vunpack.c.l.b16 %v96
  %v316 = vunpack.c.l.b16 %v97
  %v317 = vunpack.c.l.b16 %v98
  %v318 = vunpack.c.l.b16 %v99
  %v319 = vunpack.c.l.b16 %v100
  %v320 = vunpack.c.l.b16 %v101
  %v321 = vunpack.c.l.b16 %v102
  %v322 = vunpack.c.l.b16 %v103
  %v323 = vunpack.c.l.b16 %v104
  %v324 = vunpack.c.l.b16 %v105
  %v325 = vunpack.c.l.b16 %v106
  %v326 = vunpack.c.l.b16 %v107
  %v327 = vunpack.c.l.b16 %v108
  %v328 = vunpack.c.l.b16 %v109
  %v329 = vpack.c.b16 %v250, %v249
  %v330 = vpack.c.b16 %v252, %v251
  %v331 = vpack.c.b16 %v254, %v253
  %v332 = vpack.c.b16 %v256, %v255
  %v333 = vpack.c.b16 %v258, %v257
  %v334 = vpack.c.b16 %v260, %v259
  %v335 = vpack.c.b16 %v262, %v261
  %v336 = vpack.c.b16 %v264, %v263
  %v337 = vpack.c.b16 %v266, %v265
  %v338 = vpack.c.b16 %v268, %v267
  %v339 = vpack.c.b16 %v270, %v269
  %v340 = vpack.c.b16 %v272, %v271
  %v341 = vpack.c.b16 %v274, %v273
  %v342 = vpack.c.b16 %v276, %v275
  %v343 = vpack.c.b16 %v278, %v277
  %v344 = vpack.c.b16 %v280, %v279
  %v345 = vpack.c.b16 %v282, %v281
  %v346 = vpack.c.b16 %v284, %v283
  %v347 = vpack.c.b16 %v286, %v285
  %v348 = vpack.c.b16 %v288, %v287
  %v349 = vpack.c.b16 %v290, %v289
  %v350 = vpack.c.b16 %v292, %v291
  %v351 = vpack.c.b16 %v294, %v293
  %v352 = vpack.c.b16 %v296, %v295
  %v353 = vpack.c.b16 %v298, %v297
  %v354 = vpack.c.b16 %v300, %v299
  %v355 = vpack.c.b16 %v302, %v301
  %v356 = vpack.c.b16 %v304, %v303
  %v357 = vpack.c.b16 %v306, %v305
  %v358 = vpack.c.b16 %v308, %v307
  %v359 = vpack.c.b16 %v310, %v309
  %v360 = vpack.c.b16 %v312, %v311
  %v361 = vpack.c.b16 %v314, %v313
  %v362 = vpack.c.b16 %v316, %v315
  %v363 = vpack.c.b16 %v318, %v317
  %v364 = vpack.c.b16 %v320, %v319
  %v365 = vpack.c.b16 %v322, %v321
  %v366 = vpack.c.b16 %v324, %v323
  %v367 = vpack.c.b16 %v326, %v325
  %v368 = vpack.c.b16 %v328, %v327
  %409 = vmatprep.subr.bf16.mxu0 0
  %410 = vmatpush1.bf16.msra.mxu0 %v329
  %411 = vmatprep.subr.bf16.mxu0 0
  %412 = vmatpush1.bf16.msra.mxu0 %v330
  %413 = vmatprep.subr.bf16.mxu0 0
  %414 = vmatpush1.bf16.msra.mxu0 %v331
  %415 = vmatprep.subr.bf16.mxu0 0
  %416 = vmatpush1.bf16.msra.mxu0 %v332
  %417 = vmatprep.subr.bf16.mxu0 0
  %418 = vmatpush1.bf16.msra.mxu0 %v333
  %419 = vmatprep.subr.bf16.mxu0 0
  %420 = vmatpush1.bf16.msra.mxu0 %v334
  %421 = vmatprep.subr.bf16.mxu0 0
  %422 = vmatpush1.bf16.msra.mxu0 %v335
  %423 = vmatprep.subr.bf16.mxu0 0
  %424 = vmatpush1.bf16.msra.mxu0 %v336
  %425 = vmatprep.subr.bf16.mxu0 0
  %426 = vmatpush1.bf16.msra.mxu0 %v337
  %427 = vmatprep.subr.bf16.mxu0 0
  %428 = vmatpush1.bf16.msra.mxu0 %v338
  %429 = vmatprep.subr.bf16.mxu0 0
  %430 = vmatpush1.bf16.msra.mxu0 %v339
  %431 = vmatprep.subr.bf16.mxu0 0
  %432 = vmatpush1.bf16.msra.mxu0 %v340
  %433 = vmatprep.subr.bf16.mxu0 0
  %434 = vmatpush1.bf16.msra.mxu0 %v341
  %435 = vmatprep.subr.bf16.mxu0 0
  %436 = vmatpush1.bf16.msra.mxu0 %v342
  %437 = vmatprep.subr.bf16.mxu0 0
  %438 = vmatpush1.bf16.msra.mxu0 %v343
  %439 = vmatprep.subr.bf16.mxu0 0
  %440 = vmatpush1.bf16.msra.mxu0 %v344
  %441 = vmatprep.mubr.bf16.mxu0 %v150
  %442 = vmatmul.mubr.bf16.gmra.mrb[0].mxu0 %v149
  %v443 = vpop.f32.mrb[0].mxu0
  %v444 = vadd.f32 %v115, %v443
  %v445 = vpop.f32.mrb[0].mxu0
  %v446 = vpop.f32.mrb[0].mxu0
  %v447 = vadd.f32 %v115, %v446
  %v448 = vpop.f32.mrb[0].mxu0
  %449 = vmatprep.mubr.bf16.mxu0 %v155
  %450 = vmatmul.mubr.bf16.gmra.mrb[0].mxu0 %v154
  %v451 = vpop.f32.mrb[0].mxu0
  %v452 = vadd.f32 %v115, %v451
  %v453 = vpop.f32.mrb[0].mxu0
  %v454 = vpop.f32.mrb[0].mxu0
  %v455 = vadd.f32 %v115, %v454
  %v456 = vpop.f32.mrb[0].mxu0
  %457 = vdwg.mxu0
  %458 = vmatprep.subr.bf16.mxu0 0
  %459 = vmatpush1.bf16.msra.mxu0 %v345
  %460 = vmatprep.subr.bf16.mxu0 0
  %461 = vmatpush1.bf16.msra.mxu0 %v346
  %462 = vmatprep.subr.bf16.mxu0 0
  %463 = vmatpush1.bf16.msra.mxu0 %v347
  %464 = vmatprep.subr.bf16.mxu0 0
  %465 = vmatpush1.bf16.msra.mxu0 %v348
  %466 = vmatprep.subr.bf16.mxu0 0
  %467 = vmatpush1.bf16.msra.mxu0 %v349
  %468 = vmatprep.subr.bf16.mxu0 0
  %469 = vmatpush1.bf16.msra.mxu0 %v350
  %470 = vmatprep.subr.bf16.mxu0 0
  %471 = vmatpush1.bf16.msra.mxu0 %v351
  %472 = vmatprep.subr.bf16.mxu0 0
  %473 = vmatpush1.bf16.msra.mxu0 %v352
  %474 = vmatprep.subr.bf16.mxu0 0
  %475 = vmatpush1.bf16.msra.mxu0 %v353
  %476 = vmatprep.subr.bf16.mxu0 0
  %477 = vmatpush1.bf16.msra.mxu0 %v354
  %478 = vmatprep.subr.bf16.mxu0 0
  %479 = vmatpush1.bf16.msra.mxu0 %v355
  %480 = vmatprep.subr.bf16.mxu0 0
  %481 = vmatpush1.bf16.msra.mxu0 %v356
  %482 = vmatprep.subr.bf16.mxu0 0
  %483 = vmatpush1.bf16.msra.mxu0 %v357
  %484 = vmatprep.subr.bf16.mxu0 0
  %485 = vmatpush1.bf16.msra.mxu0 %v358
  %486 = vmatprep.subr.bf16.mxu0 0
  %487 = vmatpush1.bf16.msra.mxu0 %v359
  %488 = vmatprep.subr.bf16.mxu0 0
  %489 = vmatpush1.bf16.msra.mxu0 %v360
  %490 = vmatprep.mubr.bf16.mxu0 %v152
  %491 = vmatmul.mubr.bf16.gmra.mrb[0].mxu0 %v151
  %v492 = vpop.f32.mrb[0].mxu0
  %v493 = vadd.f32 %v444, %v492
  %v494 = vpop.f32.mrb[0].mxu0
  %v495 = vpop.f32.mrb[0].mxu0
  %v496 = vadd.f32 %v447, %v495
  %v497 = vpop.f32.mrb[0].mxu0
  %498 = vmatprep.mubr.bf16.mxu0 %v157
  %499 = vmatmul.mubr.bf16.gmra.mrb[0].mxu0 %v156
  %v500 = vpop.f32.mrb[0].mxu0
  %v501 = vadd.f32 %v452, %v500
  %v502 = vpop.f32.mrb[0].mxu0
  %v503 = vpop.f32.mrb[0].mxu0
  %v504 = vadd.f32 %v455, %v503
  %v505 = vpop.f32.mrb[0].mxu0
  %506 = vdwg.mxu0
  %507 = vmatprep.subr.bf16.mxu0 0
  %508 = vmatpush1.bf16.msra.mxu0 %v361
  %509 = vmatprep.subr.bf16.mxu0 0
  %510 = vmatpush1.bf16.msra.mxu0 %v362
  %511 = vmatprep.subr.bf16.mxu0 0
  %512 = vmatpush1.bf16.msra.mxu0 %v363
  %513 = vmatprep.subr.bf16.mxu0 0
  %514 = vmatpush1.bf16.msra.mxu0 %v364
  %515 = vmatprep.subr.bf16.mxu0 0
  %516 = vmatpush1.bf16.msra.mxu0 %v365
  %517 = vmatprep.subr.bf16.mxu0 0
  %518 = vmatpush1.bf16.msra.mxu0 %v366
  %519 = vmatprep.subr.bf16.mxu0 0
  %520 = vmatpush1.bf16.msra.mxu0 %v367
  %521 = vmatprep.subr.bf16.mxu0 0
  %522 = vmatpush1.bf16.msra.mxu0 %v368
  %523 = vmatprep.subr.bf16.mxu0 0
  %524 = vmatpush1.bf16.msra.mxu0 0
  %525 = vmatprep.subr.bf16.mxu0 0
  %526 = vmatpush1.bf16.msra.mxu0 0
  %527 = vmatprep.subr.bf16.mxu0 0
  %528 = vmatpush1.bf16.msra.mxu0 0
  %529 = vmatprep.subr.bf16.mxu0 0
  %530 = vmatpush1.bf16.msra.mxu0 0
  %531 = vmatprep.subr.bf16.mxu0 0
  %532 = vmatpush1.bf16.msra.mxu0 0
  %533 = vmatprep.subr.bf16.mxu0 0
  %534 = vmatpush1.bf16.msra.mxu0 0
  %535 = vmatprep.subr.bf16.mxu0 0
  %536 = vmatpush1.bf16.msra.mxu0 0
  %537 = vmatprep.subr.bf16.mxu0 0
  %538 = vmatpush1.bf16.msra.mxu0 0
  %539 = vmatprep.mubr.bf16.mxu0 0
  %540 = vmatmul.mubr.bf16.gmra.mrb[0].mxu0 %v153
  %v541 = vpop.f32.mrb[0].mxu0
  %v542 = vadd.f32 %v493, %v541
  %v543 = vpop.f32.mrb[0].mxu0
  %v544 = vpop.f32.mrb[0].mxu0
  %v545 = vadd.f32 %v496, %v544
  %v546 = vpop.f32.mrb[0].mxu0
  %547 = vmatprep.mubr.bf16.mxu0 0
  %548 = vmatmul.mubr.bf16.gmra.mrb[0].mxu0 %v158
  %v549 = vpop.f32.mrb[0].mxu0
  %v550 = vadd.f32 %v501, %v549
  %v551 = vpop.f32.mrb[0].mxu0
  %v552 = vpop.f32.mrb[0].mxu0
  %v553 = vadd.f32 %v504, %v552
  %v554 = vpop.f32.mrb[0].mxu0
  %555 = vdwg.mxu0
  %v556 = vld [vmem:[%s3] sm:$0xf]
  %v557 = vld [vmem:[%s3 + $0x4] sm:$0xf]
  %v558 = vld [vmem:[%s3 + $0x8] sm:$0xf]
  %v559 = vld [vmem:[%s3 + $0xc] sm:$0xf]
  %v560 = vunpack.c.l.bf16 %v556
  %v561 = vunpack.c.l.bf16 %v557
  %v562 = vunpack.c.l.bf16 %v558
  %v563 = vunpack.c.l.bf16 %v559
  %v564 = vadd.f32 %v542, %v560
  %v565 = vadd.f32 %v545, %v561
  %v566 = vadd.f32 %v550, %v562
  %v567 = vadd.f32 %v553, %v563
  %v568 = vmax.f32 %v564, 0.0
  %v569 = vmax.f32 %v565, 0.0
  %v570 = vmax.f32 %v566, 0.0
  %v571 = vmax.f32 %v567, 0.0
  %v572 = vpack.c.bf16 %v569, %v568
  %v573 = vpack.c.bf16 %v571, %v570
  %v576 = vunpack.c.l.b16 %v572
  %v577 = vunpack.c.h.b16 %v572
  %v578 = vunpack.c.l.b16 %v573
  %v579 = vunpack.c.h.b16 %v573
  %v580 = vpack.c.b16 %v576, %v576
  %v581 = vpack.c.b16 %v577, %v577
  %v582 = vpack.c.b16 %v578, %v578
  %v583 = vpack.c.b16 %v579, %v579
  %588 = vst [vmem:[%s4] sm:$0xf] %v580
  %589 = vst [vmem:[%s4 + $0x4] sm:$0xf] %v581
  %590 = vst [vmem:[%s4 + $0x8] sm:$0xf] %v582
  %591 = vst [vmem:[%s4 + $0xc] sm:$0xf] %v583
  // Predicated region
  $region18: #{_lambda_.17} parent=0 // pred_check
    _
  $region19: #{_lambda_.17} parent=0 // pred_check_branch
    %593 = sbr.rel (0) target = $region21
  $region20: #{_lambda_.17} parent=0 // pred_region
    _
  $region21: #{_lambda_.17} parent=0 // pred_fallthru
    _
  // Predicated region
  $region22: #{_lambda_.17} parent=0 // pred_check
    _
  $region23: #{_lambda_.17} parent=0 // pred_check_branch
    %595 = sbr.rel (0) target = $region25
  $region24: #{_lambda_.17} parent=0 // pred_region
    _
  $region25: #{_lambda_.17} parent=0 // pred_fallthru
    _

// kernel: _lambda_.20
$region0: #{_lambda_.20}
  #allocation0 [shape = 'u32[]', space=smem, size = 0x4, offset = 0x4, fixed_abs, tag = 'smem constant byte address 0x4 - core index']
  #allocation1 [shape = 'u32[144,128]{1,0:T(1,128)}', space=vmem, size = 0x12000, scoped, tag = 'internal scratch']
  %s0 = inlined_call_operand.vmem [shape: bf16[8,128], index: 0, kind: input, shape index: {}]
  %s1 = inlined_call_operand.vmem [shape: bf16[128,128], index: 1, kind: input, shape index: {}]
  %s2 = inlined_call_operand.vmem [shape: f32[1,128], index: 2, kind: input, shape index: {}]
  %s3 = inlined_call_operand.vmem [shape: bf16[8,128], index: 3, kind: output, shape index: {}]
  %s4 = sld [smem:[#allocation0]]
  $region22: #{_lambda_.20} parent=0
    _
  %s6 = ssub.s32 1, %s4
  %s7 = scalar_select 0, %s6, %s4
  // Predicated region
  $region2: #{_lambda_.20} parent=0 // pred_check
    _
  $region3: #{_lambda_.20} parent=0 // pred_check_branch
    %9 = sbr.rel (0) target = $region5
  $region4: #{_lambda_.20} parent=0 // pred_region
    _
  $region5: #{_lambda_.20} parent=0 // pred_fallthru
    _
  // Predicated region
  $region6: #{_lambda_.20} parent=0 // pred_check
    _
  $region7: #{_lambda_.20} parent=0 // pred_check_branch
    %11 = sbr.rel (0) target = $region9
  $region8: #{_lambda_.20} parent=0 // pred_region
    _
  $region9: #{_lambda_.20} parent=0 // pred_fallthru
    _
  // Predicated region
  $region10: #{_lambda_.20} parent=0 // pred_check
    _
  $region11: #{_lambda_.20} parent=0 // pred_check_branch
    %13 = sbr.rel (0) target = $region13
  $region12: #{_lambda_.20} parent=0 // pred_region
    _
  $region13: #{_lambda_.20} parent=0 // pred_fallthru
    _
  %v15 = vld [vmem:[%s0] sm:$0xf]
  %v16 = vld [vmem:[%s1] sm:$0xf]
  %v17 = vld [vmem:[%s1 + $0x4] sm:$0xf]
  %v18 = vld [vmem:[%s1 + $0x8] sm:$0xf]
  %v19 = vld [vmem:[%s1 + $0xc] sm:$0xf]
  %v20 = vld [vmem:[%s1 + $0x10] sm:$0xf]
  %v21 = vld [vmem:[%s1 + $0x14] sm:$0xf]
  %v22 = vld [vmem:[%s1 + $0x18] sm:$0xf]
  %v23 = vld [vmem:[%s1 + $0x1c] sm:$0xf]
  %v24 = vld [vmem:[%s1 + $0x20] sm:$0xf]
  %v25 = vld [vmem:[%s1 + $0x24] sm:$0xf]
  %v26 = vld [vmem:[%s1 + $0x28] sm:$0xf]
  %v27 = vld [vmem:[%s1 + $0x2c] sm:$0xf]
  %v28 = vld [vmem:[%s1 + $0x30] sm:$0xf]
  %v29 = vld [vmem:[%s1 + $0x34] sm:$0xf]
  %v30 = vld [vmem:[%s1 + $0x38] sm:$0xf]
  %v31 = vld [vmem:[%s1 + $0x3c] sm:$0xf]
  %v32 = vld [vmem:[%s2] sm:$0x1]
  %v34 = vlaneseq
  %v35 = vshrl.u32 %v34, 7
  %v36 = vsub.s32 0, %v35
  %v37 = vrot.slane %v32, %v36
  %v55 = vunpack.c.l.b16 %v16
  %v56 = vunpack.c.l.b16 %v17
  %v57 = vunpack.c.l.b16 %v18
  %v58 = vunpack.c.l.b16 %v19
  %v59 = vunpack.c.l.b16 %v20
  %v60 = vunpack.c.l.b16 %v21
  %v61 = vunpack.c.l.b16 %v22
  %v62 = vunpack.c.l.b16 %v23
  %v63 = vunpack.c.l.b16 %v24
  %v64 = vunpack.c.l.b16 %v25
  %v65 = vunpack.c.l.b16 %v26
  %v66 = vunpack.c.l.b16 %v27
  %v67 = vunpack.c.l.b16 %v28
  %v68 = vunpack.c.l.b16 %v29
  %v69 = vunpack.c.l.b16 %v30
  %v70 = vunpack.c.l.b16 %v31
  %v71 = vpack.c.b16 %v56, %v55
  %v72 = vpack.c.b16 %v58, %v57
  %v73 = vpack.c.b16 %v60, %v59
  %v74 = vpack.c.b16 %v62, %v61
  %v75 = vpack.c.b16 %v64, %v63
  %v76 = vpack.c.b16 %v66, %v65
  %v77 = vpack.c.b16 %v68, %v67
  %v78 = vpack.c.b16 %v70, %v69
  %87 = vmatprep.subr.bf16.mxu0 0
  %88 = vmatpush1.bf16.msra.mxu0 %v71
  %89 = vmatprep.subr.bf16.mxu0 0
  %90 = vmatpush1.bf16.msra.mxu0 %v72
  %91 = vmatprep.subr.bf16.mxu0 0
  %92 = vmatpush1.bf16.msra.mxu0 %v73
  %93 = vmatprep.subr.bf16.mxu0 0
  %94 = vmatpush1.bf16.msra.mxu0 %v74
  %95 = vmatprep.subr.bf16.mxu0 0
  %96 = vmatpush1.bf16.msra.mxu0 %v75
  %97 = vmatprep.subr.bf16.mxu0 0
  %98 = vmatpush1.bf16.msra.mxu0 %v76
  %99 = vmatprep.subr.bf16.mxu0 0
  %100 = vmatpush1.bf16.msra.mxu0 %v77
  %101 = vmatprep.subr.bf16.mxu0 0
  %102 = vmatpush1.bf16.msra.mxu0 %v78
  %103 = vmatprep.subr.bf16.mxu0 0
  %104 = vmatpush1.bf16.msra.mxu0 0
  %105 = vmatprep.subr.bf16.mxu0 0
  %106 = vmatpush1.bf16.msra.mxu0 0
  %107 = vmatprep.subr.bf16.mxu0 0
  %108 = vmatpush1.bf16.msra.mxu0 0
  %109 = vmatprep.subr.bf16.mxu0 0
  %110 = vmatpush1.bf16.msra.mxu0 0
  %111 = vmatprep.subr.bf16.mxu0 0
  %112 = vmatpush1.bf16.msra.mxu0 0
  %113 = vmatprep.subr.bf16.mxu0 0
  %114 = vmatpush1.bf16.msra.mxu0 0
  %115 = vmatprep.subr.bf16.mxu0 0
  %116 = vmatpush1.bf16.msra.mxu0 0
  %117 = vmatprep.subr.bf16.mxu0 0
  %118 = vmatpush1.bf16.msra.mxu0 0
  %119 = vmatprep.mubr.bf16.mxu0 0
  %120 = vmatmul.mubr.bf16.gmra.mrb[0].mxu0 %v15
  %v121 = vpop.f32.mrb[0].mxu0
  %v122 = vadd.f32 %v37, %v121
  %v123 = vpop.f32.mrb[0].mxu0
  %v124 = vpop.f32.mrb[0].mxu0
  %v125 = vpop.f32.mrb[0].mxu0
  %126 = vdwg.mxu0
  %v127 = vpack.c.bf16 %v122, %v122
  %128 = vst [vmem:[%s3] sm:$0xf] %v127
  // Predicated region
  $region14: #{_lambda_.20} parent=0 // pred_check
    _
  $region15: #{_lambda_.20} parent=0 // pred_check_branch
    %130 = sbr.rel (0) target = $region17
  $region16: #{_lambda_.20} parent=0 // pred_region
    _
  $region17: #{_lambda_.20} parent=0 // pred_fallthru
    _
  // Predicated region
  $region18: #{_lambda_.20} parent=0 // pred_check
    _
  $region19: #{_lambda_.20} parent=0 // pred_check_branch
    %132 = sbr.rel (0) target = $region21
  $region20: #{_lambda_.20} parent=0 // pred_region
    _
  $region21: #{_lambda_.20} parent=0 // pred_fallthru
    _

// kernel: _lambda_.23
$region0: #{_lambda_.23}
  #allocation0 [shape = 'u32[]', space=smem, size = 0x4, offset = 0x4, fixed_abs, tag = 'smem constant byte address 0x4 - core index']
  #allocation1 [shape = 'u32[144,128]{1,0:T(1,128)}', space=vmem, size = 0x12000, scoped, tag = 'internal scratch']
  %s0 = inlined_call_operand.vmem [shape: bf16[2,4,128], index: 0, kind: input, shape index: {}]
  %s1 = inlined_call_operand.hbm [shape: f32[2,128], index: 1, kind: output, shape index: {}]
  %s2 = sld [smem:[#allocation0]]
  $region14: #{_lambda_.23} parent=0
    _
  %s4 = ssub.s32 1, %s2
  %s5 = scalar_select 0, %s4, %s2
  $region1: #{_lambda_.23} parent=0
    #allocation2 [shape = 'u8[1024]{0}', space=vmem, size = 0x400, scoped, tag = 'output window, operand 0, single buffered']
    #allocation3 [shape = 's32[1]{0}', space=sflag, size = 0x4, scoped, tag = 'scoped memory for _lambda_.23']
    %6 = vsyncpa [#allocation3], 0
    // Predicated region
    $region2: #{_lambda_.23} parent=1 // pred_check
      _
    $region3: #{_lambda_.23} parent=1 // pred_check_branch
      %8 = sbr.rel (0) target = $region5
    $region4: #{_lambda_.23} parent=1 // pred_region
      _
    $region5: #{_lambda_.23} parent=1 // pred_fallthru
      _
    %v9 = vld [vmem:[%s0] sm:$0x3]
    %v10 = vld [vmem:[%s0 + $0x2] sm:$0x3]
    %v11 = vunpack.c.l.bf16 %v9
    %v12 = vunpack.c.l.bf16 %v10
    %vm13 = vcmask 1043456
    %v14 = vsel %vm13, %v11, 0.0
    %v15 = vrot.slane %v14, 4
    %v16 = vadd.f32 %v14, %v15
    %v17 = vrot.slane %v16, 2
    %v18 = vadd.f32 %v16, %v17
    %v19 = vrot.slane %v18, 1
    %v20 = vadd.f32 %v18, %v19
    %v21 = vsel %vm13, %v12, 0.0
    %v22 = vrot.slane %v21, 4
    %v23 = vadd.f32 %v21, %v22
    %v24 = vrot.slane %v23, 2
    %v25 = vadd.f32 %v23, %v24
    %v26 = vrot.slane %v25, 1
    %v27 = vadd.f32 %v25, %v26
    %v28 = vrcp.pop 4.0
    %v29 = vmul.f32 %v20, %v28
    %v30 = vmul.f32 %v27, %v28
    %vm33 = vcmask 1041409
    %v34 = vsel %vm33, %v30, %v29
    %36 = vst [vmem:[#allocation2] sm:$0x3] %v34
    // Predicated region
    $region6: #{_lambda_.23} parent=1 // pred_check
      _
    $region7: #{_lambda_.23} parent=1 // pred_check_branch
      %38 = sbr.rel (0) target = $region9
    $region8: #{_lambda_.23} parent=1 // pred_region
      %s40 = ssub.s32 32, 32
      %41 = vsyncadd [#allocation3], %s40
      %s43 = sshll.u32 [#allocation2], 4
      %s44 = int_to_ptr.vmem [resolvable:$true] %s43
      %46 = dma.vmem_to_hbm [thread:$0]  %s44, 32, %s1, [#allocation3]
    $region9: #{_lambda_.23} parent=1 // pred_fallthru
      _
    // Predicated region
    $region10: #{_lambda_.23} parent=1 // pred_check
      _
    $region11: #{_lambda_.23} parent=1 // pred_check_branch
      %48 = sbr.rel (0) target = $region13
    $region12: #{_lambda_.23} parent=1 // pred_region
      %49 = dma.done [#allocation3], 32
    $region13: #{_lambda_.23} parent=1 // pred_fallthru
      _
    %50 = vsyncpa [#allocation3], 1

// kernel: _lambda_.21
$region0: #{_lambda_.21}
  #allocation0 [shape = 'u32[]', space=smem, size = 0x4, offset = 0x4, fixed_abs, tag = 'smem constant byte address 0x4 - core index']
  #allocation1 [shape = 'u32[144,128]{1,0:T(1,128)}', space=vmem, size = 0x12000, scoped, tag = 'internal scratch']
  %s0 = inlined_call_operand.vmem [shape: bf16[8,640], index: 0, kind: input, shape index: {}]
  %s1 = inlined_call_operand.vmem [shape: bf16[640,128], index: 1, kind: input, shape index: {}]
  %s2 = inlined_call_operand.vmem [shape: f32[1,128], index: 2, kind: input, shape index: {}]
  %s3 = inlined_call_operand.vmem [shape: bf16[8,128], index: 3, kind: output, shape index: {}]
  %s4 = sld [smem:[#allocation0]]
  $region22: #{_lambda_.21} parent=0
    _
  %s6 = ssub.s32 1, %s4
  %s7 = scalar_select 0, %s6, %s4
  // Predicated region
  $region2: #{_lambda_.21} parent=0 // pred_check
    _
  $region3: #{_lambda_.21} parent=0 // pred_check_branch
    %9 = sbr.rel (0) target = $region5
  $region4: #{_lambda_.21} parent=0 // pred_region
    _
  $region5: #{_lambda_.21} parent=0 // pred_fallthru
    _
  // Predicated region
  $region6: #{_lambda_.21} parent=0 // pred_check
    _
  $region7: #{_lambda_.21} parent=0 // pred_check_branch
    %11 = sbr.rel (0) target = $region9
  $region8: #{_lambda_.21} parent=0 // pred_region
    _
  $region9: #{_lambda_.21} parent=0 // pred_fallthru
    _
  // Predicated region
  $region10: #{_lambda_.21} parent=0 // pred_check
    _
  $region11: #{_lambda_.21} parent=0 // pred_check_branch
    %13 = sbr.rel (0) target = $region13
  $region12: #{_lambda_.21} parent=0 // pred_region
    _
  $region13: #{_lambda_.21} parent=0 // pred_fallthru
    _
  %v15 = vld [vmem:[%s0] sm:$0xff]
  %v16 = vld [vmem:[%s0 + $0x8] sm:$0xff]
  %v17 = vld [vmem:[%s0 + $0x10] sm:$0xf]
  %v18 = vld [vmem:[%s1] sm:$0xf]
  %v19 = vld [vmem:[%s1 + $0x4] sm:$0xf]
  %v20 = vld [vmem:[%s1 + $0x8] sm:$0xf]
  %v21 = vld [vmem:[%s1 + $0xc] sm:$0xf]
  %v22 = vld [vmem:[%s1 + $0x10] sm:$0xf]
  %v23 = vld [vmem:[%s1 + $0x14] sm:$0xf]
  %v24 = vld [vmem:[%s1 + $0x18] sm:$0xf]
  %v25 = vld [vmem:[%s1 + $0x1c] sm:$0xf]
  %v26 = vld [vmem:[%s1 + $0x20] sm:$0xf]
  %v27 = vld [vmem:[%s1 + $0x24] sm:$0xf]
  %v28 = vld [vmem:[%s1 + $0x28] sm:$0xf]
  %v29 = vld [vmem:[%s1 + $0x2c] sm:$0xf]
  %v30 = vld [vmem:[%s1 + $0x30] sm:$0xf]
  %v31 = vld [vmem:[%s1 + $0x34] sm:$0xf]
  %v32 = vld [vmem:[%s1 + $0x38] sm:$0xf]
  %v33 = vld [vmem:[%s1 + $0x3c] sm:$0xf]
  %v34 = vld [vmem:[%s1 + $0x40] sm:$0xf]
  %v35 = vld [vmem:[%s1 + $0x44] sm:$0xf]
  %v36 = vld [vmem:[%s1 + $0x48] sm:$0xf]
  %v37 = vld [vmem:[%s1 + $0x4c] sm:$0xf]
  %v38 = vld [vmem:[%s1 + $0x50] sm:$0xf]
  %v39 = vld [vmem:[%s1 + $0x54] sm:$0xf]
  %v40 = vld [vmem:[%s1 + $0x58] sm:$0xf]
  %v41 = vld [vmem:[%s1 + $0x5c] sm:$0xf]
  %v42 = vld [vmem:[%s1 + $0x60] sm:$0xf]
  %v43 = vld [vmem:[%s1 + $0x64] sm:$0xf]
  %v44 = vld [vmem:[%s1 + $0x68] sm:$0xf]
  %v45 = vld [vmem:[%s1 + $0x6c] sm:$0xf]
  %v46 = vld [vmem:[%s1 + $0x70] sm:$0xf]
  %v47 = vld [vmem:[%s1 + $0x74] sm:$0xf]
  %v48 = vld [vmem:[%s1 + $0x78] sm:$0xf]
  %v49 = vld [vmem:[%s1 + $0x7c] sm:$0xf]
  %v50 = vld [vmem:[%s1 + $0x80] sm:$0xf]
  %v51 = vld [vmem:[%s1 + $0x84] sm:$0xf]
  %v52 = vld [vmem:[%s1 + $0x88] sm:$0xf]
  %v53 = vld [vmem:[%s1 + $0x8c] sm:$0xf]
  %v54 = vld [vmem:[%s1 + $0x90] sm:$0xf]
  %v55 = vld [vmem:[%s1 + $0x94] sm:$0xf]
  %v56 = vld [vmem:[%s1 + $0x98] sm:$0xf]
  %v57 = vld [vmem:[%s1 + $0x9c] sm:$0xf]
  %v58 = vld [vmem:[%s1 + $0xa0] sm:$0xf]
  %v59 = vld [vmem:[%s1 + $0xa4] sm:$0xf]
  %v60 = vld [vmem:[%s1 + $0xa8] sm:$0xf]
  %v61 = vld [vmem:[%s1 + $0xac] sm:$0xf]
  %v62 = vld [vmem:[%s1 + $0xb0] sm:$0xf]
  %v63 = vld [vmem:[%s1 + $0xb4] sm:$0xf]
  %v64 = vld [vmem:[%s1 + $0xb8] sm:$0xf]
  %v65 = vld [vmem:[%s1 + $0xbc] sm:$0xf]
  %v66 = vld [vmem:[%s1 + $0xc0] sm:$0xf]
  %v67 = vld [vmem:[%s1 + $0xc4] sm:$0xf]
  %v68 = vld [vmem:[%s1 + $0xc8] sm:$0xf]
  %v69 = vld [vmem:[%s1 + $0xcc] sm:$0xf]
  %v70 = vld [vmem:[%s1 + $0xd0] sm:$0xf]
  %v71 = vld [vmem:[%s1 + $0xd4] sm:$0xf]
  %v72 = vld [vmem:[%s1 + $0xd8] sm:$0xf]
  %v73 = vld [vmem:[%s1 + $0xdc] sm:$0xf]
  %v74 = vld [vmem:[%s1 + $0xe0] sm:$0xf]
  %v75 = vld [vmem:[%s1 + $0xe4] sm:$0xf]
  %v76 = vld [vmem:[%s1 + $0xe8] sm:$0xf]
  %v77 = vld [vmem:[%s1 + $0xec] sm:$0xf]
  %v78 = vld [vmem:[%s1 + $0xf0] sm:$0xf]
  %v79 = vld [vmem:[%s1 + $0xf4] sm:$0xf]
  %v80 = vld [vmem:[%s1 + $0xf8] sm:$0xf]
  %v81 = vld [vmem:[%s1 + $0xfc] sm:$0xf]
  %v82 = vld [vmem:[%s1 + $0x100] sm:$0xf]
  %v83 = vld [vmem:[%s1 + $0x104] sm:$0xf]
  %v84 = vld [vmem:[%s1 + $0x108] sm:$0xf]
  %v85 = vld [vmem:[%s1 + $0x10c] sm:$0xf]
  %v86 = vld [vmem:[%s1 + $0x110] sm:$0xf]
  %v87 = vld [vmem:[%s1 + $0x114] sm:$0xf]
  %v88 = vld [vmem:[%s1 + $0x118] sm:$0xf]
  %v89 = vld [vmem:[%s1 + $0x11c] sm:$0xf]
  %v90 = vld [vmem:[%s1 + $0x120] sm:$0xf]
  %v91 = vld [vmem:[%s1 + $0x124] sm:$0xf]
  %v92 = vld [vmem:[%s1 + $0x128] sm:$0xf]
  %v93 = vld [vmem:[%s1 + $0x12c] sm:$0xf]
  %v94 = vld [vmem:[%s1 + $0x130] sm:$0xf]
  %v95 = vld [vmem:[%s1 + $0x134] sm:$0xf]
  %v96 = vld [vmem:[%s1 + $0x138] sm:$0xf]
  %v97 = vld [vmem:[%s1 + $0x13c] sm:$0xf]
  %v98 = vld [vmem:[%s2] sm:$0x1]
  %v100 = vlaneseq
  %v101 = vshrl.u32 %v100, 7
  %v102 = vsub.s32 0, %v101
  %v103 = vrot.slane %v98, %v102
  %v108 = vunpack.c.l.b16 %v15
  %v109 = vunpack.c.h.b16 %v15
  %v110 = vunpack.c.l.b16 %v16
  %v111 = vunpack.c.h.b16 %v16
  %v112 = vunpack.c.l.b16 %v17
  %v113 = vpack.c.b16 %v108, %v108
  %v114 = vpack.c.b16 %v109, %v109
  %v115 = vpack.c.b16 %v110, %v110
  %v116 = vpack.c.b16 %v111, %v111
  %v117 = vpack.c.b16 %v112, %v112
  %v203 = vunpack.c.l.b16 %v18
  %v204 = vunpack.c.l.b16 %v19
  %v205 = vunpack.c.l.b16 %v20
  %v206 = vunpack.c.l.b16 %v21
  %v207 = vunpack.c.l.b16 %v22
  %v208 = vunpack.c.l.b16 %v23
  %v209 = vunpack.c.l.b16 %v24
  %v210 = vunpack.c.l.b16 %v25
  %v211 = vunpack.c.l.b16 %v26
  %v212 = vunpack.c.l.b16 %v27
  %v213 = vunpack.c.l.b16 %v28
  %v214 = vunpack.c.l.b16 %v29
  %v215 = vunpack.c.l.b16 %v30
  %v216 = vunpack.c.l.b16 %v31
  %v217 = vunpack.c.l.b16 %v32
  %v218 = vunpack.c.l.b16 %v33
  %v219 = vunpack.c.l.b16 %v34
  %v220 = vunpack.c.l.b16 %v35
  %v221 = vunpack.c.l.b16 %v36
  %v222 = vunpack.c.l.b16 %v37
  %v223 = vunpack.c.l.b16 %v38
  %v224 = vunpack.c.l.b16 %v39
  %v225 = vunpack.c.l.b16 %v40
  %v226 = vunpack.c.l.b16 %v41
  %v227 = vunpack.c.l.b16 %v42
  %v228 = vunpack.c.l.b16 %v43
  %v229 = vunpack.c.l.b16 %v44
  %v230 = vunpack.c.l.b16 %v45
  %v231 = vunpack.c.l.b16 %v46
  %v232 = vunpack.c.l.b16 %v47
  %v233 = vunpack.c.l.b16 %v48
  %v234 = vunpack.c.l.b16 %v49
  %v235 = vunpack.c.l.b16 %v50
  %v236 = vunpack.c.l.b16 %v51
  %v237 = vunpack.c.l.b16 %v52
  %v238 = vunpack.c.l.b16 %v53
  %v239 = vunpack.c.l.b16 %v54
  %v240 = vunpack.c.l.b16 %v55
  %v241 = vunpack.c.l.b16 %v56
  %v242 = vunpack.c.l.b16 %v57
  %v243 = vunpack.c.l.b16 %v58
  %v244 = vunpack.c.l.b16 %v59
  %v245 = vunpack.c.l.b16 %v60
  %v246 = vunpack.c.l.b16 %v61
  %v247 = vunpack.c.l.b16 %v62
  %v248 = vunpack.c.l.b16 %v63
  %v249 = vunpack.c.l.b16 %v64
  %v250 = vunpack.c.l.b16 %v65
  %v251 = vunpack.c.l.b16 %v66
  %v252 = vunpack.c.l.b16 %v67
  %v253 = vunpack.c.l.b16 %v68
  %v254 = vunpack.c.l.b16 %v69
  %v255 = vunpack.c.l.b16 %v70
  %v256 = vunpack.c.l.b16 %v71
  %v257 = vunpack.c.l.b16 %v72
  %v258 = vunpack.c.l.b16 %v73
  %v259 = vunpack.c.l.b16 %v74
  %v260 = vunpack.c.l.b16 %v75
  %v261 = vunpack.c.l.b16 %v76
  %v262 = vunpack.c.l.b16 %v77
  %v263 = vunpack.c.l.b16 %v78
  %v264 = vunpack.c.l.b16 %v79
  %v265 = vunpack.c.l.b16 %v80
  %v266 = vunpack.c.l.b16 %v81
  %v267 = vunpack.c.l.b16 %v82
  %v268 = vunpack.c.l.b16 %v83
  %v269 = vunpack.c.l.b16 %v84
  %v270 = vunpack.c.l.b16 %v85
  %v271 = vunpack.c.l.b16 %v86
  %v272 = vunpack.c.l.b16 %v87
  %v273 = vunpack.c.l.b16 %v88
  %v274 = vunpack.c.l.b16 %v89
  %v275 = vunpack.c.l.b16 %v90
  %v276 = vunpack.c.l.b16 %v91
  %v277 = vunpack.c.l.b16 %v92
  %v278 = vunpack.c.l.b16 %v93
  %v279 = vunpack.c.l.b16 %v94
  %v280 = vunpack.c.l.b16 %v95
  %v281 = vunpack.c.l.b16 %v96
  %v282 = vunpack.c.l.b16 %v97
  %v283 = vpack.c.b16 %v204, %v203
  %v284 = vpack.c.b16 %v206, %v205
  %v285 = vpack.c.b16 %v208, %v207
  %v286 = vpack.c.b16 %v210, %v209
  %v287 = vpack.c.b16 %v212, %v211
  %v288 = vpack.c.b16 %v214, %v213
  %v289 = vpack.c.b16 %v216, %v215
  %v290 = vpack.c.b16 %v218, %v217
  %v291 = vpack.c.b16 %v220, %v219
  %v292 = vpack.c.b16 %v222, %v221
  %v293 = vpack.c.b16 %v224, %v223
  %v294 = vpack.c.b16 %v226, %v225
  %v295 = vpack.c.b16 %v228, %v227
  %v296 = vpack.c.b16 %v230, %v229
  %v297 = vpack.c.b16 %v232, %v231
  %v298 = vpack.c.b16 %v234, %v233
  %v299 = vpack.c.b16 %v236, %v235
  %v300 = vpack.c.b16 %v238, %v237
  %v301 = vpack.c.b16 %v240, %v239
  %v302 = vpack.c.b16 %v242, %v241
  %v303 = vpack.c.b16 %v244, %v243
  %v304 = vpack.c.b16 %v246, %v245
  %v305 = vpack.c.b16 %v248, %v247
  %v306 = vpack.c.b16 %v250, %v249
  %v307 = vpack.c.b16 %v252, %v251
  %v308 = vpack.c.b16 %v254, %v253
  %v309 = vpack.c.b16 %v256, %v255
  %v310 = vpack.c.b16 %v258, %v257
  %v311 = vpack.c.b16 %v260, %v259
  %v312 = vpack.c.b16 %v262, %v261
  %v313 = vpack.c.b16 %v264, %v263
  %v314 = vpack.c.b16 %v266, %v265
  %v315 = vpack.c.b16 %v268, %v267
  %v316 = vpack.c.b16 %v270, %v269
  %v317 = vpack.c.b16 %v272, %v271
  %v318 = vpack.c.b16 %v274, %v273
  %v319 = vpack.c.b16 %v276, %v275
  %v320 = vpack.c.b16 %v278, %v277
  %v321 = vpack.c.b16 %v280, %v279
  %v322 = vpack.c.b16 %v282, %v281
  %363 = vmatprep.subr.bf16.mxu0 0
  %364 = vmatpush1.bf16.msra.mxu0 %v283
  %365 = vmatprep.subr.bf16.mxu0 0
  %366 = vmatpush1.bf16.msra.mxu0 %v284
  %367 = vmatprep.subr.bf16.mxu0 0
  %368 = vmatpush1.bf16.msra.mxu0 %v285
  %369 = vmatprep.subr.bf16.mxu0 0
  %370 = vmatpush1.bf16.msra.mxu0 %v286
  %371 = vmatprep.subr.bf16.mxu0 0
  %372 = vmatpush1.bf16.msra.mxu0 %v287
  %373 = vmatprep.subr.bf16.mxu0 0
  %374 = vmatpush1.bf16.msra.mxu0 %v288
  %375 = vmatprep.subr.bf16.mxu0 0
  %376 = vmatpush1.bf16.msra.mxu0 %v289
  %377 = vmatprep.subr.bf16.mxu0 0
  %378 = vmatpush1.bf16.msra.mxu0 %v290
  %379 = vmatprep.subr.bf16.mxu0 0
  %380 = vmatpush1.bf16.msra.mxu0 %v291
  %381 = vmatprep.subr.bf16.mxu0 0
  %382 = vmatpush1.bf16.msra.mxu0 %v292
  %383 = vmatprep.subr.bf16.mxu0 0
  %384 = vmatpush1.bf16.msra.mxu0 %v293
  %385 = vmatprep.subr.bf16.mxu0 0
  %386 = vmatpush1.bf16.msra.mxu0 %v294
  %387 = vmatprep.subr.bf16.mxu0 0
  %388 = vmatpush1.bf16.msra.mxu0 %v295
  %389 = vmatprep.subr.bf16.mxu0 0
  %390 = vmatpush1.bf16.msra.mxu0 %v296
  %391 = vmatprep.subr.bf16.mxu0 0
  %392 = vmatpush1.bf16.msra.mxu0 %v297
  %393 = vmatprep.subr.bf16.mxu0 0
  %394 = vmatpush1.bf16.msra.mxu0 %v298
  %395 = vmatprep.mubr.bf16.mxu0 %v114
  %396 = vmatmul.mubr.bf16.gmra.mrb[0].mxu0 %v113
  %v397 = vpop.f32.mrb[0].mxu0
  %v398 = vadd.f32 %v103, %v397
  %v399 = vpop.f32.mrb[0].mxu0
  %v400 = vpop.f32.mrb[0].mxu0
  %v401 = vpop.f32.mrb[0].mxu0
  %402 = vdwg.mxu0
  %403 = vmatprep.subr.bf16.mxu0 0
  %404 = vmatpush1.bf16.msra.mxu0 %v299
  %405 = vmatprep.subr.bf16.mxu0 0
  %406 = vmatpush1.bf16.msra.mxu0 %v300
  %407 = vmatprep.subr.bf16.mxu0 0
  %408 = vmatpush1.bf16.msra.mxu0 %v301
  %409 = vmatprep.subr.bf16.mxu0 0
  %410 = vmatpush1.bf16.msra.mxu0 %v302
  %411 = vmatprep.subr.bf16.mxu0 0
  %412 = vmatpush1.bf16.msra.mxu0 %v303
  %413 = vmatprep.subr.bf16.mxu0 0
  %414 = vmatpush1.bf16.msra.mxu0 %v304
  %415 = vmatprep.subr.bf16.mxu0 0
  %416 = vmatpush1.bf16.msra.mxu0 %v305
  %417 = vmatprep.subr.bf16.mxu0 0
  %418 = vmatpush1.bf16.msra.mxu0 %v306
  %419 = vmatprep.subr.bf16.mxu0 0
  %420 = vmatpush1.bf16.msra.mxu0 %v307
  %421 = vmatprep.subr.bf16.mxu0 0
  %422 = vmatpush1.bf16.msra.mxu0 %v308
  %423 = vmatprep.subr.bf16.mxu0 0
  %424 = vmatpush1.bf16.msra.mxu0 %v309
  %425 = vmatprep.subr.bf16.mxu0 0
  %426 = vmatpush1.bf16.msra.mxu0 %v310
  %427 = vmatprep.subr.bf16.mxu0 0
  %428 = vmatpush1.bf16.msra.mxu0 %v311
  %429 = vmatprep.subr.bf16.mxu0 0
  %430 = vmatpush1.bf16.msra.mxu0 %v312
  %431 = vmatprep.subr.bf16.mxu0 0
  %432 = vmatpush1.bf16.msra.mxu0 %v313
  %433 = vmatprep.subr.bf16.mxu0 0
  %434 = vmatpush1.bf16.msra.mxu0 %v314
  %435 = vmatprep.mubr.bf16.mxu0 %v116
  %436 = vmatmul.mubr.bf16.gmra.mrb[0].mxu0 %v115
  %v437 = vpop.f32.mrb[0].mxu0
  %v438 = vadd.f32 %v398, %v437
  %v439 = vpop.f32.mrb[0].mxu0
  %v440 = vpop.f32.mrb[0].mxu0
  %v441 = vpop.f32.mrb[0].mxu0
  %442 = vdwg.mxu0
  %443 = vmatprep.subr.bf16.mxu0 0
  %444 = vmatpush1.bf16.msra.mxu0 %v315
  %445 = vmatprep.subr.bf16.mxu0 0
  %446 = vmatpush1.bf16.msra.mxu0 %v316
  %447 = vmatprep.subr.bf16.mxu0 0
  %448 = vmatpush1.bf16.msra.mxu0 %v317
  %449 = vmatprep.subr.bf16.mxu0 0
  %450 = vmatpush1.bf16.msra.mxu0 %v318
  %451 = vmatprep.subr.bf16.mxu0 0
  %452 = vmatpush1.bf16.msra.mxu0 %v319
  %453 = vmatprep.subr.bf16.mxu0 0
  %454 = vmatpush1.bf16.msra.mxu0 %v320
  %455 = vmatprep.subr.bf16.mxu0 0
  %456 = vmatpush1.bf16.msra.mxu0 %v321
  %457 = vmatprep.subr.bf16.mxu0 0
  %458 = vmatpush1.bf16.msra.mxu0 %v322
  %459 = vmatprep.subr.bf16.mxu0 0
  %460 = vmatpush1.bf16.msra.mxu0 0
  %461 = vmatprep.subr.bf16.mxu0 0
  %462 = vmatpush1.bf16.msra.mxu0 0
  %463 = vmatprep.subr.bf16.mxu0 0
  %464 = vmatpush1.bf16.msra.mxu0 0
  %465 = vmatprep.subr.bf16.mxu0 0
  %466 = vmatpush1.bf16.msra.mxu0 0
  %467 = vmatprep.subr.bf16.mxu0 0
  %468 = vmatpush1.bf16.msra.mxu0 0
  %469 = vmatprep.subr.bf16.mxu0 0
  %470 = vmatpush1.bf16.msra.mxu0 0
  %471 = vmatprep.subr.bf16.mxu0 0
  %472 = vmatpush1.bf16.msra.mxu0 0
  %473 = vmatprep.subr.bf16.mxu0 0
  %474 = vmatpush1.bf16.msra.mxu0 0
  %475 = vmatprep.mubr.bf16.mxu0 0
  %476 = vmatmul.mubr.bf16.gmra.mrb[0].mxu0 %v117
  %v477 = vpop.f32.mrb[0].mxu0
  %v478 = vadd.f32 %v438, %v477
  %v479 = vpop.f32.mrb[0].mxu0
  %v480 = vpop.f32.mrb[0].mxu0
  %v481 = vpop.f32.mrb[0].mxu0
  %482 = vdwg.mxu0
  %v483 = vmax.f32 %v478, 0.0
  %v484 = vpack.c.bf16 %v483, %v483
  %485 = vst [vmem:[%s3] sm:$0xf] %v484
  // Predicated region
  $region14: #{_lambda_.21} parent=0 // pred_check
    _
  $region15: #{_lambda_.21} parent=0 // pred_check_branch
    %487 = sbr.rel (0) target = $region17
  $region16: #{_lambda_.21} parent=0 // pred_region
    _
  $region17: #{_lambda_.21} parent=0 // pred_fallthru
    _
  // Predicated region
  $region18: #{_lambda_.21} parent=0 // pred_check
    _
  $region19: #{_lambda_.21} parent=0 // pred_check_branch
    %489 = sbr.rel (0) target = $region21
  $region20: #{_lambda_.21} parent=0 // pred_region
    _
  $region21: #{_lambda_.21} parent=0 // pred_fallthru
    _

// kernel: _lambda_.22
$region0: #{_lambda_.22}
  #allocation0 [shape = 'u32[]', space=smem, size = 0x4, offset = 0x4, fixed_abs, tag = 'smem constant byte address 0x4 - core index']
  #allocation1 [shape = 'u32[144,128]{1,0:T(1,128)}', space=vmem, size = 0x12000, scoped, tag = 'internal scratch']
  %s0 = inlined_call_operand.vmem [shape: bf16[8,1152], index: 0, kind: input, shape index: {}]
  %s1 = inlined_call_operand.vmem [shape: bf16[1152,128], index: 1, kind: input, shape index: {}]
  %s2 = inlined_call_operand.vmem [shape: f32[1,128], index: 2, kind: input, shape index: {}]
  %s3 = inlined_call_operand.vmem [shape: bf16[8,128], index: 3, kind: input, shape index: {}]
  %s4 = inlined_call_operand.vmem [shape: bf16[8,128], index: 4, kind: output, shape index: {}]
  %s5 = sld [smem:[#allocation0]]
  $region26: #{_lambda_.22} parent=0
    _
  %s7 = ssub.s32 1, %s5
  %s8 = scalar_select 0, %s7, %s5
  // Predicated region
  $region2: #{_lambda_.22} parent=0 // pred_check
    _
  $region3: #{_lambda_.22} parent=0 // pred_check_branch
    %10 = sbr.rel (0) target = $region5
  $region4: #{_lambda_.22} parent=0 // pred_region
    _
  $region5: #{_lambda_.22} parent=0 // pred_fallthru
    _
  // Predicated region
  $region6: #{_lambda_.22} parent=0 // pred_check
    _
  $region7: #{_lambda_.22} parent=0 // pred_check_branch
    %12 = sbr.rel (0) target = $region9
  $region8: #{_lambda_.22} parent=0 // pred_region
    _
  $region9: #{_lambda_.22} parent=0 // pred_fallthru
    _
  // Predicated region
  $region10: #{_lambda_.22} parent=0 // pred_check
    _
  $region11: #{_lambda_.22} parent=0 // pred_check_branch
    %14 = sbr.rel (0) target = $region13
  $region12: #{_lambda_.22} parent=0 // pred_region
    _
  $region13: #{_lambda_.22} parent=0 // pred_fallthru
    _
  // Predicated region
  $region14: #{_lambda_.22} parent=0 // pred_check
    _
  $region15: #{_lambda_.22} parent=0 // pred_check_branch
    %16 = sbr.rel (0) target = $region17
  $region16: #{_lambda_.22} parent=0 // pred_region
    _
  $region17: #{_lambda_.22} parent=0 // pred_fallthru
    _
  %v18 = vld [vmem:[%s0] sm:$0xff]
  %v19 = vld [vmem:[%s0 + $0x8] sm:$0xff]
  %v20 = vld [vmem:[%s0 + $0x10] sm:$0xff]
  %v21 = vld [vmem:[%s0 + $0x18] sm:$0xff]
  %v22 = vld [vmem:[%s0 + $0x20] sm:$0xf]
  %v23 = vld [vmem:[%s1] sm:$0xf]
  %v24 = vld [vmem:[%s1 + $0x4] sm:$0xf]
  %v25 = vld [vmem:[%s1 + $0x8] sm:$0xf]
  %v26 = vld [vmem:[%s1 + $0xc] sm:$0xf]
  %v27 = vld [vmem:[%s1 + $0x10] sm:$0xf]
  %v28 = vld [vmem:[%s1 + $0x14] sm:$0xf]
  %v29 = vld [vmem:[%s1 + $0x18] sm:$0xf]
  %v30 = vld [vmem:[%s1 + $0x1c] sm:$0xf]
  %v31 = vld [vmem:[%s1 + $0x20] sm:$0xf]
  %v32 = vld [vmem:[%s1 + $0x24] sm:$0xf]
  %v33 = vld [vmem:[%s1 + $0x28] sm:$0xf]
  %v34 = vld [vmem:[%s1 + $0x2c] sm:$0xf]
  %v35 = vld [vmem:[%s1 + $0x30] sm:$0xf]
  %v36 = vld [vmem:[%s1 + $0x34] sm:$0xf]
  %v37 = vld [vmem:[%s1 + $0x38] sm:$0xf]
  %v38 = vld [vmem:[%s1 + $0x3c] sm:$0xf]
  %v39 = vld [vmem:[%s1 + $0x40] sm:$0xf]
  %v40 = vld [vmem:[%s1 + $0x44] sm:$0xf]
  %v41 = vld [vmem:[%s1 + $0x48] sm:$0xf]
  %v42 = vld [vmem:[%s1 + $0x4c] sm:$0xf]
  %v43 = vld [vmem:[%s1 + $0x50] sm:$0xf]
  %v44 = vld [vmem:[%s1 + $0x54] sm:$0xf]
  %v45 = vld [vmem:[%s1 + $0x58] sm:$0xf]
  %v46 = vld [vmem:[%s1 + $0x5c] sm:$0xf]
  %v47 = vld [vmem:[%s1 + $0x60] sm:$0xf]
  %v48 = vld [vmem:[%s1 + $0x64] sm:$0xf]
  %v49 = vld [vmem:[%s1 + $0x68] sm:$0xf]
  %v50 = vld [vmem:[%s1 + $0x6c] sm:$0xf]
  %v51 = vld [vmem:[%s1 + $0x70] sm:$0xf]
  %v52 = vld [vmem:[%s1 + $0x74] sm:$0xf]
  %v53 = vld [vmem:[%s1 + $0x78] sm:$0xf]
  %v54 = vld [vmem:[%s1 + $0x7c] sm:$0xf]
  %v55 = vld [vmem:[%s1 + $0x80] sm:$0xf]
  %v56 = vld [vmem:[%s1 + $0x84] sm:$0xf]
  %v57 = vld [vmem:[%s1 + $0x88] sm:$0xf]
  %v58 = vld [vmem:[%s1 + $0x8c] sm:$0xf]
  %v59 = vld [vmem:[%s1 + $0x90] sm:$0xf]
  %v60 = vld [vmem:[%s1 + $0x94] sm:$0xf]
  %v61 = vld [vmem:[%s1 + $0x98] sm:$0xf]
  %v62 = vld [vmem:[%s1 + $0x9c] sm:$0xf]
  %v63 = vld [vmem:[%s1 + $0xa0] sm:$0xf]
  %v64 = vld [vmem:[%s1 + $0xa4] sm:$0xf]
  %v65 = vld [vmem:[%s1 + $0xa8] sm:$0xf]
  %v66 = vld [vmem:[%s1 + $0xac] sm:$0xf]
  %v67 = vld [vmem:[%s1 + $0xb0] sm:$0xf]
  %v68 = vld [vmem:[%s1 + $0xb4] sm:$0xf]
  %v69 = vld [vmem:[%s1 + $0xb8] sm:$0xf]
  %v70 = vld [vmem:[%s1 + $0xbc] sm:$0xf]
  %v71 = vld [vmem:[%s1 + $0xc0] sm:$0xf]
  %v72 = vld [vmem:[%s1 + $0xc4] sm:$0xf]
  %v73 = vld [vmem:[%s1 + $0xc8] sm:$0xf]
  %v74 = vld [vmem:[%s1 + $0xcc] sm:$0xf]
  %v75 = vld [vmem:[%s1 + $0xd0] sm:$0xf]
  %v76 = vld [vmem:[%s1 + $0xd4] sm:$0xf]
  %v77 = vld [vmem:[%s1 + $0xd8] sm:$0xf]
  %v78 = vld [vmem:[%s1 + $0xdc] sm:$0xf]
  %v79 = vld [vmem:[%s1 + $0xe0] sm:$0xf]
  %v80 = vld [vmem:[%s1 + $0xe4] sm:$0xf]
  %v81 = vld [vmem:[%s1 + $0xe8] sm:$0xf]
  %v82 = vld [vmem:[%s1 + $0xec] sm:$0xf]
  %v83 = vld [vmem:[%s1 + $0xf0] sm:$0xf]
  %v84 = vld [vmem:[%s1 + $0xf4] sm:$0xf]
  %v85 = vld [vmem:[%s1 + $0xf8] sm:$0xf]
  %v86 = vld [vmem:[%s1 + $0xfc] sm:$0xf]
  %v87 = vld [vmem:[%s1 + $0x100] sm:$0xf]
  %v88 = vld [vmem:[%s1 + $0x104] sm:$0xf]
  %v89 = vld [vmem:[%s1 + $0x108] sm:$0xf]
  %v90 = vld [vmem:[%s1 + $0x10c] sm:$0xf]
  %v91 = vld [vmem:[%s1 + $0x110] sm:$0xf]
  %v92 = vld [vmem:[%s1 + $0x114] sm:$0xf]
  %v93 = vld [vmem:[%s1 + $0x118] sm:$0xf]
  %v94 = vld [vmem:[%s1 + $0x11c] sm:$0xf]
  %v95 = vld [vmem:[%s1 + $0x120] sm:$0xf]
  %v96 = vld [vmem:[%s1 + $0x124] sm:$0xf]
  %v97 = vld [vmem:[%s1 + $0x128] sm:$0xf]
  %v98 = vld [vmem:[%s1 + $0x12c] sm:$0xf]
  %v99 = vld [vmem:[%s1 + $0x130] sm:$0xf]
  %v100 = vld [vmem:[%s1 + $0x134] sm:$0xf]
  %v101 = vld [vmem:[%s1 + $0x138] sm:$0xf]
  %v102 = vld [vmem:[%s1 + $0x13c] sm:$0xf]
  %v103 = vld [vmem:[%s1 + $0x140] sm:$0xf]
  %v104 = vld [vmem:[%s1 + $0x144] sm:$0xf]
  %v105 = vld [vmem:[%s1 + $0x148] sm:$0xf]
  %v106 = vld [vmem:[%s1 + $0x14c] sm:$0xf]
  %v107 = vld [vmem:[%s1 + $0x150] sm:$0xf]
  %v108 = vld [vmem:[%s1 + $0x154] sm:$0xf]
  %v109 = vld [vmem:[%s1 + $0x158] sm:$0xf]
  %v110 = vld [vmem:[%s1 + $0x15c] sm:$0xf]
  %v111 = vld [vmem:[%s1 + $0x160] sm:$0xf]
  %v112 = vld [vmem:[%s1 + $0x164] sm:$0xf]
  %v113 = vld [vmem:[%s1 + $0x168] sm:$0xf]
  %v114 = vld [vmem:[%s1 + $0x16c] sm:$0xf]
  %v115 = vld [vmem:[%s1 + $0x170] sm:$0xf]
  %v116 = vld [vmem:[%s1 + $0x174] sm:$0xf]
  %v117 = vld [vmem:[%s1 + $0x178] sm:$0xf]
  %v118 = vld [vmem:[%s1 + $0x17c] sm:$0xf]
  %v119 = vld [vmem:[%s1 + $0x180] sm:$0xf]
  %v120 = vld [vmem:[%s1 + $0x184] sm:$0xf]
  %v121 = vld [vmem:[%s1 + $0x188] sm:$0xf]
  %v122 = vld [vmem:[%s1 + $0x18c] sm:$0xf]
  %v123 = vld [vmem:[%s1 + $0x190] sm:$0xf]
  %v124 = vld [vmem:[%s1 + $0x194] sm:$0xf]
  %v125 = vld [vmem:[%s1 + $0x198] sm:$0xf]
  %v126 = vld [vmem:[%s1 + $0x19c] sm:$0xf]
  %v127 = vld [vmem:[%s1 + $0x1a0] sm:$0xf]
  %v128 = vld [vmem:[%s1 + $0x1a4] sm:$0xf]
  %v129 = vld [vmem:[%s1 + $0x1a8] sm:$0xf]
  %v130 = vld [vmem:[%s1 + $0x1ac] sm:$0xf]
  %v131 = vld [vmem:[%s1 + $0x1b0] sm:$0xf]
  %v132 = vld [vmem:[%s1 + $0x1b4] sm:$0xf]
  %v133 = vld [vmem:[%s1 + $0x1b8] sm:$0xf]
  %v134 = vld [vmem:[%s1 + $0x1bc] sm:$0xf]
  %v135 = vld [vmem:[%s1 + $0x1c0] sm:$0xf]
  %v136 = vld [vmem:[%s1 + $0x1c4] sm:$0xf]
  %v137 = vld [vmem:[%s1 + $0x1c8] sm:$0xf]
  %v138 = vld [vmem:[%s1 + $0x1cc] sm:$0xf]
  %v139 = vld [vmem:[%s1 + $0x1d0] sm:$0xf]
  %v140 = vld [vmem:[%s1 + $0x1d4] sm:$0xf]
  %v141 = vld [vmem:[%s1 + $0x1d8] sm:$0xf]
  %v142 = vld [vmem:[%s1 + $0x1dc] sm:$0xf]
  %v143 = vld [vmem:[%s1 + $0x1e0] sm:$0xf]
  %v144 = vld [vmem:[%s1 + $0x1e4] sm:$0xf]
  %v145 = vld [vmem:[%s1 + $0x1e8] sm:$0xf]
  %v146 = vld [vmem:[%s1 + $0x1ec] sm:$0xf]
  %v147 = vld [vmem:[%s1 + $0x1f0] sm:$0xf]
  %v148 = vld [vmem:[%s1 + $0x1f4] sm:$0xf]
  %v149 = vld [vmem:[%s1 + $0x1f8] sm:$0xf]
  %v150 = vld [vmem:[%s1 + $0x1fc] sm:$0xf]
  %v151 = vld [vmem:[%s1 + $0x200] sm:$0xf]
  %v152 = vld [vmem:[%s1 + $0x204] sm:$0xf]
  %v153 = vld [vmem:[%s1 + $0x208] sm:$0xf]
  %v154 = vld [vmem:[%s1 + $0x20c] sm:$0xf]
  %v155 = vld [vmem:[%s1 + $0x210] sm:$0xf]
  %v156 = vld [vmem:[%s1 + $0x214] sm:$0xf]
  %v157 = vld [vmem:[%s1 + $0x218] sm:$0xf]
  %v158 = vld [vmem:[%s1 + $0x21c] sm:$0xf]
  %v159 = vld [vmem:[%s1 + $0x220] sm:$0xf]
  %v160 = vld [vmem:[%s1 + $0x224] sm:$0xf]
  %v161 = vld [vmem:[%s1 + $0x228] sm:$0xf]
  %v162 = vld [vmem:[%s1 + $0x22c] sm:$0xf]
  %v163 = vld [vmem:[%s1 + $0x230] sm:$0xf]
  %v164 = vld [vmem:[%s1 + $0x234] sm:$0xf]
  %v165 = vld [vmem:[%s1 + $0x238] sm:$0xf]
  %v166 = vld [vmem:[%s1 + $0x23c] sm:$0xf]
  %v167 = vld [vmem:[%s2] sm:$0x1]
  %v169 = vlaneseq
  %v170 = vshrl.u32 %v169, 7
  %v171 = vsub.s32 0, %v170
  %v172 = vrot.slane %v167, %v171
  %v179 = vunpack.c.l.b16 %v18
  %v180 = vunpack.c.h.b16 %v18
  %v181 = vunpack.c.l.b16 %v19
  %v182 = vunpack.c.h.b16 %v19
  %v183 = vunpack.c.l.b16 %v20
  %v184 = vunpack.c.h.b16 %v20
  %v185 = vunpack.c.l.b16 %v21
  %v186 = vunpack.c.h.b16 %v21
  %v187 = vunpack.c.l.b16 %v22
  %v188 = vpack.c.b16 %v179, %v179
  %v189 = vpack.c.b16 %v180, %v180
  %v190 = vpack.c.b16 %v181, %v181
  %v191 = vpack.c.b16 %v182, %v182
  %v192 = vpack.c.b16 %v183, %v183
  %v193 = vpack.c.b16 %v184, %v184
  %v194 = vpack.c.b16 %v185, %v185
  %v195 = vpack.c.b16 %v186, %v186
  %v196 = vpack.c.b16 %v187, %v187
  %v350 = vunpack.c.l.b16 %v23
  %v351 = vunpack.c.l.b16 %v24
  %v352 = vunpack.c.l.b16 %v25
  %v353 = vunpack.c.l.b16 %v26
  %v354 = vunpack.c.l.b16 %v27
  %v355 = vunpack.c.l.b16 %v28
  %v356 = vunpack.c.l.b16 %v29
  %v357 = vunpack.c.l.b16 %v30
  %v358 = vunpack.c.l.b16 %v31
  %v359 = vunpack.c.l.b16 %v32
  %v360 = vunpack.c.l.b16 %v33
  %v361 = vunpack.c.l.b16 %v34
  %v362 = vunpack.c.l.b16 %v35
  %v363 = vunpack.c.l.b16 %v36
  %v364 = vunpack.c.l.b16 %v37
  %v365 = vunpack.c.l.b16 %v38
  %v366 = vunpack.c.l.b16 %v39
  %v367 = vunpack.c.l.b16 %v40
  %v368 = vunpack.c.l.b16 %v41
  %v369 = vunpack.c.l.b16 %v42
  %v370 = vunpack.c.l.b16 %v43
  %v371 = vunpack.c.l.b16 %v44
  %v372 = vunpack.c.l.b16 %v45
  %v373 = vunpack.c.l.b16 %v46
  %v374 = vunpack.c.l.b16 %v47
  %v375 = vunpack.c.l.b16 %v48
  %v376 = vunpack.c.l.b16 %v49
  %v377 = vunpack.c.l.b16 %v50
  %v378 = vunpack.c.l.b16 %v51
  %v379 = vunpack.c.l.b16 %v52
  %v380 = vunpack.c.l.b16 %v53
  %v381 = vunpack.c.l.b16 %v54
  %v382 = vunpack.c.l.b16 %v55
  %v383 = vunpack.c.l.b16 %v56
  %v384 = vunpack.c.l.b16 %v57
  %v385 = vunpack.c.l.b16 %v58
  %v386 = vunpack.c.l.b16 %v59
  %v387 = vunpack.c.l.b16 %v60
  %v388 = vunpack.c.l.b16 %v61
  %v389 = vunpack.c.l.b16 %v62
  %v390 = vunpack.c.l.b16 %v63
  %v391 = vunpack.c.l.b16 %v64
  %v392 = vunpack.c.l.b16 %v65
  %v393 = vunpack.c.l.b16 %v66
  %v394 = vunpack.c.l.b16 %v67
  %v395 = vunpack.c.l.b16 %v68
  %v396 = vunpack.c.l.b16 %v69
  %v397 = vunpack.c.l.b16 %v70
  %v398 = vunpack.c.l.b16 %v71
  %v399 = vunpack.c.l.b16 %v72
  %v400 = vunpack.c.l.b16 %v73
  %v401 = vunpack.c.l.b16 %v74
  %v402 = vunpack.c.l.b16 %v75
  %v403 = vunpack.c.l.b16 %v76
  %v404 = vunpack.c.l.b16 %v77
  %v405 = vunpack.c.l.b16 %v78
  %v406 = vunpack.c.l.b16 %v79
  %v407 = vunpack.c.l.b16 %v80
  %v408 = vunpack.c.l.b16 %v81
  %v409 = vunpack.c.l.b16 %v82
  %v410 = vunpack.c.l.b16 %v83
  %v411 = vunpack.c.l.b16 %v84
  %v412 = vunpack.c.l.b16 %v85
  %v413 = vunpack.c.l.b16 %v86
  %v414 = vunpack.c.l.b16 %v87
  %v415 = vunpack.c.l.b16 %v88
  %v416 = vunpack.c.l.b16 %v89
  %v417 = vunpack.c.l.b16 %v90
  %v418 = vunpack.c.l.b16 %v91
  %v419 = vunpack.c.l.b16 %v92
  %v420 = vunpack.c.l.b16 %v93
  %v421 = vunpack.c.l.b16 %v94
  %v422 = vunpack.c.l.b16 %v95
  %v423 = vunpack.c.l.b16 %v96
  %v424 = vunpack.c.l.b16 %v97
  %v425 = vunpack.c.l.b16 %v98
  %v426 = vunpack.c.l.b16 %v99
  %v427 = vunpack.c.l.b16 %v100
  %v428 = vunpack.c.l.b16 %v101
  %v429 = vunpack.c.l.b16 %v102
  %v430 = vunpack.c.l.b16 %v103
  %v431 = vunpack.c.l.b16 %v104
  %v432 = vunpack.c.l.b16 %v105
  %v433 = vunpack.c.l.b16 %v106
  %v434 = vunpack.c.l.b16 %v107
  %v435 = vunpack.c.l.b16 %v108
  %v436 = vunpack.c.l.b16 %v109
  %v437 = vunpack.c.l.b16 %v110
  %v438 = vunpack.c.l.b16 %v111
  %v439 = vunpack.c.l.b16 %v112
  %v440 = vunpack.c.l.b16 %v113
  %v441 = vunpack.c.l.b16 %v114
  %v442 = vunpack.c.l.b16 %v115
  %v443 = vunpack.c.l.b16 %v116
  %v444 = vunpack.c.l.b16 %v117
  %v445 = vunpack.c.l.b16 %v118
  %v446 = vunpack.c.l.b16 %v119
  %v447 = vunpack.c.l.b16 %v120
  %v448 = vunpack.c.l.b16 %v121
  %v449 = vunpack.c.l.b16 %v122
  %v450 = vunpack.c.l.b16 %v123
  %v451 = vunpack.c.l.b16 %v124
  %v452 = vunpack.c.l.b16 %v125
  %v453 = vunpack.c.l.b16 %v126
  %v454 = vunpack.c.l.b16 %v127
  %v455 = vunpack.c.l.b16 %v128
  %v456 = vunpack.c.l.b16 %v129
  %v457 = vunpack.c.l.b16 %v130
  %v458 = vunpack.c.l.b16 %v131
  %v459 = vunpack.c.l.b16 %v132
  %v460 = vunpack.c.l.b16 %v133
  %v461 = vunpack.c.l.b16 %v134
  %v462 = vunpack.c.l.b16 %v135
  %v463 = vunpack.c.l.b16 %v136
  %v464 = vunpack.c.l.b16 %v137
  %v465 = vunpack.c.l.b16 %v138
  %v466 = vunpack.c.l.b16 %v139
  %v467 = vunpack.c.l.b16 %v140
  %v468 = vunpack.c.l.b16 %v141
  %v469 = vunpack.c.l.b16 %v142
  %v470 = vunpack.c.l.b16 %v143
  %v471 = vunpack.c.l.b16 %v144
  %v472 = vunpack.c.l.b16 %v145
  %v473 = vunpack.c.l.b16 %v146
  %v474 = vunpack.c.l.b16 %v147
  %v475 = vunpack.c.l.b16 %v148
  %v476 = vunpack.c.l.b16 %v149
  %v477 = vunpack.c.l.b16 %v150
  %v478 = vunpack.c.l.b16 %v151
  %v479 = vunpack.c.l.b16 %v152
  %v480 = vunpack.c.l.b16 %v153
  %v481 = vunpack.c.l.b16 %v154
  %v482 = vunpack.c.l.b16 %v155
  %v483 = vunpack.c.l.b16 %v156
  %v484 = vunpack.c.l.b16 %v157
  %v485 = vunpack.c.l.b16 %v158
  %v486 = vunpack.c.l.b16 %v159
  %v487 = vunpack.c.l.b16 %v160
  %v488 = vunpack.c.l.b16 %v161
  %v489 = vunpack.c.l.b16 %v162
  %v490 = vunpack.c.l.b16 %v163
  %v491 = vunpack.c.l.b16 %v164
  %v492 = vunpack.c.l.b16 %v165
  %v493 = vunpack.c.l.b16 %v166
  %v494 = vpack.c.b16 %v351, %v350
  %v495 = vpack.c.b16 %v353, %v352
  %v496 = vpack.c.b16 %v355, %v354
  %v497 = vpack.c.b16 %v357, %v356
  %v498 = vpack.c.b16 %v359, %v358
  %v499 = vpack.c.b16 %v361, %v360
  %v500 = vpack.c.b16 %v363, %v362
  %v501 = vpack.c.b16 %v365, %v364
  %v502 = vpack.c.b16 %v367, %v366
  %v503 = vpack.c.b16 %v369, %v368
  %v504 = vpack.c.b16 %v371, %v370
  %v505 = vpack.c.b16 %v373, %v372
  %v506 = vpack.c.b16 %v375, %v374
  %v507 = vpack.c.b16 %v377, %v376
  %v508 = vpack.c.b16 %v379, %v378
  %v509 = vpack.c.b16 %v381, %v380
  %v510 = vpack.c.b16 %v383, %v382
  %v511 = vpack.c.b16 %v385, %v384
  %v512 = vpack.c.b16 %v387, %v386
  %v513 = vpack.c.b16 %v389, %v388
  %v514 = vpack.c.b16 %v391, %v390
  %v515 = vpack.c.b16 %v393, %v392
  %v516 = vpack.c.b16 %v395, %v394
  %v517 = vpack.c.b16 %v397, %v396
  %v518 = vpack.c.b16 %v399, %v398
  %v519 = vpack.c.b16 %v401, %v400
  %v520 = vpack.c.b16 %v403, %v402
  %v521 = vpack.c.b16 %v405, %v404
  %v522 = vpack.c.b16 %v407, %v406
  %v523 = vpack.c.b16 %v409, %v408
  %v524 = vpack.c.b16 %v411, %v410
  %v525 = vpack.c.b16 %v413, %v412
  %v526 = vpack.c.b16 %v415, %v414
  %v527 = vpack.c.b16 %v417, %v416
  %v528 = vpack.c.b16 %v419, %v418
  %v529 = vpack.c.b16 %v421, %v420
  %v530 = vpack.c.b16 %v423, %v422
  %v531 = vpack.c.b16 %v425, %v424
  %v532 = vpack.c.b16 %v427, %v426
  %v533 = vpack.c.b16 %v429, %v428
  %v534 = vpack.c.b16 %v431, %v430
  %v535 = vpack.c.b16 %v433, %v432
  %v536 = vpack.c.b16 %v435, %v434
  %v537 = vpack.c.b16 %v437, %v436
  %v538 = vpack.c.b16 %v439, %v438
  %v539 = vpack.c.b16 %v441, %v440
  %v540 = vpack.c.b16 %v443, %v442
  %v541 = vpack.c.b16 %v445, %v444
  %v542 = vpack.c.b16 %v447, %v446
  %v543 = vpack.c.b16 %v449, %v448
  %v544 = vpack.c.b16 %v451, %v450
  %v545 = vpack.c.b16 %v453, %v452
  %v546 = vpack.c.b16 %v455, %v454
  %v547 = vpack.c.b16 %v457, %v456
  %v548 = vpack.c.b16 %v459, %v458
  %v549 = vpack.c.b16 %v461, %v460
  %v550 = vpack.c.b16 %v463, %v462
  %v551 = vpack.c.b16 %v465, %v464
  %v552 = vpack.c.b16 %v467, %v466
  %v553 = vpack.c.b16 %v469, %v468
  %v554 = vpack.c.b16 %v471, %v470
  %v555 = vpack.c.b16 %v473, %v472
  %v556 = vpack.c.b16 %v475, %v474
  %v557 = vpack.c.b16 %v477, %v476
  %v558 = vpack.c.b16 %v479, %v478
  %v559 = vpack.c.b16 %v481, %v480
  %v560 = vpack.c.b16 %v483, %v482
  %v561 = vpack.c.b16 %v485, %v484
  %v562 = vpack.c.b16 %v487, %v486
  %v563 = vpack.c.b16 %v489, %v488
  %v564 = vpack.c.b16 %v491, %v490
  %v565 = vpack.c.b16 %v493, %v492
  %638 = vmatprep.subr.bf16.mxu0 0
  %639 = vmatpush1.bf16.msra.mxu0 %v494
  %640 = vmatprep.subr.bf16.mxu0 0
  %641 = vmatpush1.bf16.msra.mxu0 %v495
  %642 = vmatprep.subr.bf16.mxu0 0
  %643 = vmatpush1.bf16.msra.mxu0 %v496
  %644 = vmatprep.subr.bf16.mxu0 0
  %645 = vmatpush1.bf16.msra.mxu0 %v497
  %646 = vmatprep.subr.bf16.mxu0 0
  %647 = vmatpush1.bf16.msra.mxu0 %v498
  %648 = vmatprep.subr.bf16.mxu0 0
  %649 = vmatpush1.bf16.msra.mxu0 %v499
  %650 = vmatprep.subr.bf16.mxu0 0
  %651 = vmatpush1.bf16.msra.mxu0 %v500
  %652 = vmatprep.subr.bf16.mxu0 0
  %653 = vmatpush1.bf16.msra.mxu0 %v501
  %654 = vmatprep.subr.bf16.mxu0 0
  %655 = vmatpush1.bf16.msra.mxu0 %v502
  %656 = vmatprep.subr.bf16.mxu0 0
  %657 = vmatpush1.bf16.msra.mxu0 %v503
  %658 = vmatprep.subr.bf16.mxu0 0
  %659 = vmatpush1.bf16.msra.mxu0 %v504
  %660 = vmatprep.subr.bf16.mxu0 0
  %661 = vmatpush1.bf16.msra.mxu0 %v505
  %662 = vmatprep.subr.bf16.mxu0 0
  %663 = vmatpush1.bf16.msra.mxu0 %v506
  %664 = vmatprep.subr.bf16.mxu0 0
  %665 = vmatpush1.bf16.msra.mxu0 %v507
  %666 = vmatprep.subr.bf16.mxu0 0
  %667 = vmatpush1.bf16.msra.mxu0 %v508
  %668 = vmatprep.subr.bf16.mxu0 0
  %669 = vmatpush1.bf16.msra.mxu0 %v509
  %670 = vmatprep.mubr.bf16.mxu0 %v189
  %671 = vmatmul.mubr.bf16.gmra.mrb[0].mxu0 %v188
  %v672 = vpop.f32.mrb[0].mxu0
  %v673 = vadd.f32 %v172, %v672
  %v674 = vpop.f32.mrb[0].mxu0
  %v675 = vpop.f32.mrb[0].mxu0
  %v676 = vpop.f32.mrb[0].mxu0
  %677 = vdwg.mxu0
  %678 = vmatprep.subr.bf16.mxu0 0
  %679 = vmatpush1.bf16.msra.mxu0 %v510
  %680 = vmatprep.subr.bf16.mxu0 0
  %681 = vmatpush1.bf16.msra.mxu0 %v511
  %682 = vmatprep.subr.bf16.mxu0 0
  %683 = vmatpush1.bf16.msra.mxu0 %v512
  %684 = vmatprep.subr.bf16.mxu0 0
  %685 = vmatpush1.bf16.msra.mxu0 %v513
  %686 = vmatprep.subr.bf16.mxu0 0
  %687 = vmatpush1.bf16.msra.mxu0 %v514
  %688 = vmatprep.subr.bf16.mxu0 0
  %689 = vmatpush1.bf16.msra.mxu0 %v515
  %690 = vmatprep.subr.bf16.mxu0 0
  %691 = vmatpush1.bf16.msra.mxu0 %v516
  %692 = vmatprep.subr.bf16.mxu0 0
  %693 = vmatpush1.bf16.msra.mxu0 %v517
  %694 = vmatprep.subr.bf16.mxu0 0
  %695 = vmatpush1.bf16.msra.mxu0 %v518
  %696 = vmatprep.subr.bf16.mxu0 0
  %697 = vmatpush1.bf16.msra.mxu0 %v519
  %698 = vmatprep.subr.bf16.mxu0 0
  %699 = vmatpush1.bf16.msra.mxu0 %v520
  %700 = vmatprep.subr.bf16.mxu0 0
  %701 = vmatpush1.bf16.msra.mxu0 %v521
  %702 = vmatprep.subr.bf16.mxu0 0
  %703 = vmatpush1.bf16.msra.mxu0 %v522
  %704 = vmatprep.subr.bf16.mxu0 0
  %705 = vmatpush1.bf16.msra.mxu0 %v523
  %706 = vmatprep.subr.bf16.mxu0 0
  %707 = vmatpush1.bf16.msra.mxu0 %v524
  %708 = vmatprep.subr.bf16.mxu0 0
  %709 = vmatpush1.bf16.msra.mxu0 %v525
  %710 = vmatprep.mubr.bf16.mxu0 %v191
  %711 = vmatmul.mubr.bf16.gmra.mrb[0].mxu0 %v190
  %v712 = vpop.f32.mrb[0].mxu0
  %v713 = vadd.f32 %v673, %v712
  %v714 = vpop.f32.mrb[0].mxu0
  %v715 = vpop.f32.mrb[0].mxu0
  %v716 = vpop.f32.mrb[0].mxu0
  %717 = vdwg.mxu0
  %718 = vmatprep.subr.bf16.mxu0 0
  %719 = vmatpush1.bf16.msra.mxu0 %v526
  %720 = vmatprep.subr.bf16.mxu0 0
  %721 = vmatpush1.bf16.msra.mxu0 %v527
  %722 = vmatprep.subr.bf16.mxu0 0
  %723 = vmatpush1.bf16.msra.mxu0 %v528
  %724 = vmatprep.subr.bf16.mxu0 0
  %725 = vmatpush1.bf16.msra.mxu0 %v529
  %726 = vmatprep.subr.bf16.mxu0 0
  %727 = vmatpush1.bf16.msra.mxu0 %v530
  %728 = vmatprep.subr.bf16.mxu0 0
  %729 = vmatpush1.bf16.msra.mxu0 %v531
  %730 = vmatprep.subr.bf16.mxu0 0
  %731 = vmatpush1.bf16.msra.mxu0 %v532
  %732 = vmatprep.subr.bf16.mxu0 0
  %733 = vmatpush1.bf16.msra.mxu0 %v533
  %734 = vmatprep.subr.bf16.mxu0 0
  %735 = vmatpush1.bf16.msra.mxu0 %v534
  %736 = vmatprep.subr.bf16.mxu0 0
  %737 = vmatpush1.bf16.msra.mxu0 %v535
  %738 = vmatprep.subr.bf16.mxu0 0
  %739 = vmatpush1.bf16.msra.mxu0 %v536
  %740 = vmatprep.subr.bf16.mxu0 0
  %741 = vmatpush1.bf16.msra.mxu0 %v537
  %742 = vmatprep.subr.bf16.mxu0 0
  %743 = vmatpush1.bf16.msra.mxu0 %v538
  %744 = vmatprep.subr.bf16.mxu0 0
  %745 = vmatpush1.bf16.msra.mxu0 %v539
  %746 = vmatprep.subr.bf16.mxu0 0
  %747 = vmatpush1.bf16.msra.mxu0 %v540
  %748 = vmatprep.subr.bf16.mxu0 0
  %749 = vmatpush1.bf16.msra.mxu0 %v541
  %750 = vmatprep.mubr.bf16.mxu0 %v193
  %751 = vmatmul.mubr.bf16.gmra.mrb[0].mxu0 %v192
  %v752 = vpop.f32.mrb[0].mxu0
  %v753 = vadd.f32 %v713, %v752
  %v754 = vpop.f32.mrb[0].mxu0
  %v755 = vpop.f32.mrb[0].mxu0
  %v756 = vpop.f32.mrb[0].mxu0
  %757 = vdwg.mxu0
  %758 = vmatprep.subr.bf16.mxu0 0
  %759 = vmatpush1.bf16.msra.mxu0 %v542
  %760 = vmatprep.subr.bf16.mxu0 0
  %761 = vmatpush1.bf16.msra.mxu0 %v543
  %762 = vmatprep.subr.bf16.mxu0 0
  %763 = vmatpush1.bf16.msra.mxu0 %v544
  %764 = vmatprep.subr.bf16.mxu0 0
  %765 = vmatpush1.bf16.msra.mxu0 %v545
  %766 = vmatprep.subr.bf16.mxu0 0
  %767 = vmatpush1.bf16.msra.mxu0 %v546
  %768 = vmatprep.subr.bf16.mxu0 0
  %769 = vmatpush1.bf16.msra.mxu0 %v547
  %770 = vmatprep.subr.bf16.mxu0 0
  %771 = vmatpush1.bf16.msra.mxu0 %v548
  %772 = vmatprep.subr.bf16.mxu0 0
  %773 = vmatpush1.bf16.msra.mxu0 %v549
  %774 = vmatprep.subr.bf16.mxu0 0
  %775 = vmatpush1.bf16.msra.mxu0 %v550
  %776 = vmatprep.subr.bf16.mxu0 0
  %777 = vmatpush1.bf16.msra.mxu0 %v551
  %778 = vmatprep.subr.bf16.mxu0 0
  %779 = vmatpush1.bf16.msra.mxu0 %v552
  %780 = vmatprep.subr.bf16.mxu0 0
  %781 = vmatpush1.bf16.msra.mxu0 %v553
  %782 = vmatprep.subr.bf16.mxu0 0
  %783 = vmatpush1.bf16.msra.mxu0 %v554
  %784 = vmatprep.subr.bf16.mxu0 0
  %785 = vmatpush1.bf16.msra.mxu0 %v555
  %786 = vmatprep.subr.bf16.mxu0 0
  %787 = vmatpush1.bf16.msra.mxu0 %v556
  %788 = vmatprep.subr.bf16.mxu0 0
  %789 = vmatpush1.bf16.msra.mxu0 %v557
  %790 = vmatprep.mubr.bf16.mxu0 %v195
  %791 = vmatmul.mubr.bf16.gmra.mrb[0].mxu0 %v194
  %v792 = vpop.f32.mrb[0].mxu0
  %v793 = vadd.f32 %v753, %v792
  %v794 = vpop.f32.mrb[0].mxu0
  %v795 = vpop.f32.mrb[0].mxu0
  %v796 = vpop.f32.mrb[0].mxu0
  %797 = vdwg.mxu0
  %798 = vmatprep.subr.bf16.mxu0 0
  %799 = vmatpush1.bf16.msra.mxu0 %v558
  %800 = vmatprep.subr.bf16.mxu0 0
  %801 = vmatpush1.bf16.msra.mxu0 %v559
  %802 = vmatprep.subr.bf16.mxu0 0
  %803 = vmatpush1.bf16.msra.mxu0 %v560
  %804 = vmatprep.subr.bf16.mxu0 0
  %805 = vmatpush1.bf16.msra.mxu0 %v561
  %806 = vmatprep.subr.bf16.mxu0 0
  %807 = vmatpush1.bf16.msra.mxu0 %v562
  %808 = vmatprep.subr.bf16.mxu0 0
  %809 = vmatpush1.bf16.msra.mxu0 %v563
  %810 = vmatprep.subr.bf16.mxu0 0
  %811 = vmatpush1.bf16.msra.mxu0 %v564
  %812 = vmatprep.subr.bf16.mxu0 0
  %813 = vmatpush1.bf16.msra.mxu0 %v565
  %814 = vmatprep.subr.bf16.mxu0 0
  %815 = vmatpush1.bf16.msra.mxu0 0
  %816 = vmatprep.subr.bf16.mxu0 0
  %817 = vmatpush1.bf16.msra.mxu0 0
  %818 = vmatprep.subr.bf16.mxu0 0
  %819 = vmatpush1.bf16.msra.mxu0 0
  %820 = vmatprep.subr.bf16.mxu0 0
  %821 = vmatpush1.bf16.msra.mxu0 0
  %822 = vmatprep.subr.bf16.mxu0 0
  %823 = vmatpush1.bf16.msra.mxu0 0
  %824 = vmatprep.subr.bf16.mxu0 0
  %825 = vmatpush1.bf16.msra.mxu0 0
  %826 = vmatprep.subr.bf16.mxu0 0
  %827 = vmatpush1.bf16.msra.mxu0 0
  %828 = vmatprep.subr.bf16.mxu0 0
  %829 = vmatpush1.bf16.msra.mxu0 0
  %830 = vmatprep.mubr.bf16.mxu0 0
  %831 = vmatmul.mubr.bf16.gmra.mrb[0].mxu0 %v196
  %v832 = vpop.f32.mrb[0].mxu0
  %v833 = vadd.f32 %v793, %v832
  %v834 = vpop.f32.mrb[0].mxu0
  %v835 = vpop.f32.mrb[0].mxu0
  %v836 = vpop.f32.mrb[0].mxu0
  %837 = vdwg.mxu0
  %v838 = vld [vmem:[%s3] sm:$0xf]
  %v839 = vunpack.c.l.bf16 %v838
  %v840 = vadd.f32 %v833, %v839
  %v841 = vmax.f32 %v840, 0.0
  %v842 = vpack.c.bf16 %v841, %v841
  %843 = vst [vmem:[%s4] sm:$0xf] %v842
  // Predicated region
  $region18: #{_lambda_.22} parent=0 // pred_check
    _
  $region19: #{_lambda_.22} parent=0 // pred_check_branch
    %845 = sbr.rel (0) target = $region21
  $region20: #{_lambda_.22} parent=0 // pred_region
    _
  $region21: #{_lambda_.22} parent=0 // pred_fallthru
    _
  // Predicated region
  $region22: #{_lambda_.22} parent=0 // pred_check
    _
  $region23: #{_lambda_.22} parent=0 // pred_check_branch
    %847 = sbr.rel (0) target = $region25
  $region24: #{_lambda_.22} parent=0 // pred_region
    _
  $region25: #{_lambda_.22} parent=0 // pred_fallthru
    _

</llo_original>
